<compile_context>
chip_gen: v7x
topology: tpu7x:2x2x1
jax: 0.10.0
libtpu: 0.0.40
codegen_flags: <defaults>
</compile_context>

<pallas_src>
import functools

import jax
import jax.numpy as jnp
import numpy as np
from jax import lax
from jax.experimental import pallas as pl
from jax.experimental.pallas import tpu as pltpu

EPS = 1e-5  # torch BatchNorm default eps


def _vmem_spec():
    # Whole-array operands resident in VMEM (no grid; shapes are tiny here).
    return pl.BlockSpec(memory_space=pltpu.MemorySpace.VMEM)


def _bn_train(y, gamma, beta, axis):
    """Training-mode BatchNorm (biased variance), two-pass, f32."""
    n = y.shape[axis]
    mean = jnp.sum(y, axis=axis, keepdims=True) * (1.0 / n)
    yc = y - mean
    var = jnp.sum(yc * yc, axis=axis, keepdims=True) * (1.0 / n)
    return yc * lax.rsqrt(var + EPS) * gamma + beta


def _conv_slab(A, w2d, rpad, col_ref, *, K, d, B, L):
    """Stride-1 dilated conv on a (C_in, B*L) slab -> (C_out, B*L).

    Reflect padding is one 0/1 gather matmul (rpad operand), the K dilated taps
    are stacked into the col_ref scratch with B*K wide stores, and the conv is
    ONE MXU matmul with contraction depth K*C_in.
    """
    C_in = A.shape[0]
    Lp = L + (K - 1) * d
    # (C_in, B*L) @ (B*L, B*Lp): per-batch reflect pad, exact (one 1 per column)
    xp = jnp.dot(A, rpad, preferred_element_type=jnp.float32)
    for b in range(B):
        for k in range(K):
            start = b * Lp + k * d
            col_ref[k * C_in:(k + 1) * C_in, b * L:(b + 1) * L] = (
                xp[:, start:start + L])
    slab = col_ref[0:K * C_in, 0:B * L]                       # (K*C_in, B*L)
    return jnp.dot(w2d, slab, preferred_element_type=jnp.float32)


def _mee_kernel(*refs, B, L0, blocks, n_mlp):
    """Fused MEE forward.  refs = (inputs..., out_ref, col_scratch, enc_scratch)."""
    out_ref, col_ref, enc_ref = refs[-3], refs[-2], refs[-1]

    idx = 0
    A = refs[idx][...]           # (1, B*L0): batch already folded into lanes
    idx += 1
    L = L0

    # ---------------- encoder: fused Res_ConvBlocks --------------------------
    for (K, d, s) in blocks:
        w1 = refs[idx][...]
        b1 = refs[idx + 1][...]
        g1 = refs[idx + 2][...]
        be1 = refs[idx + 3][...]
        w2 = refs[idx + 4][...]
        b2 = refs[idx + 5][...]
        g2 = refs[idx + 6][...]
        be2 = refs[idx + 7][...]
        rpad = refs[idx + 8][...]
        idx += 9

        # conv1 (C_in -> C_in, stride 1) + BN + ReLU + residual
        y1 = _conv_slab(A, w1, rpad, col_ref, K=K, d=d, B=B, L=L) + b1
        c1 = jnp.maximum(_bn_train(y1, g1, be1, axis=1), 0.0) + A

        # conv2 (C_in -> C_out, stride s) + BN + ReLU
        y2 = _conv_slab(c1, w2, rpad, col_ref, K=K, d=d, B=B, L=L)
        if s > 1:
            sel = refs[idx][...]
            idx += 1
            # block-diagonal decimation (constant operand); MXU contraction B*L
            y2 = jnp.dot(y2, sel, preferred_element_type=jnp.float32)
            L = (L - 1) // s + 1
        y2 = y2 + b2
        A = jnp.maximum(_bn_train(y2, g2, be2, axis=1), 0.0)

    # ---------------- global average pool -> (B, C_last) ---------------------
    for b in range(B):
        enc_ref[b] = A[:, b * L:(b + 1) * L]
    h = jnp.mean(enc_ref[...], axis=-1)                       # (B, C_last)

    # ---------------- MLP tail: (Linear+BN+PReLU) x n, Linear+Sigmoid --------
    for _ in range(n_mlp):
        w = refs[idx][...]
        bm = refs[idx + 1][...]
        g = refs[idx + 2][...]
        be = refs[idx + 3][...]
        alpha = refs[idx + 4][...]
        idx += 5
        y = jnp.dot(h, w, preferred_element_type=jnp.float32) + bm
        yh = _bn_train(y, g, be, axis=0)
        h = jnp.where(yh >= 0.0, yh, alpha * yh)               # PReLU

    wh = refs[idx][...]
    bh = refs[idx + 1][...]
    y = jnp.dot(h, wh, preferred_element_type=jnp.float32) + bh
    out_ref[...] = 1.0 / (1.0 + jnp.exp(-y))


# ---------------------------------------------------------------------------
# Wrapper: builds operands (weights in stacked-tap layout, reflect-pad and
# decimation gather constants) and issues a single pallas_call.
# ---------------------------------------------------------------------------
def mee_forward(params, x, config):
    x = x.astype(jnp.float32)
    B, C0, L0 = x.shape
    assert C0 == 1, "MEE input has a single channel"
    num_controls = params["head"]["w"].shape[1]

    args = [x.reshape(1, B * L0)]          # fold batch into lanes (contiguous)
    blocks = []
    Lc = L0
    max_kc = 1
    for i, blk in enumerate(params["encoder"]):
        K = config["kernels"][i]
        d = config["dilation"][i]
        s = config["strides"][i]
        c_in = blk["conv1"]["w"].shape[1]
        max_kc = max(max_kc, K * c_in)

        for name in ("conv1", "conv2"):
            p = blk[name]
            co, ci, _ = p["w"].shape
            # (C_out, C_in, K) -> (C_out, K*C_in), row k*C_in + ci multiplies tap k
            w2d = jnp.transpose(p["w"], (0, 2, 1)).reshape(co, K * ci)
            args += [w2d, p["b"].reshape(co, 1),
                     p["gamma"].reshape(co, 1), p["beta"].reshape(co, 1)]

        # reflect-pad gather matrix (shared by conv1/conv2 of this block)
        pad = (K - 1) * d
        lp = pad // 2
        Lp = Lc + pad
        rpad = np.zeros((B * Lc, B * Lp), np.float32)
        for b in range(B):
            for j in range(Lp):
                t = j - lp
                if t < 0:
                    t = -t
                elif t >= Lc:
                    t = 2 * Lc - 2 - t
                rpad[b * Lc + t, b * Lp + j] = 1.0
        args.append(jnp.asarray(rpad))

        if s > 1:
            L_out = (Lc - 1) // s + 1
            sel = np.zeros((B * Lc, B * L_out), np.float32)
            for b in range(B):
                sel[b * Lc + np.arange(L_out) * s,
                    b * L_out + np.arange(L_out)] = 1.0
            args.append(jnp.asarray(sel))
            Lc = L_out
        blocks.append((K, d, s))

    for lyr in params["mlp"]:
        fo = lyr["w"].shape[1]
        args += [lyr["w"], lyr["b"].reshape(1, fo),
                 lyr["gamma"].reshape(1, fo), lyr["beta"].reshape(1, fo),
                 lyr["alpha"]]
    args += [params["head"]["w"], params["head"]["b"].reshape(1, num_controls)]

    c_last = params["encoder"][-1]["conv2"]["w"].shape[0]
    kernel = functools.partial(_mee_kernel, B=B, L0=L0,
                               blocks=tuple(blocks), n_mlp=len(params["mlp"]))
    return pl.pallas_call(
        kernel,
        out_shape=jax.ShapeDtypeStruct((B, num_controls), jnp.float32),
        in_specs=[_vmem_spec() for _ in args],
        out_specs=_vmem_spec(),
        scratch_shapes=[
            pltpu.VMEM((max_kc, B * L0), jnp.float32),   # stacked-tap (im2col) slab
            pltpu.VMEM((B, c_last, Lc), jnp.float32),    # pooling staging
        ],
    )(*args)


# ---------------------------------------------------------------------------
# Parameter construction (deterministic, shapes match the torch __init__)
# ---------------------------------------------------------------------------
def init_params(key, config, num_controls, mlp_layers):
    channels = [1] + list(config["channels"])  # MEE inserts a leading 1
    kernels = config["kernels"]
    params = {"encoder": [], "mlp": [], "head": None}

    for i in range(len(kernels)):
        cin, cout, K = channels[i], channels[i + 1], kernels[i]
        block = {}
        for name, (ci, co) in [("conv1", (cin, cin)), ("conv2", (cin, cout))]:
            key, k1, k2 = jax.random.split(key, 3)
            bound = 1.0 / np.sqrt(ci * K)
            block[name] = dict(
                w=jax.random.uniform(k1, (co, ci, K), jnp.float32, -bound, bound),
                b=jax.random.uniform(k2, (co,), jnp.float32, -bound, bound),
                gamma=jnp.ones((co,), jnp.float32),
                beta=jnp.zeros((co,), jnp.float32),
            )
        params["encoder"].append(block)

    dims = [channels[-1]] + list(mlp_layers)
    for i in range(len(dims) - 1):
        key, k1, k2 = jax.random.split(key, 3)
        bound = 1.0 / np.sqrt(dims[i])
        params["mlp"].append(dict(
            w=jax.random.uniform(k1, (dims[i], dims[i + 1]), jnp.float32, -bound, bound),
            b=jax.random.uniform(k2, (dims[i + 1],), jnp.float32, -bound, bound),
            gamma=jnp.ones((dims[i + 1],), jnp.float32),
            beta=jnp.zeros((dims[i + 1],), jnp.float32),
            alpha=jnp.full((1, 1), 0.25, jnp.float32),   # PReLU default init
        ))

    key, k1, k2 = jax.random.split(key, 3)
    bound = 1.0 / np.sqrt(dims[-1])
    params["head"] = dict(
        w=jax.random.uniform(k1, (dims[-1], num_controls), jnp.float32, -bound, bound),
        b=jax.random.uniform(k2, (num_controls,), jnp.float32, -bound, bound),
    )
    return params


# ---------------------------------------------------------------------------
# Pure-JAX reference (correctness check)
# ---------------------------------------------------------------------------
def _ref_conv_bn_relu(x, p, K, d, s):
    pad = (K - 1) * d
    lp, rp = pad // 2, pad - pad // 2
    xp = jnp.pad(x, ((0, 0), (0, 0), (lp, rp)), mode="reflect")
    y = lax.conv_general_dilated(xp, p["w"], window_strides=(s,), padding="VALID",
                                 rhs_dilation=(d,),
                                 dimension_numbers=("NCH", "OIH", "NCH"))
    y = y + p["b"][None, :, None]
    mean = jnp.mean(y, axis=(0, 2), keepdims=True)
    var = jnp.mean(jnp.square(y - mean), axis=(0, 2), keepdims=True)
    y = (y - mean) / jnp.sqrt(var + EPS) * p["gamma"][None, :, None] + p["beta"][None, :, None]
    return jnp.maximum(y, 0.0)


def ref_forward(params, x, config):
    x = x.astype(jnp.float32)
    for i, blk in enumerate(params["encoder"]):
        K = config["kernels"][i]
        s = config["strides"][i]
        d = config["dilation"][i]
        c1 = _ref_conv_bn_relu(x, blk["conv1"], K, d, 1) + x
        x = _ref_conv_bn_relu(c1, blk["conv2"], K, d, s)
    h = jnp.mean(x, axis=-1)
    for lyr in params["mlp"]:
        y = h @ lyr["w"] + lyr["b"]
        mean = jnp.mean(y, axis=0, keepdims=True)
        var = jnp.mean(jnp.square(y - mean), axis=0, keepdims=True)
        y = (y - mean) / jnp.sqrt(var + EPS) * lyr["gamma"] + lyr["beta"]
        h = jnp.where(y >= 0.0, y, lyr["alpha"][0, 0] * y)
    y = h @ params["head"]["w"] + params["head"]["b"]
    return 1.0 / (1.0 + jnp.exp(-y))


# ---------------------------------------------------------------------------
if __name__ == "__main__":
    config = {
        "channels": [4, 8, 16],   # MEE.__init__ inserts a leading 1 -> [1,4,8,16]
        "kernels": [5, 5, 5],
        "strides": [1, 2, 2],
        "dilation": [1, 2, 1],
        "norm": "batch",
        "activation": "relu",
    }
    num_controls = 5
    mlp_layers = [64, 48, 32]

    key = jax.random.PRNGKey(0)
    key, pkey, xkey = jax.random.split(key, 3)
    params = init_params(pkey, config, num_controls, mlp_layers)

    B, L = 2, 64
    x = jax.random.normal(xkey, (B, 1, L), dtype=jnp.float32)

    fwd = jax.jit(functools.partial(mee_forward, config=config))
    out = jax.block_until_ready(fwd(params, x))

    ref = jax.block_until_ready(
        jax.jit(functools.partial(ref_forward, config=config))(params, x))

    assert out.shape == (B, num_controls), out.shape
    np.testing.assert_allclose(np.asarray(out), np.asarray(ref), rtol=2e-3, atol=5e-4)
    print("KERNEL_OK")
</pallas_src>

<mosaic_0001>
module attributes {stable_mosaic.version = 11 : i64} {
  func.func @_mee_kernel(%arg0: memref<1x128xf32, #tpu.memory_space<vmem>>, %arg1: memref<1x5xf32, #tpu.memory_space<vmem>>, %arg2: memref<1x1xf32, #tpu.memory_space<vmem>>, %arg3: memref<1x1xf32, #tpu.memory_space<vmem>>, %arg4: memref<1x1xf32, #tpu.memory_space<vmem>>, %arg5: memref<4x5xf32, #tpu.memory_space<vmem>>, %arg6: memref<4x1xf32, #tpu.memory_space<vmem>>, %arg7: memref<4x1xf32, #tpu.memory_space<vmem>>, %arg8: memref<4x1xf32, #tpu.memory_space<vmem>>, %arg9: memref<128x136xf32, #tpu.memory_space<vmem>>, %arg10: memref<4x20xf32, #tpu.memory_space<vmem>>, %arg11: memref<4x1xf32, #tpu.memory_space<vmem>>, %arg12: memref<4x1xf32, #tpu.memory_space<vmem>>, %arg13: memref<4x1xf32, #tpu.memory_space<vmem>>, %arg14: memref<8x20xf32, #tpu.memory_space<vmem>>, %arg15: memref<8x1xf32, #tpu.memory_space<vmem>>, %arg16: memref<8x1xf32, #tpu.memory_space<vmem>>, %arg17: memref<8x1xf32, #tpu.memory_space<vmem>>, %arg18: memref<128x144xf32, #tpu.memory_space<vmem>>, %arg19: memref<128x64xf32, #tpu.memory_space<vmem>>, %arg20: memref<8x40xf32, #tpu.memory_space<vmem>>, %arg21: memref<8x1xf32, #tpu.memory_space<vmem>>, %arg22: memref<8x1xf32, #tpu.memory_space<vmem>>, %arg23: memref<8x1xf32, #tpu.memory_space<vmem>>, %arg24: memref<16x40xf32, #tpu.memory_space<vmem>>, %arg25: memref<16x1xf32, #tpu.memory_space<vmem>>, %arg26: memref<16x1xf32, #tpu.memory_space<vmem>>, %arg27: memref<16x1xf32, #tpu.memory_space<vmem>>, %arg28: memref<64x72xf32, #tpu.memory_space<vmem>>, %arg29: memref<64x32xf32, #tpu.memory_space<vmem>>, %arg30: memref<16x64xf32, #tpu.memory_space<vmem>>, %arg31: memref<1x64xf32, #tpu.memory_space<vmem>>, %arg32: memref<1x64xf32, #tpu.memory_space<vmem>>, %arg33: memref<1x64xf32, #tpu.memory_space<vmem>>, %arg34: memref<1x1xf32, #tpu.memory_space<vmem>>, %arg35: memref<64x48xf32, #tpu.memory_space<vmem>>, %arg36: memref<1x48xf32, #tpu.memory_space<vmem>>, %arg37: memref<1x48xf32, #tpu.memory_space<vmem>>, %arg38: memref<1x48xf32, #tpu.memory_space<vmem>>, %arg39: memref<1x1xf32, #tpu.memory_space<vmem>>, %arg40: memref<48x32xf32, #tpu.memory_space<vmem>>, %arg41: memref<1x32xf32, #tpu.memory_space<vmem>>, %arg42: memref<1x32xf32, #tpu.memory_space<vmem>>, %arg43: memref<1x32xf32, #tpu.memory_space<vmem>>, %arg44: memref<1x1xf32, #tpu.memory_space<vmem>>, %arg45: memref<32x5xf32, #tpu.memory_space<vmem>>, %arg46: memref<1x5xf32, #tpu.memory_space<vmem>>, %arg47: memref<2x5xf32, #tpu.memory_space<vmem>>, %arg48: memref<40x128xf32, #tpu.memory_space<vmem>>, %arg49: memref<2x16x16xf32, #tpu.memory_space<vmem>>) attributes {dimension_semantics = [], scalar_prefetch = 0 : i64, scratch_operands = 2 : i64, tpu.core_type = #tpu.core_type<tc>} {
    %c0 = arith.constant 0 : index
    %c0_0 = arith.constant 0 : index
    %0 = vector.load %arg0[%c0, %c0_0] : memref<1x128xf32, #tpu.memory_space<vmem>>, vector<1x128xf32>
    %c0_1 = arith.constant 0 : index
    %c0_2 = arith.constant 0 : index
    %1 = vector.load %arg1[%c0_1, %c0_2] : memref<1x5xf32, #tpu.memory_space<vmem>>, vector<1x5xf32>
    %c0_3 = arith.constant 0 : index
    %c0_4 = arith.constant 0 : index
    %2 = vector.load %arg2[%c0_3, %c0_4] : memref<1x1xf32, #tpu.memory_space<vmem>>, vector<1x1xf32>
    %c0_5 = arith.constant 0 : index
    %c0_6 = arith.constant 0 : index
    %3 = vector.load %arg3[%c0_5, %c0_6] : memref<1x1xf32, #tpu.memory_space<vmem>>, vector<1x1xf32>
    %c0_7 = arith.constant 0 : index
    %c0_8 = arith.constant 0 : index
    %4 = vector.load %arg4[%c0_7, %c0_8] : memref<1x1xf32, #tpu.memory_space<vmem>>, vector<1x1xf32>
    %c0_9 = arith.constant 0 : index
    %c0_10 = arith.constant 0 : index
    %5 = vector.load %arg5[%c0_9, %c0_10] : memref<4x5xf32, #tpu.memory_space<vmem>>, vector<4x5xf32>
    %c0_11 = arith.constant 0 : index
    %c0_12 = arith.constant 0 : index
    %6 = vector.load %arg6[%c0_11, %c0_12] : memref<4x1xf32, #tpu.memory_space<vmem>>, vector<4x1xf32>
    %c0_13 = arith.constant 0 : index
    %c0_14 = arith.constant 0 : index
    %7 = vector.load %arg7[%c0_13, %c0_14] : memref<4x1xf32, #tpu.memory_space<vmem>>, vector<4x1xf32>
    %c0_15 = arith.constant 0 : index
    %c0_16 = arith.constant 0 : index
    %8 = vector.load %arg8[%c0_15, %c0_16] : memref<4x1xf32, #tpu.memory_space<vmem>>, vector<4x1xf32>
    %c0_17 = arith.constant 0 : index
    %c0_18 = arith.constant 0 : index
    %9 = vector.load %arg9[%c0_17, %c0_18] : memref<128x136xf32, #tpu.memory_space<vmem>>, vector<128x136xf32>
    %cst = arith.constant dense<0.000000e+00> : vector<1x136xf32>
    %10 = tpu.matmul %0, %9, %cst {dimension_numbers = #tpu.dot_dimension_numbers<[1], [0], [0], [1], [0, 0, 1, 1], [], []>} : vector<1x128xf32>, vector<128x136xf32>, vector<1x136xf32> -> vector<1x136xf32>
    %11 = vector.extract_strided_slice %10 {offsets = [0, 0], sizes = [1, 64], strides = [1, 1]} : vector<1x136xf32> to vector<1x64xf32>
    %c0_19 = arith.constant 0 : index
    %c0_20 = arith.constant 0 : index
    %12 = vector.load %arg48[%c0_19, %c0_20] : memref<40x128xf32, #tpu.memory_space<vmem>>, vector<1x64xf32>
    tpu.vector_store %arg48[%c0_19, %c0_20], %11 {strides = array<i32>} : memref<40x128xf32, #tpu.memory_space<vmem>>, vector<1x64xf32>,
    %13 = vector.extract_strided_slice %10 {offsets = [0, 1], sizes = [1, 64], strides = [1, 1]} : vector<1x136xf32> to vector<1x64xf32>
    %c1 = arith.constant 1 : index
    %c0_21 = arith.constant 0 : index
    %14 = vector.load %arg48[%c1, %c0_21] : memref<40x128xf32, #tpu.memory_space<vmem>>, vector<1x64xf32>
    tpu.vector_store %arg48[%c1, %c0_21], %13 {strides = array<i32>} : memref<40x128xf32, #tpu.memory_space<vmem>>, vector<1x64xf32>,
    %15 = vector.extract_strided_slice %10 {offsets = [0, 2], sizes = [1, 64], strides = [1, 1]} : vector<1x136xf32> to vector<1x64xf32>
    %c2 = arith.constant 2 : index
    %c0_22 = arith.constant 0 : index
    %16 = vector.load %arg48[%c2, %c0_22] : memref<40x128xf32, #tpu.memory_space<vmem>>, vector<1x64xf32>
    tpu.vector_store %arg48[%c2, %c0_22], %15 {strides = array<i32>} : memref<40x128xf32, #tpu.memory_space<vmem>>, vector<1x64xf32>,
    %17 = vector.extract_strided_slice %10 {offsets = [0, 3], sizes = [1, 64], strides = [1, 1]} : vector<1x136xf32> to vector<1x64xf32>
    %c3 = arith.constant 3 : index
    %c0_23 = arith.constant 0 : index
    %18 = vector.load %arg48[%c3, %c0_23] : memref<40x128xf32, #tpu.memory_space<vmem>>, vector<1x64xf32>
    tpu.vector_store %arg48[%c3, %c0_23], %17 {strides = array<i32>} : memref<40x128xf32, #tpu.memory_space<vmem>>, vector<1x64xf32>,
    %19 = vector.extract_strided_slice %10 {offsets = [0, 4], sizes = [1, 64], strides = [1, 1]} : vector<1x136xf32> to vector<1x64xf32>
    %c4 = arith.constant 4 : index
    %c0_24 = arith.constant 0 : index
    %20 = vector.load %arg48[%c4, %c0_24] : memref<40x128xf32, #tpu.memory_space<vmem>>, vector<1x64xf32>
    tpu.vector_store %arg48[%c4, %c0_24], %19 {strides = array<i32>} : memref<40x128xf32, #tpu.memory_space<vmem>>, vector<1x64xf32>,
    %21 = vector.extract_strided_slice %10 {offsets = [0, 68], sizes = [1, 64], strides = [1, 1]} : vector<1x136xf32> to vector<1x64xf32>
    %c0_25 = arith.constant 0 : index
    %c64 = arith.constant 64 : index
    %22 = vector.load %arg48[%c0_25, %c64] : memref<40x128xf32, #tpu.memory_space<vmem>>, vector<1x64xf32>
    tpu.vector_store %arg48[%c0_25, %c64], %21 {strides = array<i32>} : memref<40x128xf32, #tpu.memory_space<vmem>>, vector<1x64xf32>,
    %23 = vector.extract_strided_slice %10 {offsets = [0, 69], sizes = [1, 64], strides = [1, 1]} : vector<1x136xf32> to vector<1x64xf32>
    %c1_26 = arith.constant 1 : index
    %c64_27 = arith.constant 64 : index
    %24 = vector.load %arg48[%c1_26, %c64_27] : memref<40x128xf32, #tpu.memory_space<vmem>>, vector<1x64xf32>
    tpu.vector_store %arg48[%c1_26, %c64_27], %23 {strides = array<i32>} : memref<40x128xf32, #tpu.memory_space<vmem>>, vector<1x64xf32>,
    %25 = vector.extract_strided_slice %10 {offsets = [0, 70], sizes = [1, 64], strides = [1, 1]} : vector<1x136xf32> to vector<1x64xf32>
    %c2_28 = arith.constant 2 : index
    %c64_29 = arith.constant 64 : index
    %26 = vector.load %arg48[%c2_28, %c64_29] : memref<40x128xf32, #tpu.memory_space<vmem>>, vector<1x64xf32>
    tpu.vector_store %arg48[%c2_28, %c64_29], %25 {strides = array<i32>} : memref<40x128xf32, #tpu.memory_space<vmem>>, vector<1x64xf32>,
    %27 = vector.extract_strided_slice %10 {offsets = [0, 71], sizes = [1, 64], strides = [1, 1]} : vector<1x136xf32> to vector<1x64xf32>
    %c3_30 = arith.constant 3 : index
    %c64_31 = arith.constant 64 : index
    %28 = vector.load %arg48[%c3_30, %c64_31] : memref<40x128xf32, #tpu.memory_space<vmem>>, vector<1x64xf32>
    tpu.vector_store %arg48[%c3_30, %c64_31], %27 {strides = array<i32>} : memref<40x128xf32, #tpu.memory_space<vmem>>, vector<1x64xf32>,
    %29 = vector.extract_strided_slice %10 {offsets = [0, 72], sizes = [1, 64], strides = [1, 1]} : vector<1x136xf32> to vector<1x64xf32>
    %c4_32 = arith.constant 4 : index
    %c64_33 = arith.constant 64 : index
    %30 = vector.load %arg48[%c4_32, %c64_33] : memref<40x128xf32, #tpu.memory_space<vmem>>, vector<1x64xf32>
    tpu.vector_store %arg48[%c4_32, %c64_33], %29 {strides = array<i32>} : memref<40x128xf32, #tpu.memory_space<vmem>>, vector<1x64xf32>,
    %c0_34 = arith.constant 0 : index
    %c0_35 = arith.constant 0 : index
    %31 = vector.load %arg48[%c0_34, %c0_35] : memref<40x128xf32, #tpu.memory_space<vmem>>, vector<5x128xf32>
    %cst_36 = arith.constant dense<0.000000e+00> : vector<1x128xf32>
    %32 = tpu.matmul %1, %31, %cst_36 {dimension_numbers = #tpu.dot_dimension_numbers<[1], [0], [0], [1], [0, 0, 1, 1], [], []>} : vector<1x5xf32>, vector<5x128xf32>, vector<1x128xf32> -> vector<1x128xf32>
    %33 = vector.broadcast %2 : vector<1x1xf32> to vector<1x128xf32>
    %34 = arith.addf %32, %33 : vector<1x128xf32>
    %cst_37 = arith.constant dense<0.000000e+00> : vector<1xf32>
    %35 = vector.multi_reduction <add>, %34, %cst_37 [1] : vector<1x128xf32> to vector<1xf32>
    %36 = vector.shape_cast %35 : vector<1xf32> to vector<1x1xf32>
    %cst_38 = arith.constant 7.812500e-03 : f32
    %37 = vector.broadcast %cst_38 : f32 to vector<1x1xf32>
    %38 = arith.mulf %36, %37 : vector<1x1xf32>
    %39 = vector.broadcast %38 : vector<1x1xf32> to vector<1x128xf32>
    %40 = arith.subf %34, %39 : vector<1x128xf32>
    %41 = arith.mulf %40, %40 : vector<1x128xf32>
    %cst_39 = arith.constant dense<0.000000e+00> : vector<1xf32>
    %42 = vector.multi_reduction <add>, %41, %cst_39 [1] : vector<1x128xf32> to vector<1xf32>
    %43 = vector.shape_cast %42 : vector<1xf32> to vector<1x1xf32>
    %cst_40 = arith.constant 7.812500e-03 : f32
    %44 = vector.broadcast %cst_40 : f32 to vector<1x1xf32>
    %45 = arith.mulf %43, %44 : vector<1x1xf32>
    %cst_41 = arith.constant 9.99999974E-6 : f32
    %46 = vector.broadcast %cst_41 : f32 to vector<1x1xf32>
    %47 = arith.addf %45, %46 : vector<1x1xf32>
    %48 = math.rsqrt %47 : vector<1x1xf32>
    %49 = vector.broadcast %48 : vector<1x1xf32> to vector<1x128xf32>
    %50 = arith.mulf %40, %49 : vector<1x128xf32>
    %51 = vector.broadcast %3 : vector<1x1xf32> to vector<1x128xf32>
    %52 = arith.mulf %50, %51 : vector<1x128xf32>
    %53 = vector.broadcast %4 : vector<1x1xf32> to vector<1x128xf32>
    %54 = arith.addf %52, %53 : vector<1x128xf32>
    %cst_42 = arith.constant 0.000000e+00 : f32
    %55 = vector.broadcast %cst_42 : f32 to vector<1x128xf32>
    %56 = arith.maximumf %54, %55 : vector<1x128xf32>
    %57 = arith.addf %56, %0 : vector<1x128xf32>
    %cst_43 = arith.constant dense<0.000000e+00> : vector<1x136xf32>
    %58 = tpu.matmul %57, %9, %cst_43 {dimension_numbers = #tpu.dot_dimension_numbers<[1], [0], [0], [1], [0, 0, 1, 1], [], []>} : vector<1x128xf32>, vector<128x136xf32>, vector<1x136xf32> -> vector<1x136xf32>
    %59 = vector.extract_strided_slice %58 {offsets = [0, 0], sizes = [1, 64], strides = [1, 1]} : vector<1x136xf32> to vector<1x64xf32>
    %c0_44 = arith.constant 0 : index
    %c0_45 = arith.constant 0 : index
    %60 = vector.load %arg48[%c0_44, %c0_45] : memref<40x128xf32, #tpu.memory_space<vmem>>, vector<1x64xf32>
    tpu.vector_store %arg48[%c0_44, %c0_45], %59 {strides = array<i32>} : memref<40x128xf32, #tpu.memory_space<vmem>>, vector<1x64xf32>,
    %61 = vector.extract_strided_slice %58 {offsets = [0, 1], sizes = [1, 64], strides = [1, 1]} : vector<1x136xf32> to vector<1x64xf32>
    %c1_46 = arith.constant 1 : index
    %c0_47 = arith.constant 0 : index
    %62 = vector.load %arg48[%c1_46, %c0_47] : memref<40x128xf32, #tpu.memory_space<vmem>>, vector<1x64xf32>
    tpu.vector_store %arg48[%c1_46, %c0_47], %61 {strides = array<i32>} : memref<40x128xf32, #tpu.memory_space<vmem>>, vector<1x64xf32>,
    %63 = vector.extract_strided_slice %58 {offsets = [0, 2], sizes = [1, 64], strides = [1, 1]} : vector<1x136xf32> to vector<1x64xf32>
    %c2_48 = arith.constant 2 : index
    %c0_49 = arith.constant 0 : index
    %64 = vector.load %arg48[%c2_48, %c0_49] : memref<40x128xf32, #tpu.memory_space<vmem>>, vector<1x64xf32>
    tpu.vector_store %arg48[%c2_48, %c0_49], %63 {strides = array<i32>} : memref<40x128xf32, #tpu.memory_space<vmem>>, vector<1x64xf32>,
    %65 = vector.extract_strided_slice %58 {offsets = [0, 3], sizes = [1, 64], strides = [1, 1]} : vector<1x136xf32> to vector<1x64xf32>
    %c3_50 = arith.constant 3 : index
    %c0_51 = arith.constant 0 : index
    %66 = vector.load %arg48[%c3_50, %c0_51] : memref<40x128xf32, #tpu.memory_space<vmem>>, vector<1x64xf32>
    tpu.vector_store %arg48[%c3_50, %c0_51], %65 {strides = array<i32>} : memref<40x128xf32, #tpu.memory_space<vmem>>, vector<1x64xf32>,
    %67 = vector.extract_strided_slice %58 {offsets = [0, 4], sizes = [1, 64], strides = [1, 1]} : vector<1x136xf32> to vector<1x64xf32>
    %c4_52 = arith.constant 4 : index
    %c0_53 = arith.constant 0 : index
    %68 = vector.load %arg48[%c4_52, %c0_53] : memref<40x128xf32, #tpu.memory_space<vmem>>, vector<1x64xf32>
    tpu.vector_store %arg48[%c4_52, %c0_53], %67 {strides = array<i32>} : memref<40x128xf32, #tpu.memory_space<vmem>>, vector<1x64xf32>,
    %69 = vector.extract_strided_slice %58 {offsets = [0, 68], sizes = [1, 64], strides = [1, 1]} : vector<1x136xf32> to vector<1x64xf32>
    %c0_54 = arith.constant 0 : index
    %c64_55 = arith.constant 64 : index
    %70 = vector.load %arg48[%c0_54, %c64_55] : memref<40x128xf32, #tpu.memory_space<vmem>>, vector<1x64xf32>
    tpu.vector_store %arg48[%c0_54, %c64_55], %69 {strides = array<i32>} : memref<40x128xf32, #tpu.memory_space<vmem>>, vector<1x64xf32>,
    %71 = vector.extract_strided_slice %58 {offsets = [0, 69], sizes = [1, 64], strides = [1, 1]} : vector<1x136xf32> to vector<1x64xf32>
    %c1_56 = arith.constant 1 : index
    %c64_57 = arith.constant 64 : index
    %72 = vector.load %arg48[%c1_56, %c64_57] : memref<40x128xf32, #tpu.memory_space<vmem>>, vector<1x64xf32>
    tpu.vector_store %arg48[%c1_56, %c64_57], %71 {strides = array<i32>} : memref<40x128xf32, #tpu.memory_space<vmem>>, vector<1x64xf32>,
    %73 = vector.extract_strided_slice %58 {offsets = [0, 70], sizes = [1, 64], strides = [1, 1]} : vector<1x136xf32> to vector<1x64xf32>
    %c2_58 = arith.constant 2 : index
    %c64_59 = arith.constant 64 : index
    %74 = vector.load %arg48[%c2_58, %c64_59] : memref<40x128xf32, #tpu.memory_space<vmem>>, vector<1x64xf32>
    tpu.vector_store %arg48[%c2_58, %c64_59], %73 {strides = array<i32>} : memref<40x128xf32, #tpu.memory_space<vmem>>, vector<1x64xf32>,
    %75 = vector.extract_strided_slice %58 {offsets = [0, 71], sizes = [1, 64], strides = [1, 1]} : vector<1x136xf32> to vector<1x64xf32>
    %c3_60 = arith.constant 3 : index
    %c64_61 = arith.constant 64 : index
    %76 = vector.load %arg48[%c3_60, %c64_61] : memref<40x128xf32, #tpu.memory_space<vmem>>, vector<1x64xf32>
    tpu.vector_store %arg48[%c3_60, %c64_61], %75 {strides = array<i32>} : memref<40x128xf32, #tpu.memory_space<vmem>>, vector<1x64xf32>,
    %77 = vector.extract_strided_slice %58 {offsets = [0, 72], sizes = [1, 64], strides = [1, 1]} : vector<1x136xf32> to vector<1x64xf32>
    %c4_62 = arith.constant 4 : index
    %c64_63 = arith.constant 64 : index
    %78 = vector.load %arg48[%c4_62, %c64_63] : memref<40x128xf32, #tpu.memory_space<vmem>>, vector<1x64xf32>
    tpu.vector_store %arg48[%c4_62, %c64_63], %77 {strides = array<i32>} : memref<40x128xf32, #tpu.memory_space<vmem>>, vector<1x64xf32>,
    %c0_64 = arith.constant 0 : index
    %c0_65 = arith.constant 0 : index
    %79 = vector.load %arg48[%c0_64, %c0_65] : memref<40x128xf32, #tpu.memory_space<vmem>>, vector<5x128xf32>
    %cst_66 = arith.constant dense<0.000000e+00> : vector<4x128xf32>
    %80 = tpu.matmul %5, %79, %cst_66 {dimension_numbers = #tpu.dot_dimension_numbers<[1], [0], [0], [1], [0, 0, 1, 1], [], []>} : vector<4x5xf32>, vector<5x128xf32>, vector<4x128xf32> -> vector<4x128xf32>
    %81 = vector.broadcast %6 : vector<4x1xf32> to vector<4x128xf32>
    %82 = arith.addf %80, %81 : vector<4x128xf32>
    %cst_67 = arith.constant dense<0.000000e+00> : vector<4xf32>
    %83 = vector.multi_reduction <add>, %82, %cst_67 [1] : vector<4x128xf32> to vector<4xf32>
    %84 = vector.shape_cast %83 : vector<4xf32> to vector<4x1xf32>
    %cst_68 = arith.constant 7.812500e-03 : f32
    %85 = vector.broadcast %cst_68 : f32 to vector<4x1xf32>
    %86 = arith.mulf %84, %85 : vector<4x1xf32>
    %87 = vector.broadcast %86 : vector<4x1xf32> to vector<4x128xf32>
    %88 = arith.subf %82, %87 : vector<4x128xf32>
    %89 = arith.mulf %88, %88 : vector<4x128xf32>
    %cst_69 = arith.constant dense<0.000000e+00> : vector<4xf32>
    %90 = vector.multi_reduction <add>, %89, %cst_69 [1] : vector<4x128xf32> to vector<4xf32>
    %91 = vector.shape_cast %90 : vector<4xf32> to vector<4x1xf32>
    %cst_70 = arith.constant 7.812500e-03 : f32
    %92 = vector.broadcast %cst_70 : f32 to vector<4x1xf32>
    %93 = arith.mulf %91, %92 : vector<4x1xf32>
    %cst_71 = arith.constant 9.99999974E-6 : f32
    %94 = vector.broadcast %cst_71 : f32 to vector<4x1xf32>
    %95 = arith.addf %93, %94 : vector<4x1xf32>
    %96 = math.rsqrt %95 : vector<4x1xf32>
    %97 = vector.broadcast %96 : vector<4x1xf32> to vector<4x128xf32>
    %98 = arith.mulf %88, %97 : vector<4x128xf32>
    %99 = vector.broadcast %7 : vector<4x1xf32> to vector<4x128xf32>
    %100 = arith.mulf %98, %99 : vector<4x128xf32>
    %101 = vector.broadcast %8 : vector<4x1xf32> to vector<4x128xf32>
    %102 = arith.addf %100, %101 : vector<4x128xf32>
    %cst_72 = arith.constant 0.000000e+00 : f32
    %103 = vector.broadcast %cst_72 : f32 to vector<4x128xf32>
    %104 = arith.maximumf %102, %103 : vector<4x128xf32>
    %c0_73 = arith.constant 0 : index
    %c0_74 = arith.constant 0 : index
    %105 = vector.load %arg10[%c0_73, %c0_74] : memref<4x20xf32, #tpu.memory_space<vmem>>, vector<4x20xf32>
    %c0_75 = arith.constant 0 : index
    %c0_76 = arith.constant 0 : index
    %106 = vector.load %arg11[%c0_75, %c0_76] : memref<4x1xf32, #tpu.memory_space<vmem>>, vector<4x1xf32>
    %c0_77 = arith.constant 0 : index
    %c0_78 = arith.constant 0 : index
    %107 = vector.load %arg12[%c0_77, %c0_78] : memref<4x1xf32, #tpu.memory_space<vmem>>, vector<4x1xf32>
    %c0_79 = arith.constant 0 : index
    %c0_80 = arith.constant 0 : index
    %108 = vector.load %arg13[%c0_79, %c0_80] : memref<4x1xf32, #tpu.memory_space<vmem>>, vector<4x1xf32>
    %c0_81 = arith.constant 0 : index
    %c0_82 = arith.constant 0 : index
    %109 = vector.load %arg14[%c0_81, %c0_82] : memref<8x20xf32, #tpu.memory_space<vmem>>, vector<8x20xf32>
    %c0_83 = arith.constant 0 : index
    %c0_84 = arith.constant 0 : index
    %110 = vector.load %arg15[%c0_83, %c0_84] : memref<8x1xf32, #tpu.memory_space<vmem>>, vector<8x1xf32>
    %c0_85 = arith.constant 0 : index
    %c0_86 = arith.constant 0 : index
    %111 = vector.load %arg16[%c0_85, %c0_86] : memref<8x1xf32, #tpu.memory_space<vmem>>, vector<8x1xf32>
    %c0_87 = arith.constant 0 : index
    %c0_88 = arith.constant 0 : index
    %112 = vector.load %arg17[%c0_87, %c0_88] : memref<8x1xf32, #tpu.memory_space<vmem>>, vector<8x1xf32>
    %c0_89 = arith.constant 0 : index
    %c0_90 = arith.constant 0 : index
    %113 = vector.load %arg18[%c0_89, %c0_90] : memref<128x144xf32, #tpu.memory_space<vmem>>, vector<128x144xf32>
    %cst_91 = arith.constant dense<0.000000e+00> : vector<4x144xf32>
    %114 = tpu.matmul %104, %113, %cst_91 {dimension_numbers = #tpu.dot_dimension_numbers<[1], [0], [0], [1], [0, 0, 1, 1], [], []>} : vector<4x128xf32>, vector<128x144xf32>, vector<4x144xf32> -> vector<4x144xf32>
    %115 = vector.extract_strided_slice %114 {offsets = [0, 0], sizes = [4, 64], strides = [1, 1]} : vector<4x144xf32> to vector<4x64xf32>
    %c0_92 = arith.constant 0 : index
    %c0_93 = arith.constant 0 : index
    %116 = vector.load %arg48[%c0_92, %c0_93] : memref<40x128xf32, #tpu.memory_space<vmem>>, vector<4x64xf32>
    tpu.vector_store %arg48[%c0_92, %c0_93], %115 {strides = array<i32>} : memref<40x128xf32, #tpu.memory_space<vmem>>, vector<4x64xf32>,
    %117 = vector.extract_strided_slice %114 {offsets = [0, 2], sizes = [4, 64], strides = [1, 1]} : vector<4x144xf32> to vector<4x64xf32>
    %c4_94 = arith.constant 4 : index
    %c0_95 = arith.constant 0 : index
    %118 = vector.load %arg48[%c4_94, %c0_95] : memref<40x128xf32, #tpu.memory_space<vmem>>, vector<4x64xf32>
    tpu.vector_store %arg48[%c4_94, %c0_95], %117 {strides = array<i32>} : memref<40x128xf32, #tpu.memory_space<vmem>>, vector<4x64xf32>,
    %119 = vector.extract_strided_slice %114 {offsets = [0, 4], sizes = [4, 64], strides = [1, 1]} : vector<4x144xf32> to vector<4x64xf32>
    %c8 = arith.constant 8 : index
    %c0_96 = arith.constant 0 : index
    %120 = vector.load %arg48[%c8, %c0_96] : memref<40x128xf32, #tpu.memory_space<vmem>>, vector<4x64xf32>
    tpu.vector_store %arg48[%c8, %c0_96], %119 {strides = array<i32>} : memref<40x128xf32, #tpu.memory_space<vmem>>, vector<4x64xf32>,
    %121 = vector.extract_strided_slice %114 {offsets = [0, 6], sizes = [4, 64], strides = [1, 1]} : vector<4x144xf32> to vector<4x64xf32>
    %c12 = arith.constant 12 : index
    %c0_97 = arith.constant 0 : index
    %122 = vector.load %arg48[%c12, %c0_97] : memref<40x128xf32, #tpu.memory_space<vmem>>, vector<4x64xf32>
    tpu.vector_store %arg48[%c12, %c0_97], %121 {strides = array<i32>} : memref<40x128xf32, #tpu.memory_space<vmem>>, vector<4x64xf32>,
    %123 = vector.extract_strided_slice %114 {offsets = [0, 8], sizes = [4, 64], strides = [1, 1]} : vector<4x144xf32> to vector<4x64xf32>
    %c16 = arith.constant 16 : index
    %c0_98 = arith.constant 0 : index
    %124 = vector.load %arg48[%c16, %c0_98] : memref<40x128xf32, #tpu.memory_space<vmem>>, vector<4x64xf32>
    tpu.vector_store %arg48[%c16, %c0_98], %123 {strides = array<i32>} : memref<40x128xf32, #tpu.memory_space<vmem>>, vector<4x64xf32>,
    %125 = vector.extract_strided_slice %114 {offsets = [0, 72], sizes = [4, 64], strides = [1, 1]} : vector<4x144xf32> to vector<4x64xf32>
    %c0_99 = arith.constant 0 : index
    %c64_100 = arith.constant 64 : index
    %126 = vector.load %arg48[%c0_99, %c64_100] : memref<40x128xf32, #tpu.memory_space<vmem>>, vector<4x64xf32>
    tpu.vector_store %arg48[%c0_99, %c64_100], %125 {strides = array<i32>} : memref<40x128xf32, #tpu.memory_space<vmem>>, vector<4x64xf32>,
    %127 = vector.extract_strided_slice %114 {offsets = [0, 74], sizes = [4, 64], strides = [1, 1]} : vector<4x144xf32> to vector<4x64xf32>
    %c4_101 = arith.constant 4 : index
    %c64_102 = arith.constant 64 : index
    %128 = vector.load %arg48[%c4_101, %c64_102] : memref<40x128xf32, #tpu.memory_space<vmem>>, vector<4x64xf32>
    tpu.vector_store %arg48[%c4_101, %c64_102], %127 {strides = array<i32>} : memref<40x128xf32, #tpu.memory_space<vmem>>, vector<4x64xf32>,
    %129 = vector.extract_strided_slice %114 {offsets = [0, 76], sizes = [4, 64], strides = [1, 1]} : vector<4x144xf32> to vector<4x64xf32>
    %c8_103 = arith.constant 8 : index
    %c64_104 = arith.constant 64 : index
    %130 = vector.load %arg48[%c8_103, %c64_104] : memref<40x128xf32, #tpu.memory_space<vmem>>, vector<4x64xf32>
    tpu.vector_store %arg48[%c8_103, %c64_104], %129 {strides = array<i32>} : memref<40x128xf32, #tpu.memory_space<vmem>>, vector<4x64xf32>,
    %131 = vector.extract_strided_slice %114 {offsets = [0, 78], sizes = [4, 64], strides = [1, 1]} : vector<4x144xf32> to vector<4x64xf32>
    %c12_105 = arith.constant 12 : index
    %c64_106 = arith.constant 64 : index
    %132 = vector.load %arg48[%c12_105, %c64_106] : memref<40x128xf32, #tpu.memory_space<vmem>>, vector<4x64xf32>
    tpu.vector_store %arg48[%c12_105, %c64_106], %131 {strides = array<i32>} : memref<40x128xf32, #tpu.memory_space<vmem>>, vector<4x64xf32>,
    %133 = vector.extract_strided_slice %114 {offsets = [0, 80], sizes = [4, 64], strides = [1, 1]} : vector<4x144xf32> to vector<4x64xf32>
    %c16_107 = arith.constant 16 : index
    %c64_108 = arith.constant 64 : index
    %134 = vector.load %arg48[%c16_107, %c64_108] : memref<40x128xf32, #tpu.memory_space<vmem>>, vector<4x64xf32>
    tpu.vector_store %arg48[%c16_107, %c64_108], %133 {strides = array<i32>} : memref<40x128xf32, #tpu.memory_space<vmem>>, vector<4x64xf32>,
    %c0_109 = arith.constant 0 : index
    %c0_110 = arith.constant 0 : index
    %135 = vector.load %arg48[%c0_109, %c0_110] : memref<40x128xf32, #tpu.memory_space<vmem>>, vector<20x128xf32>
    %cst_111 = arith.constant dense<0.000000e+00> : vector<4x128xf32>
    %136 = tpu.matmul %105, %135, %cst_111 {dimension_numbers = #tpu.dot_dimension_numbers<[1], [0], [0], [1], [0, 0, 1, 1], [], []>} : vector<4x20xf32>, vector<20x128xf32>, vector<4x128xf32> -> vector<4x128xf32>
    %137 = vector.broadcast %106 : vector<4x1xf32> to vector<4x128xf32>
    %138 = arith.addf %136, %137 : vector<4x128xf32>
    %cst_112 = arith.constant dense<0.000000e+00> : vector<4xf32>
    %139 = vector.multi_reduction <add>, %138, %cst_112 [1] : vector<4x128xf32> to vector<4xf32>
    %140 = vector.shape_cast %139 : vector<4xf32> to vector<4x1xf32>
    %cst_113 = arith.constant 7.812500e-03 : f32
    %141 = vector.broadcast %cst_113 : f32 to vector<4x1xf32>
    %142 = arith.mulf %140, %141 : vector<4x1xf32>
    %143 = vector.broadcast %142 : vector<4x1xf32> to vector<4x128xf32>
    %144 = arith.subf %138, %143 : vector<4x128xf32>
    %145 = arith.mulf %144, %144 : vector<4x128xf32>
    %cst_114 = arith.constant dense<0.000000e+00> : vector<4xf32>
    %146 = vector.multi_reduction <add>, %145, %cst_114 [1] : vector<4x128xf32> to vector<4xf32>
    %147 = vector.shape_cast %146 : vector<4xf32> to vector<4x1xf32>
    %cst_115 = arith.constant 7.812500e-03 : f32
    %148 = vector.broadcast %cst_115 : f32 to vector<4x1xf32>
    %149 = arith.mulf %147, %148 : vector<4x1xf32>
    %cst_116 = arith.constant 9.99999974E-6 : f32
    %150 = vector.broadcast %cst_116 : f32 to vector<4x1xf32>
    %151 = arith.addf %149, %150 : vector<4x1xf32>
    %152 = math.rsqrt %151 : vector<4x1xf32>
    %153 = vector.broadcast %152 : vector<4x1xf32> to vector<4x128xf32>
    %154 = arith.mulf %144, %153 : vector<4x128xf32>
    %155 = vector.broadcast %107 : vector<4x1xf32> to vector<4x128xf32>
    %156 = arith.mulf %154, %155 : vector<4x128xf32>
    %157 = vector.broadcast %108 : vector<4x1xf32> to vector<4x128xf32>
    %158 = arith.addf %156, %157 : vector<4x128xf32>
    %cst_117 = arith.constant 0.000000e+00 : f32
    %159 = vector.broadcast %cst_117 : f32 to vector<4x128xf32>
    %160 = arith.maximumf %158, %159 : vector<4x128xf32>
    %161 = arith.addf %160, %104 : vector<4x128xf32>
    %cst_118 = arith.constant dense<0.000000e+00> : vector<4x144xf32>
    %162 = tpu.matmul %161, %113, %cst_118 {dimension_numbers = #tpu.dot_dimension_numbers<[1], [0], [0], [1], [0, 0, 1, 1], [], []>} : vector<4x128xf32>, vector<128x144xf32>, vector<4x144xf32> -> vector<4x144xf32>
    %163 = vector.extract_strided_slice %162 {offsets = [0, 0], sizes = [4, 64], strides = [1, 1]} : vector<4x144xf32> to vector<4x64xf32>
    %c0_119 = arith.constant 0 : index
    %c0_120 = arith.constant 0 : index
    %164 = vector.load %arg48[%c0_119, %c0_120] : memref<40x128xf32, #tpu.memory_space<vmem>>, vector<4x64xf32>
    tpu.vector_store %arg48[%c0_119, %c0_120], %163 {strides = array<i32>} : memref<40x128xf32, #tpu.memory_space<vmem>>, vector<4x64xf32>,
    %165 = vector.extract_strided_slice %162 {offsets = [0, 2], sizes = [4, 64], strides = [1, 1]} : vector<4x144xf32> to vector<4x64xf32>
    %c4_121 = arith.constant 4 : index
    %c0_122 = arith.constant 0 : index
    %166 = vector.load %arg48[%c4_121, %c0_122] : memref<40x128xf32, #tpu.memory_space<vmem>>, vector<4x64xf32>
    tpu.vector_store %arg48[%c4_121, %c0_122], %165 {strides = array<i32>} : memref<40x128xf32, #tpu.memory_space<vmem>>, vector<4x64xf32>,
    %167 = vector.extract_strided_slice %162 {offsets = [0, 4], sizes = [4, 64], strides = [1, 1]} : vector<4x144xf32> to vector<4x64xf32>
    %c8_123 = arith.constant 8 : index
    %c0_124 = arith.constant 0 : index
    %168 = vector.load %arg48[%c8_123, %c0_124] : memref<40x128xf32, #tpu.memory_space<vmem>>, vector<4x64xf32>
    tpu.vector_store %arg48[%c8_123, %c0_124], %167 {strides = array<i32>} : memref<40x128xf32, #tpu.memory_space<vmem>>, vector<4x64xf32>,
    %169 = vector.extract_strided_slice %162 {offsets = [0, 6], sizes = [4, 64], strides = [1, 1]} : vector<4x144xf32> to vector<4x64xf32>
    %c12_125 = arith.constant 12 : index
    %c0_126 = arith.constant 0 : index
    %170 = vector.load %arg48[%c12_125, %c0_126] : memref<40x128xf32, #tpu.memory_space<vmem>>, vector<4x64xf32>
    tpu.vector_store %arg48[%c12_125, %c0_126], %169 {strides = array<i32>} : memref<40x128xf32, #tpu.memory_space<vmem>>, vector<4x64xf32>,
    %171 = vector.extract_strided_slice %162 {offsets = [0, 8], sizes = [4, 64], strides = [1, 1]} : vector<4x144xf32> to vector<4x64xf32>
    %c16_127 = arith.constant 16 : index
    %c0_128 = arith.constant 0 : index
    %172 = vector.load %arg48[%c16_127, %c0_128] : memref<40x128xf32, #tpu.memory_space<vmem>>, vector<4x64xf32>
    tpu.vector_store %arg48[%c16_127, %c0_128], %171 {strides = array<i32>} : memref<40x128xf32, #tpu.memory_space<vmem>>, vector<4x64xf32>,
    %173 = vector.extract_strided_slice %162 {offsets = [0, 72], sizes = [4, 64], strides = [1, 1]} : vector<4x144xf32> to vector<4x64xf32>
    %c0_129 = arith.constant 0 : index
    %c64_130 = arith.constant 64 : index
    %174 = vector.load %arg48[%c0_129, %c64_130] : memref<40x128xf32, #tpu.memory_space<vmem>>, vector<4x64xf32>
    tpu.vector_store %arg48[%c0_129, %c64_130], %173 {strides = array<i32>} : memref<40x128xf32, #tpu.memory_space<vmem>>, vector<4x64xf32>,
    %175 = vector.extract_strided_slice %162 {offsets = [0, 74], sizes = [4, 64], strides = [1, 1]} : vector<4x144xf32> to vector<4x64xf32>
    %c4_131 = arith.constant 4 : index
    %c64_132 = arith.constant 64 : index
    %176 = vector.load %arg48[%c4_131, %c64_132] : memref<40x128xf32, #tpu.memory_space<vmem>>, vector<4x64xf32>
    tpu.vector_store %arg48[%c4_131, %c64_132], %175 {strides = array<i32>} : memref<40x128xf32, #tpu.memory_space<vmem>>, vector<4x64xf32>,
    %177 = vector.extract_strided_slice %162 {offsets = [0, 76], sizes = [4, 64], strides = [1, 1]} : vector<4x144xf32> to vector<4x64xf32>
    %c8_133 = arith.constant 8 : index
    %c64_134 = arith.constant 64 : index
    %178 = vector.load %arg48[%c8_133, %c64_134] : memref<40x128xf32, #tpu.memory_space<vmem>>, vector<4x64xf32>
    tpu.vector_store %arg48[%c8_133, %c64_134], %177 {strides = array<i32>} : memref<40x128xf32, #tpu.memory_space<vmem>>, vector<4x64xf32>,
    %179 = vector.extract_strided_slice %162 {offsets = [0, 78], sizes = [4, 64], strides = [1, 1]} : vector<4x144xf32> to vector<4x64xf32>
    %c12_135 = arith.constant 12 : index
    %c64_136 = arith.constant 64 : index
    %180 = vector.load %arg48[%c12_135, %c64_136] : memref<40x128xf32, #tpu.memory_space<vmem>>, vector<4x64xf32>
    tpu.vector_store %arg48[%c12_135, %c64_136], %179 {strides = array<i32>} : memref<40x128xf32, #tpu.memory_space<vmem>>, vector<4x64xf32>,
    %181 = vector.extract_strided_slice %162 {offsets = [0, 80], sizes = [4, 64], strides = [1, 1]} : vector<4x144xf32> to vector<4x64xf32>
    %c16_137 = arith.constant 16 : index
    %c64_138 = arith.constant 64 : index
    %182 = vector.load %arg48[%c16_137, %c64_138] : memref<40x128xf32, #tpu.memory_space<vmem>>, vector<4x64xf32>
    tpu.vector_store %arg48[%c16_137, %c64_138], %181 {strides = array<i32>} : memref<40x128xf32, #tpu.memory_space<vmem>>, vector<4x64xf32>,
    %c0_139 = arith.constant 0 : index
    %c0_140 = arith.constant 0 : index
    %183 = vector.load %arg48[%c0_139, %c0_140] : memref<40x128xf32, #tpu.memory_space<vmem>>, vector<20x128xf32>
    %cst_141 = arith.constant dense<0.000000e+00> : vector<8x128xf32>
    %184 = tpu.matmul %109, %183, %cst_141 {dimension_numbers = #tpu.dot_dimension_numbers<[1], [0], [0], [1], [0, 0, 1, 1], [], []>} : vector<8x20xf32>, vector<20x128xf32>, vector<8x128xf32> -> vector<8x128xf32>
    %c0_142 = arith.constant 0 : index
    %c0_143 = arith.constant 0 : index
    %185 = vector.load %arg19[%c0_142, %c0_143] : memref<128x64xf32, #tpu.memory_space<vmem>>, vector<128x64xf32>
    %cst_144 = arith.constant dense<0.000000e+00> : vector<8x64xf32>
    %186 = tpu.matmul %184, %185, %cst_144 {dimension_numbers = #tpu.dot_dimension_numbers<[1], [0], [0], [1], [0, 0, 1, 1], [], []>} : vector<8x128xf32>, vector<128x64xf32>, vector<8x64xf32> -> vector<8x64xf32>
    %187 = vector.broadcast %110 : vector<8x1xf32> to vector<8x64xf32>
    %188 = arith.addf %186, %187 : vector<8x64xf32>
    %cst_145 = arith.constant dense<0.000000e+00> : vector<8xf32>
    %189 = vector.multi_reduction <add>, %188, %cst_145 [1] : vector<8x64xf32> to vector<8xf32>
    %190 = vector.shape_cast %189 : vector<8xf32> to vector<8x1xf32>
    %cst_146 = arith.constant 1.562500e-02 : f32
    %191 = vector.broadcast %cst_146 : f32 to vector<8x1xf32>
    %192 = arith.mulf %190, %191 : vector<8x1xf32>
    %193 = vector.broadcast %192 : vector<8x1xf32> to vector<8x64xf32>
    %194 = arith.subf %188, %193 : vector<8x64xf32>
    %195 = arith.mulf %194, %194 : vector<8x64xf32>
    %cst_147 = arith.constant dense<0.000000e+00> : vector<8xf32>
    %196 = vector.multi_reduction <add>, %195, %cst_147 [1] : vector<8x64xf32> to vector<8xf32>
    %197 = vector.shape_cast %196 : vector<8xf32> to vector<8x1xf32>
    %cst_148 = arith.constant 1.562500e-02 : f32
    %198 = vector.broadcast %cst_148 : f32 to vector<8x1xf32>
    %199 = arith.mulf %197, %198 : vector<8x1xf32>
    %cst_149 = arith.constant 9.99999974E-6 : f32
    %200 = vector.broadcast %cst_149 : f32 to vector<8x1xf32>
    %201 = arith.addf %199, %200 : vector<8x1xf32>
    %202 = math.rsqrt %201 : vector<8x1xf32>
    %203 = vector.broadcast %202 : vector<8x1xf32> to vector<8x64xf32>
    %204 = arith.mulf %194, %203 : vector<8x64xf32>
    %205 = vector.broadcast %111 : vector<8x1xf32> to vector<8x64xf32>
    %206 = arith.mulf %204, %205 : vector<8x64xf32>
    %207 = vector.broadcast %112 : vector<8x1xf32> to vector<8x64xf32>
    %208 = arith.addf %206, %207 : vector<8x64xf32>
    %cst_150 = arith.constant 0.000000e+00 : f32
    %209 = vector.broadcast %cst_150 : f32 to vector<8x64xf32>
    %210 = arith.maximumf %208, %209 : vector<8x64xf32>
    %c0_151 = arith.constant 0 : index
    %c0_152 = arith.constant 0 : index
    %211 = vector.load %arg20[%c0_151, %c0_152] : memref<8x40xf32, #tpu.memory_space<vmem>>, vector<8x40xf32>
    %c0_153 = arith.constant 0 : index
    %c0_154 = arith.constant 0 : index
    %212 = vector.load %arg21[%c0_153, %c0_154] : memref<8x1xf32, #tpu.memory_space<vmem>>, vector<8x1xf32>
    %c0_155 = arith.constant 0 : index
    %c0_156 = arith.constant 0 : index
    %213 = vector.load %arg22[%c0_155, %c0_156] : memref<8x1xf32, #tpu.memory_space<vmem>>, vector<8x1xf32>
    %c0_157 = arith.constant 0 : index
    %c0_158 = arith.constant 0 : index
    %214 = vector.load %arg23[%c0_157, %c0_158] : memref<8x1xf32, #tpu.memory_space<vmem>>, vector<8x1xf32>
    %c0_159 = arith.constant 0 : index
    %c0_160 = arith.constant 0 : index
    %215 = vector.load %arg24[%c0_159, %c0_160] : memref<16x40xf32, #tpu.memory_space<vmem>>, vector<16x40xf32>
    %c0_161 = arith.constant 0 : index
    %c0_162 = arith.constant 0 : index
    %216 = vector.load %arg25[%c0_161, %c0_162] : memref<16x1xf32, #tpu.memory_space<vmem>>, vector<16x1xf32>
    %c0_163 = arith.constant 0 : index
    %c0_164 = arith.constant 0 : index
    %217 = vector.load %arg26[%c0_163, %c0_164] : memref<16x1xf32, #tpu.memory_space<vmem>>, vector<16x1xf32>
    %c0_165 = arith.constant 0 : index
    %c0_166 = arith.constant 0 : index
    %218 = vector.load %arg27[%c0_165, %c0_166] : memref<16x1xf32, #tpu.memory_space<vmem>>, vector<16x1xf32>
    %c0_167 = arith.constant 0 : index
    %c0_168 = arith.constant 0 : index
    %219 = vector.load %arg28[%c0_167, %c0_168] : memref<64x72xf32, #tpu.memory_space<vmem>>, vector<64x72xf32>
    %cst_169 = arith.constant dense<0.000000e+00> : vector<8x72xf32>
    %220 = tpu.matmul %210, %219, %cst_169 {dimension_numbers = #tpu.dot_dimension_numbers<[1], [0], [0], [1], [0, 0, 1, 1], [], []>} : vector<8x64xf32>, vector<64x72xf32>, vector<8x72xf32> -> vector<8x72xf32>
    %221 = vector.extract_strided_slice %220 {offsets = [0, 0], sizes = [8, 32], strides = [1, 1]} : vector<8x72xf32> to vector<8x32xf32>
    %c0_170 = arith.constant 0 : index
    %c0_171 = arith.constant 0 : index
    %222 = vector.load %arg48[%c0_170, %c0_171] : memref<40x128xf32, #tpu.memory_space<vmem>>, vector<8x32xf32>
    tpu.vector_store %arg48[%c0_170, %c0_171], %221 {strides = array<i32>} : memref<40x128xf32, #tpu.memory_space<vmem>>, vector<8x32xf32>,
    %223 = vector.extract_strided_slice %220 {offsets = [0, 1], sizes = [8, 32], strides = [1, 1]} : vector<8x72xf32> to vector<8x32xf32>
    %c8_172 = arith.constant 8 : index
    %c0_173 = arith.constant 0 : index
    %224 = vector.load %arg48[%c8_172, %c0_173] : memref<40x128xf32, #tpu.memory_space<vmem>>, vector<8x32xf32>
    tpu.vector_store %arg48[%c8_172, %c0_173], %223 {strides = array<i32>} : memref<40x128xf32, #tpu.memory_space<vmem>>, vector<8x32xf32>,
    %225 = vector.extract_strided_slice %220 {offsets = [0, 2], sizes = [8, 32], strides = [1, 1]} : vector<8x72xf32> to vector<8x32xf32>
    %c16_174 = arith.constant 16 : index
    %c0_175 = arith.constant 0 : index
    %226 = vector.load %arg48[%c16_174, %c0_175] : memref<40x128xf32, #tpu.memory_space<vmem>>, vector<8x32xf32>
    tpu.vector_store %arg48[%c16_174, %c0_175], %225 {strides = array<i32>} : memref<40x128xf32, #tpu.memory_space<vmem>>, vector<8x32xf32>,
    %227 = vector.extract_strided_slice %220 {offsets = [0, 3], sizes = [8, 32], strides = [1, 1]} : vector<8x72xf32> to vector<8x32xf32>
    %c24 = arith.constant 24 : index
    %c0_176 = arith.constant 0 : index
    %228 = vector.load %arg48[%c24, %c0_176] : memref<40x128xf32, #tpu.memory_space<vmem>>, vector<8x32xf32>
    tpu.vector_store %arg48[%c24, %c0_176], %227 {strides = array<i32>} : memref<40x128xf32, #tpu.memory_space<vmem>>, vector<8x32xf32>,
    %229 = vector.extract_strided_slice %220 {offsets = [0, 4], sizes = [8, 32], strides = [1, 1]} : vector<8x72xf32> to vector<8x32xf32>
    %c32 = arith.constant 32 : index
    %c0_177 = arith.constant 0 : index
    %230 = vector.load %arg48[%c32, %c0_177] : memref<40x128xf32, #tpu.memory_space<vmem>>, vector<8x32xf32>
    tpu.vector_store %arg48[%c32, %c0_177], %229 {strides = array<i32>} : memref<40x128xf32, #tpu.memory_space<vmem>>, vector<8x32xf32>,
    %231 = vector.extract_strided_slice %220 {offsets = [0, 36], sizes = [8, 32], strides = [1, 1]} : vector<8x72xf32> to vector<8x32xf32>
    %c0_178 = arith.constant 0 : index
    %c32_179 = arith.constant 32 : index
    %232 = vector.load %arg48[%c0_178, %c32_179] : memref<40x128xf32, #tpu.memory_space<vmem>>, vector<8x32xf32>
    tpu.vector_store %arg48[%c0_178, %c32_179], %231 {strides = array<i32>} : memref<40x128xf32, #tpu.memory_space<vmem>>, vector<8x32xf32>,
    %233 = vector.extract_strided_slice %220 {offsets = [0, 37], sizes = [8, 32], strides = [1, 1]} : vector<8x72xf32> to vector<8x32xf32>
    %c8_180 = arith.constant 8 : index
    %c32_181 = arith.constant 32 : index
    %234 = vector.load %arg48[%c8_180, %c32_181] : memref<40x128xf32, #tpu.memory_space<vmem>>, vector<8x32xf32>
    tpu.vector_store %arg48[%c8_180, %c32_181], %233 {strides = array<i32>} : memref<40x128xf32, #tpu.memory_space<vmem>>, vector<8x32xf32>,
    %235 = vector.extract_strided_slice %220 {offsets = [0, 38], sizes = [8, 32], strides = [1, 1]} : vector<8x72xf32> to vector<8x32xf32>
    %c16_182 = arith.constant 16 : index
    %c32_183 = arith.constant 32 : index
    %236 = vector.load %arg48[%c16_182, %c32_183] : memref<40x128xf32, #tpu.memory_space<vmem>>, vector<8x32xf32>
    tpu.vector_store %arg48[%c16_182, %c32_183], %235 {strides = array<i32>} : memref<40x128xf32, #tpu.memory_space<vmem>>, vector<8x32xf32>,
    %237 = vector.extract_strided_slice %220 {offsets = [0, 39], sizes = [8, 32], strides = [1, 1]} : vector<8x72xf32> to vector<8x32xf32>
    %c24_184 = arith.constant 24 : index
    %c32_185 = arith.constant 32 : index
    %238 = vector.load %arg48[%c24_184, %c32_185] : memref<40x128xf32, #tpu.memory_space<vmem>>, vector<8x32xf32>
    tpu.vector_store %arg48[%c24_184, %c32_185], %237 {strides = array<i32>} : memref<40x128xf32, #tpu.memory_space<vmem>>, vector<8x32xf32>,
    %239 = vector.extract_strided_slice %220 {offsets = [0, 40], sizes = [8, 32], strides = [1, 1]} : vector<8x72xf32> to vector<8x32xf32>
    %c32_186 = arith.constant 32 : index
    %c32_187 = arith.constant 32 : index
    %240 = vector.load %arg48[%c32_186, %c32_187] : memref<40x128xf32, #tpu.memory_space<vmem>>, vector<8x32xf32>
    tpu.vector_store %arg48[%c32_186, %c32_187], %239 {strides = array<i32>} : memref<40x128xf32, #tpu.memory_space<vmem>>, vector<8x32xf32>,
    %c0_188 = arith.constant 0 : index
    %c0_189 = arith.constant 0 : index
    %241 = vector.load %arg48[%c0_188, %c0_189] : memref<40x128xf32, #tpu.memory_space<vmem>>, vector<40x64xf32>
    %cst_190 = arith.constant dense<0.000000e+00> : vector<8x64xf32>
    %242 = tpu.matmul %211, %241, %cst_190 {dimension_numbers = #tpu.dot_dimension_numbers<[1], [0], [0], [1], [0, 0, 1, 1], [], []>} : vector<8x40xf32>, vector<40x64xf32>, vector<8x64xf32> -> vector<8x64xf32>
    %243 = vector.broadcast %212 : vector<8x1xf32> to vector<8x64xf32>
    %244 = arith.addf %242, %243 : vector<8x64xf32>
    %cst_191 = arith.constant dense<0.000000e+00> : vector<8xf32>
    %245 = vector.multi_reduction <add>, %244, %cst_191 [1] : vector<8x64xf32> to vector<8xf32>
    %246 = vector.shape_cast %245 : vector<8xf32> to vector<8x1xf32>
    %cst_192 = arith.constant 1.562500e-02 : f32
    %247 = vector.broadcast %cst_192 : f32 to vector<8x1xf32>
    %248 = arith.mulf %246, %247 : vector<8x1xf32>
    %249 = vector.broadcast %248 : vector<8x1xf32> to vector<8x64xf32>
    %250 = arith.subf %244, %249 : vector<8x64xf32>
    %251 = arith.mulf %250, %250 : vector<8x64xf32>
    %cst_193 = arith.constant dense<0.000000e+00> : vector<8xf32>
    %252 = vector.multi_reduction <add>, %251, %cst_193 [1] : vector<8x64xf32> to vector<8xf32>
    %253 = vector.shape_cast %252 : vector<8xf32> to vector<8x1xf32>
    %cst_194 = arith.constant 1.562500e-02 : f32
    %254 = vector.broadcast %cst_194 : f32 to vector<8x1xf32>
    %255 = arith.mulf %253, %254 : vector<8x1xf32>
    %cst_195 = arith.constant 9.99999974E-6 : f32
    %256 = vector.broadcast %cst_195 : f32 to vector<8x1xf32>
    %257 = arith.addf %255, %256 : vector<8x1xf32>
    %258 = math.rsqrt %257 : vector<8x1xf32>
    %259 = vector.broadcast %258 : vector<8x1xf32> to vector<8x64xf32>
    %260 = arith.mulf %250, %259 : vector<8x64xf32>
    %261 = vector.broadcast %213 : vector<8x1xf32> to vector<8x64xf32>
    %262 = arith.mulf %260, %261 : vector<8x64xf32>
    %263 = vector.broadcast %214 : vector<8x1xf32> to vector<8x64xf32>
    %264 = arith.addf %262, %263 : vector<8x64xf32>
    %cst_196 = arith.constant 0.000000e+00 : f32
    %265 = vector.broadcast %cst_196 : f32 to vector<8x64xf32>
    %266 = arith.maximumf %264, %265 : vector<8x64xf32>
    %267 = arith.addf %266, %210 : vector<8x64xf32>
    %cst_197 = arith.constant dense<0.000000e+00> : vector<8x72xf32>
    %268 = tpu.matmul %267, %219, %cst_197 {dimension_numbers = #tpu.dot_dimension_numbers<[1], [0], [0], [1], [0, 0, 1, 1], [], []>} : vector<8x64xf32>, vector<64x72xf32>, vector<8x72xf32> -> vector<8x72xf32>
    %269 = vector.extract_strided_slice %268 {offsets = [0, 0], sizes = [8, 32], strides = [1, 1]} : vector<8x72xf32> to vector<8x32xf32>
    %c0_198 = arith.constant 0 : index
    %c0_199 = arith.constant 0 : index
    %270 = vector.load %arg48[%c0_198, %c0_199] : memref<40x128xf32, #tpu.memory_space<vmem>>, vector<8x32xf32>
    tpu.vector_store %arg48[%c0_198, %c0_199], %269 {strides = array<i32>} : memref<40x128xf32, #tpu.memory_space<vmem>>, vector<8x32xf32>,
    %271 = vector.extract_strided_slice %268 {offsets = [0, 1], sizes = [8, 32], strides = [1, 1]} : vector<8x72xf32> to vector<8x32xf32>
    %c8_200 = arith.constant 8 : index
    %c0_201 = arith.constant 0 : index
    %272 = vector.load %arg48[%c8_200, %c0_201] : memref<40x128xf32, #tpu.memory_space<vmem>>, vector<8x32xf32>
    tpu.vector_store %arg48[%c8_200, %c0_201], %271 {strides = array<i32>} : memref<40x128xf32, #tpu.memory_space<vmem>>, vector<8x32xf32>,
    %273 = vector.extract_strided_slice %268 {offsets = [0, 2], sizes = [8, 32], strides = [1, 1]} : vector<8x72xf32> to vector<8x32xf32>
    %c16_202 = arith.constant 16 : index
    %c0_203 = arith.constant 0 : index
    %274 = vector.load %arg48[%c16_202, %c0_203] : memref<40x128xf32, #tpu.memory_space<vmem>>, vector<8x32xf32>
    tpu.vector_store %arg48[%c16_202, %c0_203], %273 {strides = array<i32>} : memref<40x128xf32, #tpu.memory_space<vmem>>, vector<8x32xf32>,
    %275 = vector.extract_strided_slice %268 {offsets = [0, 3], sizes = [8, 32], strides = [1, 1]} : vector<8x72xf32> to vector<8x32xf32>
    %c24_204 = arith.constant 24 : index
    %c0_205 = arith.constant 0 : index
    %276 = vector.load %arg48[%c24_204, %c0_205] : memref<40x128xf32, #tpu.memory_space<vmem>>, vector<8x32xf32>
    tpu.vector_store %arg48[%c24_204, %c0_205], %275 {strides = array<i32>} : memref<40x128xf32, #tpu.memory_space<vmem>>, vector<8x32xf32>,
    %277 = vector.extract_strided_slice %268 {offsets = [0, 4], sizes = [8, 32], strides = [1, 1]} : vector<8x72xf32> to vector<8x32xf32>
    %c32_206 = arith.constant 32 : index
    %c0_207 = arith.constant 0 : index
    %278 = vector.load %arg48[%c32_206, %c0_207] : memref<40x128xf32, #tpu.memory_space<vmem>>, vector<8x32xf32>
    tpu.vector_store %arg48[%c32_206, %c0_207], %277 {strides = array<i32>} : memref<40x128xf32, #tpu.memory_space<vmem>>, vector<8x32xf32>,
    %279 = vector.extract_strided_slice %268 {offsets = [0, 36], sizes = [8, 32], strides = [1, 1]} : vector<8x72xf32> to vector<8x32xf32>
    %c0_208 = arith.constant 0 : index
    %c32_209 = arith.constant 32 : index
    %280 = vector.load %arg48[%c0_208, %c32_209] : memref<40x128xf32, #tpu.memory_space<vmem>>, vector<8x32xf32>
    tpu.vector_store %arg48[%c0_208, %c32_209], %279 {strides = array<i32>} : memref<40x128xf32, #tpu.memory_space<vmem>>, vector<8x32xf32>,
    %281 = vector.extract_strided_slice %268 {offsets = [0, 37], sizes = [8, 32], strides = [1, 1]} : vector<8x72xf32> to vector<8x32xf32>
    %c8_210 = arith.constant 8 : index
    %c32_211 = arith.constant 32 : index
    %282 = vector.load %arg48[%c8_210, %c32_211] : memref<40x128xf32, #tpu.memory_space<vmem>>, vector<8x32xf32>
    tpu.vector_store %arg48[%c8_210, %c32_211], %281 {strides = array<i32>} : memref<40x128xf32, #tpu.memory_space<vmem>>, vector<8x32xf32>,
    %283 = vector.extract_strided_slice %268 {offsets = [0, 38], sizes = [8, 32], strides = [1, 1]} : vector<8x72xf32> to vector<8x32xf32>
    %c16_212 = arith.constant 16 : index
    %c32_213 = arith.constant 32 : index
    %284 = vector.load %arg48[%c16_212, %c32_213] : memref<40x128xf32, #tpu.memory_space<vmem>>, vector<8x32xf32>
    tpu.vector_store %arg48[%c16_212, %c32_213], %283 {strides = array<i32>} : memref<40x128xf32, #tpu.memory_space<vmem>>, vector<8x32xf32>,
    %285 = vector.extract_strided_slice %268 {offsets = [0, 39], sizes = [8, 32], strides = [1, 1]} : vector<8x72xf32> to vector<8x32xf32>
    %c24_214 = arith.constant 24 : index
    %c32_215 = arith.constant 32 : index
    %286 = vector.load %arg48[%c24_214, %c32_215] : memref<40x128xf32, #tpu.memory_space<vmem>>, vector<8x32xf32>
    tpu.vector_store %arg48[%c24_214, %c32_215], %285 {strides = array<i32>} : memref<40x128xf32, #tpu.memory_space<vmem>>, vector<8x32xf32>,
    %287 = vector.extract_strided_slice %268 {offsets = [0, 40], sizes = [8, 32], strides = [1, 1]} : vector<8x72xf32> to vector<8x32xf32>
    %c32_216 = arith.constant 32 : index
    %c32_217 = arith.constant 32 : index
    %288 = vector.load %arg48[%c32_216, %c32_217] : memref<40x128xf32, #tpu.memory_space<vmem>>, vector<8x32xf32>
    tpu.vector_store %arg48[%c32_216, %c32_217], %287 {strides = array<i32>} : memref<40x128xf32, #tpu.memory_space<vmem>>, vector<8x32xf32>,
    %c0_218 = arith.constant 0 : index
    %c0_219 = arith.constant 0 : index
    %289 = vector.load %arg48[%c0_218, %c0_219] : memref<40x128xf32, #tpu.memory_space<vmem>>, vector<40x64xf32>
    %cst_220 = arith.constant dense<0.000000e+00> : vector<16x64xf32>
    %290 = tpu.matmul %215, %289, %cst_220 {dimension_numbers = #tpu.dot_dimension_numbers<[1], [0], [0], [1], [0, 0, 1, 1], [], []>} : vector<16x40xf32>, vector<40x64xf32>, vector<16x64xf32> -> vector<16x64xf32>
    %c0_221 = arith.constant 0 : index
    %c0_222 = arith.constant 0 : index
    %291 = vector.load %arg29[%c0_221, %c0_222] : memref<64x32xf32, #tpu.memory_space<vmem>>, vector<64x32xf32>
    %cst_223 = arith.constant dense<0.000000e+00> : vector<16x32xf32>
    %292 = tpu.matmul %290, %291, %cst_223 {dimension_numbers = #tpu.dot_dimension_numbers<[1], [0], [0], [1], [0, 0, 1, 1], [], []>} : vector<16x64xf32>, vector<64x32xf32>, vector<16x32xf32> -> vector<16x32xf32>
    %293 = vector.broadcast %216 : vector<16x1xf32> to vector<16x32xf32>
    %294 = arith.addf %292, %293 : vector<16x32xf32>
    %cst_224 = arith.constant dense<0.000000e+00> : vector<16xf32>
    %295 = vector.multi_reduction <add>, %294, %cst_224 [1] : vector<16x32xf32> to vector<16xf32>
    %296 = vector.shape_cast %295 : vector<16xf32> to vector<16x1xf32>
    %cst_225 = arith.constant 3.125000e-02 : f32
    %297 = vector.broadcast %cst_225 : f32 to vector<16x1xf32>
    %298 = arith.mulf %296, %297 : vector<16x1xf32>
    %299 = vector.broadcast %298 : vector<16x1xf32> to vector<16x32xf32>
    %300 = arith.subf %294, %299 : vector<16x32xf32>
    %301 = arith.mulf %300, %300 : vector<16x32xf32>
    %cst_226 = arith.constant dense<0.000000e+00> : vector<16xf32>
    %302 = vector.multi_reduction <add>, %301, %cst_226 [1] : vector<16x32xf32> to vector<16xf32>
    %303 = vector.shape_cast %302 : vector<16xf32> to vector<16x1xf32>
    %cst_227 = arith.constant 3.125000e-02 : f32
    %304 = vector.broadcast %cst_227 : f32 to vector<16x1xf32>
    %305 = arith.mulf %303, %304 : vector<16x1xf32>
    %cst_228 = arith.constant 9.99999974E-6 : f32
    %306 = vector.broadcast %cst_228 : f32 to vector<16x1xf32>
    %307 = arith.addf %305, %306 : vector<16x1xf32>
    %308 = math.rsqrt %307 : vector<16x1xf32>
    %309 = vector.broadcast %308 : vector<16x1xf32> to vector<16x32xf32>
    %310 = arith.mulf %300, %309 : vector<16x32xf32>
    %311 = vector.broadcast %217 : vector<16x1xf32> to vector<16x32xf32>
    %312 = arith.mulf %310, %311 : vector<16x32xf32>
    %313 = vector.broadcast %218 : vector<16x1xf32> to vector<16x32xf32>
    %314 = arith.addf %312, %313 : vector<16x32xf32>
    %cst_229 = arith.constant 0.000000e+00 : f32
    %315 = vector.broadcast %cst_229 : f32 to vector<16x32xf32>
    %316 = arith.maximumf %314, %315 : vector<16x32xf32>
    %317 = vector.extract_strided_slice %316 {offsets = [0, 0], sizes = [16, 16], strides = [1, 1]} : vector<16x32xf32> to vector<16x16xf32>
    %c0_230 = arith.constant 0 : index
    %c0_231 = arith.constant 0 : index
    %c0_232 = arith.constant 0 : index
    %318 = vector.load %arg49[%c0_230, %c0_231, %c0_232] : memref<2x16x16xf32, #tpu.memory_space<vmem>>, vector<1x16x16xf32>
    %319 = vector.shape_cast %318 : vector<1x16x16xf32> to vector<16x16xf32>
    %320 = vector.shape_cast %317 : vector<16x16xf32> to vector<1x16x16xf32>
    tpu.vector_store %arg49[%c0_230, %c0_231, %c0_232], %320 {strides = array<i32>} : memref<2x16x16xf32, #tpu.memory_space<vmem>>, vector<1x16x16xf32>,
    %321 = vector.extract_strided_slice %316 {offsets = [0, 16], sizes = [16, 16], strides = [1, 1]} : vector<16x32xf32> to vector<16x16xf32>
    %c1_233 = arith.constant 1 : index
    %c0_234 = arith.constant 0 : index
    %c0_235 = arith.constant 0 : index
    %322 = vector.load %arg49[%c1_233, %c0_234, %c0_235] : memref<2x16x16xf32, #tpu.memory_space<vmem>>, vector<1x16x16xf32>
    %323 = vector.shape_cast %322 : vector<1x16x16xf32> to vector<16x16xf32>
    %324 = vector.shape_cast %321 : vector<16x16xf32> to vector<1x16x16xf32>
    tpu.vector_store %arg49[%c1_233, %c0_234, %c0_235], %324 {strides = array<i32>} : memref<2x16x16xf32, #tpu.memory_space<vmem>>, vector<1x16x16xf32>,
    %c0_236 = arith.constant 0 : index
    %c0_237 = arith.constant 0 : index
    %c0_238 = arith.constant 0 : index
    %325 = vector.load %arg49[%c0_236, %c0_237, %c0_238] : memref<2x16x16xf32, #tpu.memory_space<vmem>>, vector<2x16x16xf32>
    %cst_239 = arith.constant dense<0.000000e+00> : vector<2x16xf32>
    %326 = vector.multi_reduction <add>, %325, %cst_239 [2] : vector<2x16x16xf32> to vector<2x16xf32>
    %cst_240 = arith.constant 1.600000e+01 : f32
    %327 = vector.broadcast %cst_240 : f32 to vector<2x16xf32>
    %328 = arith.divf %326, %327 : vector<2x16xf32>
    %c0_241 = arith.constant 0 : index
    %c0_242 = arith.constant 0 : index
    %329 = vector.load %arg30[%c0_241, %c0_242] : memref<16x64xf32, #tpu.memory_space<vmem>>, vector<16x64xf32>
    %c0_243 = arith.constant 0 : index
    %c0_244 = arith.constant 0 : index
    %330 = vector.load %arg31[%c0_243, %c0_244] : memref<1x64xf32, #tpu.memory_space<vmem>>, vector<1x64xf32>
    %c0_245 = arith.constant 0 : index
    %c0_246 = arith.constant 0 : index
    %331 = vector.load %arg32[%c0_245, %c0_246] : memref<1x64xf32, #tpu.memory_space<vmem>>, vector<1x64xf32>
    %c0_247 = arith.constant 0 : index
    %c0_248 = arith.constant 0 : index
    %332 = vector.load %arg33[%c0_247, %c0_248] : memref<1x64xf32, #tpu.memory_space<vmem>>, vector<1x64xf32>
    %c0_249 = arith.constant 0 : index
    %c0_250 = arith.constant 0 : index
    %333 = vector.load %arg34[%c0_249, %c0_250] : memref<1x1xf32, #tpu.memory_space<vmem>>, vector<1x1xf32>
    %cst_251 = arith.constant dense<0.000000e+00> : vector<2x64xf32>
    %334 = tpu.matmul %328, %329, %cst_251 {dimension_numbers = #tpu.dot_dimension_numbers<[1], [0], [0], [1], [0, 0, 1, 1], [], []>} : vector<2x16xf32>, vector<16x64xf32>, vector<2x64xf32> -> vector<2x64xf32>
    %335 = vector.broadcast %330 : vector<1x64xf32> to vector<2x64xf32>
    %336 = arith.addf %334, %335 : vector<2x64xf32>
    %cst_252 = arith.constant dense<0.000000e+00> : vector<64xf32>
    %337 = vector.multi_reduction <add>, %336, %cst_252 [0] : vector<2x64xf32> to vector<64xf32>
    %338 = vector.shape_cast %337 : vector<64xf32> to vector<1x64xf32>
    %cst_253 = arith.constant 5.000000e-01 : f32
    %339 = vector.broadcast %cst_253 : f32 to vector<1x64xf32>
    %340 = arith.mulf %338, %339 : vector<1x64xf32>
    %341 = vector.broadcast %340 : vector<1x64xf32> to vector<2x64xf32>
    %342 = arith.subf %336, %341 : vector<2x64xf32>
    %343 = arith.mulf %342, %342 : vector<2x64xf32>
    %cst_254 = arith.constant dense<0.000000e+00> : vector<64xf32>
    %344 = vector.multi_reduction <add>, %343, %cst_254 [0] : vector<2x64xf32> to vector<64xf32>
    %345 = vector.shape_cast %344 : vector<64xf32> to vector<1x64xf32>
    %cst_255 = arith.constant 5.000000e-01 : f32
    %346 = vector.broadcast %cst_255 : f32 to vector<1x64xf32>
    %347 = arith.mulf %345, %346 : vector<1x64xf32>
    %cst_256 = arith.constant 9.99999974E-6 : f32
    %348 = vector.broadcast %cst_256 : f32 to vector<1x64xf32>
    %349 = arith.addf %347, %348 : vector<1x64xf32>
    %350 = math.rsqrt %349 : vector<1x64xf32>
    %351 = vector.broadcast %350 : vector<1x64xf32> to vector<2x64xf32>
    %352 = arith.mulf %342, %351 : vector<2x64xf32>
    %353 = vector.broadcast %331 : vector<1x64xf32> to vector<2x64xf32>
    %354 = arith.mulf %352, %353 : vector<2x64xf32>
    %355 = vector.broadcast %332 : vector<1x64xf32> to vector<2x64xf32>
    %356 = arith.addf %354, %355 : vector<2x64xf32>
    %cst_257 = arith.constant 0.000000e+00 : f32
    %357 = vector.broadcast %cst_257 : f32 to vector<2x64xf32>
    %358 = arith.cmpf oge, %356, %357 : vector<2x64xf32>
    %359 = vector.broadcast %333 : vector<1x1xf32> to vector<2x64xf32>
    %360 = arith.mulf %359, %356 : vector<2x64xf32>
    %361 = arith.select %358, %356, %360 : vector<2x64xi1>, vector<2x64xf32>
    %c0_258 = arith.constant 0 : index
    %c0_259 = arith.constant 0 : index
    %362 = vector.load %arg35[%c0_258, %c0_259] : memref<64x48xf32, #tpu.memory_space<vmem>>, vector<64x48xf32>
    %c0_260 = arith.constant 0 : index
    %c0_261 = arith.constant 0 : index
    %363 = vector.load %arg36[%c0_260, %c0_261] : memref<1x48xf32, #tpu.memory_space<vmem>>, vector<1x48xf32>
    %c0_262 = arith.constant 0 : index
    %c0_263 = arith.constant 0 : index
    %364 = vector.load %arg37[%c0_262, %c0_263] : memref<1x48xf32, #tpu.memory_space<vmem>>, vector<1x48xf32>
    %c0_264 = arith.constant 0 : index
    %c0_265 = arith.constant 0 : index
    %365 = vector.load %arg38[%c0_264, %c0_265] : memref<1x48xf32, #tpu.memory_space<vmem>>, vector<1x48xf32>
    %c0_266 = arith.constant 0 : index
    %c0_267 = arith.constant 0 : index
    %366 = vector.load %arg39[%c0_266, %c0_267] : memref<1x1xf32, #tpu.memory_space<vmem>>, vector<1x1xf32>
    %cst_268 = arith.constant dense<0.000000e+00> : vector<2x48xf32>
    %367 = tpu.matmul %361, %362, %cst_268 {dimension_numbers = #tpu.dot_dimension_numbers<[1], [0], [0], [1], [0, 0, 1, 1], [], []>} : vector<2x64xf32>, vector<64x48xf32>, vector<2x48xf32> -> vector<2x48xf32>
    %368 = vector.broadcast %363 : vector<1x48xf32> to vector<2x48xf32>
    %369 = arith.addf %367, %368 : vector<2x48xf32>
    %cst_269 = arith.constant dense<0.000000e+00> : vector<48xf32>
    %370 = vector.multi_reduction <add>, %369, %cst_269 [0] : vector<2x48xf32> to vector<48xf32>
    %371 = vector.shape_cast %370 : vector<48xf32> to vector<1x48xf32>
    %cst_270 = arith.constant 5.000000e-01 : f32
    %372 = vector.broadcast %cst_270 : f32 to vector<1x48xf32>
    %373 = arith.mulf %371, %372 : vector<1x48xf32>
    %374 = vector.broadcast %373 : vector<1x48xf32> to vector<2x48xf32>
    %375 = arith.subf %369, %374 : vector<2x48xf32>
    %376 = arith.mulf %375, %375 : vector<2x48xf32>
    %cst_271 = arith.constant dense<0.000000e+00> : vector<48xf32>
    %377 = vector.multi_reduction <add>, %376, %cst_271 [0] : vector<2x48xf32> to vector<48xf32>
    %378 = vector.shape_cast %377 : vector<48xf32> to vector<1x48xf32>
    %cst_272 = arith.constant 5.000000e-01 : f32
    %379 = vector.broadcast %cst_272 : f32 to vector<1x48xf32>
    %380 = arith.mulf %378, %379 : vector<1x48xf32>
    %cst_273 = arith.constant 9.99999974E-6 : f32
    %381 = vector.broadcast %cst_273 : f32 to vector<1x48xf32>
    %382 = arith.addf %380, %381 : vector<1x48xf32>
    %383 = math.rsqrt %382 : vector<1x48xf32>
    %384 = vector.broadcast %383 : vector<1x48xf32> to vector<2x48xf32>
    %385 = arith.mulf %375, %384 : vector<2x48xf32>
    %386 = vector.broadcast %364 : vector<1x48xf32> to vector<2x48xf32>
    %387 = arith.mulf %385, %386 : vector<2x48xf32>
    %388 = vector.broadcast %365 : vector<1x48xf32> to vector<2x48xf32>
    %389 = arith.addf %387, %388 : vector<2x48xf32>
    %cst_274 = arith.constant 0.000000e+00 : f32
    %390 = vector.broadcast %cst_274 : f32 to vector<2x48xf32>
    %391 = arith.cmpf oge, %389, %390 : vector<2x48xf32>
    %392 = vector.broadcast %366 : vector<1x1xf32> to vector<2x48xf32>
    %393 = arith.mulf %392, %389 : vector<2x48xf32>
    %394 = arith.select %391, %389, %393 : vector<2x48xi1>, vector<2x48xf32>
    %c0_275 = arith.constant 0 : index
    %c0_276 = arith.constant 0 : index
    %395 = vector.load %arg40[%c0_275, %c0_276] : memref<48x32xf32, #tpu.memory_space<vmem>>, vector<48x32xf32>
    %c0_277 = arith.constant 0 : index
    %c0_278 = arith.constant 0 : index
    %396 = vector.load %arg41[%c0_277, %c0_278] : memref<1x32xf32, #tpu.memory_space<vmem>>, vector<1x32xf32>
    %c0_279 = arith.constant 0 : index
    %c0_280 = arith.constant 0 : index
    %397 = vector.load %arg42[%c0_279, %c0_280] : memref<1x32xf32, #tpu.memory_space<vmem>>, vector<1x32xf32>
    %c0_281 = arith.constant 0 : index
    %c0_282 = arith.constant 0 : index
    %398 = vector.load %arg43[%c0_281, %c0_282] : memref<1x32xf32, #tpu.memory_space<vmem>>, vector<1x32xf32>
    %c0_283 = arith.constant 0 : index
    %c0_284 = arith.constant 0 : index
    %399 = vector.load %arg44[%c0_283, %c0_284] : memref<1x1xf32, #tpu.memory_space<vmem>>, vector<1x1xf32>
    %cst_285 = arith.constant dense<0.000000e+00> : vector<2x32xf32>
    %400 = tpu.matmul %394, %395, %cst_285 {dimension_numbers = #tpu.dot_dimension_numbers<[1], [0], [0], [1], [0, 0, 1, 1], [], []>} : vector<2x48xf32>, vector<48x32xf32>, vector<2x32xf32> -> vector<2x32xf32>
    %401 = vector.broadcast %396 : vector<1x32xf32> to vector<2x32xf32>
    %402 = arith.addf %400, %401 : vector<2x32xf32>
    %cst_286 = arith.constant dense<0.000000e+00> : vector<32xf32>
    %403 = vector.multi_reduction <add>, %402, %cst_286 [0] : vector<2x32xf32> to vector<32xf32>
    %404 = vector.shape_cast %403 : vector<32xf32> to vector<1x32xf32>
    %cst_287 = arith.constant 5.000000e-01 : f32
    %405 = vector.broadcast %cst_287 : f32 to vector<1x32xf32>
    %406 = arith.mulf %404, %405 : vector<1x32xf32>
    %407 = vector.broadcast %406 : vector<1x32xf32> to vector<2x32xf32>
    %408 = arith.subf %402, %407 : vector<2x32xf32>
    %409 = arith.mulf %408, %408 : vector<2x32xf32>
    %cst_288 = arith.constant dense<0.000000e+00> : vector<32xf32>
    %410 = vector.multi_reduction <add>, %409, %cst_288 [0] : vector<2x32xf32> to vector<32xf32>
    %411 = vector.shape_cast %410 : vector<32xf32> to vector<1x32xf32>
    %cst_289 = arith.constant 5.000000e-01 : f32
    %412 = vector.broadcast %cst_289 : f32 to vector<1x32xf32>
    %413 = arith.mulf %411, %412 : vector<1x32xf32>
    %cst_290 = arith.constant 9.99999974E-6 : f32
    %414 = vector.broadcast %cst_290 : f32 to vector<1x32xf32>
    %415 = arith.addf %413, %414 : vector<1x32xf32>
    %416 = math.rsqrt %415 : vector<1x32xf32>
    %417 = vector.broadcast %416 : vector<1x32xf32> to vector<2x32xf32>
    %418 = arith.mulf %408, %417 : vector<2x32xf32>
    %419 = vector.broadcast %397 : vector<1x32xf32> to vector<2x32xf32>
    %420 = arith.mulf %418, %419 : vector<2x32xf32>
    %421 = vector.broadcast %398 : vector<1x32xf32> to vector<2x32xf32>
    %422 = arith.addf %420, %421 : vector<2x32xf32>
    %cst_291 = arith.constant 0.000000e+00 : f32
    %423 = vector.broadcast %cst_291 : f32 to vector<2x32xf32>
    %424 = arith.cmpf oge, %422, %423 : vector<2x32xf32>
    %425 = vector.broadcast %399 : vector<1x1xf32> to vector<2x32xf32>
    %426 = arith.mulf %425, %422 : vector<2x32xf32>
    %427 = arith.select %424, %422, %426 : vector<2x32xi1>, vector<2x32xf32>
    %c0_292 = arith.constant 0 : index
    %c0_293 = arith.constant 0 : index
    %428 = vector.load %arg45[%c0_292, %c0_293] : memref<32x5xf32, #tpu.memory_space<vmem>>, vector<32x5xf32>
    %c0_294 = arith.constant 0 : index
    %c0_295 = arith.constant 0 : index
    %429 = vector.load %arg46[%c0_294, %c0_295] : memref<1x5xf32, #tpu.memory_space<vmem>>, vector<1x5xf32>
    %cst_296 = arith.constant dense<0.000000e+00> : vector<2x5xf32>
    %430 = tpu.matmul %427, %428, %cst_296 {dimension_numbers = #tpu.dot_dimension_numbers<[1], [0], [0], [1], [0, 0, 1, 1], [], []>} : vector<2x32xf32>, vector<32x5xf32>, vector<2x5xf32> -> vector<2x5xf32>
    %431 = vector.broadcast %429 : vector<1x5xf32> to vector<2x5xf32>
    %432 = arith.addf %430, %431 : vector<2x5xf32>
    %cst_297 = arith.constant 0.000000e+00 : f32
    %433 = vector.broadcast %cst_297 : f32 to vector<2x5xf32>
    %434 = arith.subf %433, %432 : vector<2x5xf32>
    %435 = math.exp %434 : vector<2x5xf32>
    %cst_298 = arith.constant 1.000000e+00 : f32
    %436 = vector.broadcast %cst_298 : f32 to vector<2x5xf32>
    %437 = arith.addf %436, %435 : vector<2x5xf32>
    %cst_299 = arith.constant 1.000000e+00 : f32
    %438 = vector.broadcast %cst_299 : f32 to vector<2x5xf32>
    %439 = arith.divf %438, %437 : vector<2x5xf32>
    %c0_300 = arith.constant 0 : index
    %c0_301 = arith.constant 0 : index
    %440 = vector.load %arg47[%c0_300, %c0_301] : memref<2x5xf32, #tpu.memory_space<vmem>>, vector<2x5xf32>
    tpu.vector_store %arg47[%c0_300, %c0_301], %439 {strides = array<i32>} : memref<2x5xf32, #tpu.memory_space<vmem>>, vector<2x5xf32>,
    return
  }
}

</mosaic_0001>

<llo_original>
// kernel: mee_forward.1
$region0: #{mee_forward.1}
  #allocation0 [shape = 'u32[]', space=smem, size = 0x4, offset = 0x4, fixed_abs, tag = 'smem constant byte address 0x4 - core index']
  #allocation1 [shape = 'u32[144,128]{1,0:T(1,128)}', space=vmem, size = 0x12000, scoped, tag = 'internal scratch']
  #allocation2 [shape = 'f32[40,128]{1,0:T(8,128)}', space=vmem, size = 0x5000, scoped, tag = 'scratch operand']
  #allocation3 [shape = 'f32[2,16,16]{2,1,0:T(8,128)}', space=vmem, size = 0x4000, scoped, tag = 'scratch operand']
  #allocation4 [shape = 'f32[1,1]{1,0:T(1,128)S(1)}', space=vmem, size = 0x200, scoped, tag = 'scoped memory for mee_forward.1']
  #allocation5 [shape = 'f32[1,1]{1,0:T(1,128)S(1)}', space=vmem, size = 0x200, scoped, tag = 'scoped memory for mee_forward.1']
  #allocation6 [shape = 'f32[1,1]{1,0:T(1,128)S(1)}', space=vmem, size = 0x200, scoped, tag = 'scoped memory for mee_forward.1']
  #allocation7 [shape = 'f32[1,1]{1,0:T(1,128)S(1)}', space=vmem, size = 0x200, scoped, tag = 'scoped memory for mee_forward.1']
  #allocation8 [shape = 'f32[1,1]{1,0:T(1,128)S(1)}', space=vmem, size = 0x200, scoped, tag = 'scoped memory for mee_forward.1']
  #allocation9 [shape = 'f32[1,1]{1,0:T(1,128)S(1)}', space=vmem, size = 0x200, scoped, tag = 'scoped memory for mee_forward.1']
  %s0 = inlined_call_operand.smem [shape: u32[48], index: -1, kind: input, shape index: {}]
  %s1 = sld [smem:[%s0]]
  %s2 = scalar_lea.smem %s0, 1
  %s3 = sld [smem:[%s2]]
  %s4 = scalar_lea.smem %s0, 2
  %s5 = sld [smem:[%s4]]
  %s6 = scalar_lea.smem %s0, 3
  %s7 = sld [smem:[%s6]]
  %s8 = scalar_lea.smem %s0, 4
  %s9 = sld [smem:[%s8]]
  %s10 = scalar_lea.smem %s0, 5
  %s11 = sld [smem:[%s10]]
  %s12 = scalar_lea.smem %s0, 6
  %s13 = sld [smem:[%s12]]
  %s14 = scalar_lea.smem %s0, 7
  %s15 = sld [smem:[%s14]]
  %s16 = scalar_lea.smem %s0, 8
  %s17 = sld [smem:[%s16]]
  %s18 = scalar_lea.smem %s0, 9
  %s19 = sld [smem:[%s18]]
  %s20 = scalar_lea.smem %s0, 10
  %s21 = sld [smem:[%s20]]
  %s22 = scalar_lea.smem %s0, 11
  %s23 = sld [smem:[%s22]]
  %s24 = scalar_lea.smem %s0, 12
  %s25 = sld [smem:[%s24]]
  %s26 = scalar_lea.smem %s0, 13
  %s27 = sld [smem:[%s26]]
  %s28 = scalar_lea.smem %s0, 14
  %s29 = sld [smem:[%s28]]
  %s30 = scalar_lea.smem %s0, 15
  %s31 = sld [smem:[%s30]]
  %s32 = scalar_lea.smem %s0, 16
  %s33 = sld [smem:[%s32]]
  %s34 = scalar_lea.smem %s0, 17
  %s35 = sld [smem:[%s34]]
  %s36 = scalar_lea.smem %s0, 18
  %s37 = sld [smem:[%s36]]
  %s38 = scalar_lea.smem %s0, 19
  %s39 = sld [smem:[%s38]]
  %s40 = scalar_lea.smem %s0, 20
  %s41 = sld [smem:[%s40]]
  %s42 = scalar_lea.smem %s0, 21
  %s43 = sld [smem:[%s42]]
  %s44 = scalar_lea.smem %s0, 22
  %s45 = sld [smem:[%s44]]
  %s46 = scalar_lea.smem %s0, 23
  %s47 = sld [smem:[%s46]]
  %s48 = scalar_lea.smem %s0, 24
  %s49 = sld [smem:[%s48]]
  %s50 = scalar_lea.smem %s0, 25
  %s51 = sld [smem:[%s50]]
  %s52 = scalar_lea.smem %s0, 26
  %s53 = sld [smem:[%s52]]
  %s54 = scalar_lea.smem %s0, 27
  %s55 = sld [smem:[%s54]]
  %s56 = scalar_lea.smem %s0, 28
  %s57 = sld [smem:[%s56]]
  %s58 = scalar_lea.smem %s0, 29
  %s59 = sld [smem:[%s58]]
  %s60 = scalar_lea.smem %s0, 30
  %s61 = sld [smem:[%s60]]
  %s62 = scalar_lea.smem %s0, 31
  %s63 = sld [smem:[%s62]]
  %s64 = scalar_lea.smem %s0, 32
  %s65 = sld [smem:[%s64]]
  %s66 = scalar_lea.smem %s0, 33
  %s67 = sld [smem:[%s66]]
  %s68 = scalar_lea.smem %s0, 34
  %s69 = sld [smem:[%s68]]
  %s70 = scalar_lea.smem %s0, 35
  %s71 = sld [smem:[%s70]]
  %s72 = scalar_lea.smem %s0, 36
  %s73 = sld [smem:[%s72]]
  %s74 = scalar_lea.smem %s0, 37
  %s75 = sld [smem:[%s74]]
  %s76 = scalar_lea.smem %s0, 38
  %s77 = sld [smem:[%s76]]
  %s78 = scalar_lea.smem %s0, 39
  %s79 = sld [smem:[%s78]]
  %s80 = scalar_lea.smem %s0, 40
  %s81 = sld [smem:[%s80]]
  %s82 = scalar_lea.smem %s0, 41
  %s83 = sld [smem:[%s82]]
  %s84 = scalar_lea.smem %s0, 42
  %s85 = sld [smem:[%s84]]
  %s86 = scalar_lea.smem %s0, 43
  %s87 = sld [smem:[%s86]]
  %s88 = scalar_lea.smem %s0, 44
  %s89 = sld [smem:[%s88]]
  %s90 = scalar_lea.smem %s0, 45
  %s91 = sld [smem:[%s90]]
  %s92 = scalar_lea.smem %s0, 46
  %s93 = sld [smem:[%s92]]
  %s94 = scalar_lea.smem %s0, 47
  %s95 = sld [smem:[%s94]]
  %s96 = sld [smem:[#allocation0]]
  $region206: #{mee_forward.1} parent=0
    _
  %s98 = ssub.s32 1, %s96
  %s99 = scalar_select 0, %s98, %s96
  %v100 = vstv %s5
  %101 = vst [vmem:[#allocation4] sm:$0x1] %v100
  %v102 = vstv %s7
  %103 = vst [vmem:[#allocation5] sm:$0x1] %v102
  %v104 = vstv %s9
  %105 = vst [vmem:[#allocation6] sm:$0x1] %v104
  %v106 = vstv %s69
  %107 = vst [vmem:[#allocation7] sm:$0x1] %v106
  %v108 = vstv %s79
  %109 = vst [vmem:[#allocation8] sm:$0x1] %v108
  %v110 = vstv %s89
  %111 = vst [vmem:[#allocation9] sm:$0x1] %v110
  $region1: #{mee_forward.1} parent=0
    #allocation10 [shape = 'u8[512]{0}', space=vmem, size = 0x400, scoped, tag = 'input window, operand 1, single buffered']
    #allocation11 [shape = 's32[1]{0}', space=sflag, size = 0x4, scoped, tag = 'scoped memory for mee_forward.1']
    #allocation12 [shape = 's32[1]{0}', space=sflag, size = 0x4, scoped, tag = 'scoped memory for mee_forward.1']
    #allocation13 [shape = 'u8[2048]{0}', space=vmem, size = 0x800, scoped, tag = 'input window, operand 5, single buffered']
    #allocation14 [shape = 's32[1]{0}', space=sflag, size = 0x4, scoped, tag = 'scoped memory for mee_forward.1']
    #allocation15 [shape = 'u8[1024]{0}', space=vmem, size = 0x400, scoped, tag = 'output window, operand 0, single buffered']
    %112 = vsyncpa [#allocation11], 0
    %113 = vsyncpa [#allocation14], 0
    %114 = vsyncpa [#allocation12], 0
    // Predicated region
    $region2: #{mee_forward.1} parent=1 // pred_check
      _
    $region3: #{mee_forward.1} parent=1 // pred_check_branch
      %116 = sbr.rel (0) target = $region5
    $region4: #{mee_forward.1} parent=1 // pred_region
      _
    $region5: #{mee_forward.1} parent=1 // pred_fallthru
      _
    // Predicated region
    $region6: #{mee_forward.1} parent=1 // pred_check
      _
    $region7: #{mee_forward.1} parent=1 // pred_check_branch
      %118 = sbr.rel (0) target = $region9
    $region8: #{mee_forward.1} parent=1 // pred_region
      %s120 = ssub.s32 16, 16
      %121 = vsyncadd [#allocation11], %s120
      %s123 = sshll.u32 [#allocation10], 4
      %s124 = int_to_ptr.vmem [resolvable:$true] %s123
      %126 = dma.hbm_to_vmem [thread:$0]  %s3, 16, %s124, [#allocation11]
    $region9: #{mee_forward.1} parent=1 // pred_fallthru
      _
    // Predicated region
    $region10: #{mee_forward.1} parent=1 // pred_check
      _
    $region11: #{mee_forward.1} parent=1 // pred_check_branch
      %128 = sbr.rel (0) target = $region13
    $region12: #{mee_forward.1} parent=1 // pred_region
      _
    $region13: #{mee_forward.1} parent=1 // pred_fallthru
      _
    // Predicated region
    $region14: #{mee_forward.1} parent=1 // pred_check
      _
    $region15: #{mee_forward.1} parent=1 // pred_check_branch
      %130 = sbr.rel (0) target = $region17
    $region16: #{mee_forward.1} parent=1 // pred_region
      _
    $region17: #{mee_forward.1} parent=1 // pred_fallthru
      _
    // Predicated region
    $region18: #{mee_forward.1} parent=1 // pred_check
      _
    $region19: #{mee_forward.1} parent=1 // pred_check_branch
      %132 = sbr.rel (0) target = $region21
    $region20: #{mee_forward.1} parent=1 // pred_region
      _
    $region21: #{mee_forward.1} parent=1 // pred_fallthru
      _
    // Predicated region
    $region22: #{mee_forward.1} parent=1 // pred_check
      _
    $region23: #{mee_forward.1} parent=1 // pred_check_branch
      %134 = sbr.rel (0) target = $region25
    $region24: #{mee_forward.1} parent=1 // pred_region
      %s136 = ssub.s32 64, 64
      %137 = vsyncadd [#allocation14], %s136
      %s139 = sshll.u32 [#allocation13], 4
      %s140 = int_to_ptr.vmem [resolvable:$true] %s139
      %142 = dma.hbm_to_vmem [thread:$0]  %s11, 64, %s140, [#allocation14]
    $region25: #{mee_forward.1} parent=1 // pred_fallthru
      _
    // Predicated region
    $region26: #{mee_forward.1} parent=1 // pred_check
      _
    $region27: #{mee_forward.1} parent=1 // pred_check_branch
      %144 = sbr.rel (0) target = $region29
    $region28: #{mee_forward.1} parent=1 // pred_region
      _
    $region29: #{mee_forward.1} parent=1 // pred_fallthru
      _
    // Predicated region
    $region30: #{mee_forward.1} parent=1 // pred_check
      _
    $region31: #{mee_forward.1} parent=1 // pred_check_branch
      %146 = sbr.rel (0) target = $region33
    $region32: #{mee_forward.1} parent=1 // pred_region
      _
    $region33: #{mee_forward.1} parent=1 // pred_fallthru
      _
    // Predicated region
    $region34: #{mee_forward.1} parent=1 // pred_check
      _
    $region35: #{mee_forward.1} parent=1 // pred_check_branch
      %148 = sbr.rel (0) target = $region37
    $region36: #{mee_forward.1} parent=1 // pred_region
      _
    $region37: #{mee_forward.1} parent=1 // pred_fallthru
      _
    // Predicated region
    $region38: #{mee_forward.1} parent=1 // pred_check
      _
    $region39: #{mee_forward.1} parent=1 // pred_check_branch
      %150 = sbr.rel (0) target = $region41
    $region40: #{mee_forward.1} parent=1 // pred_region
      _
    $region41: #{mee_forward.1} parent=1 // pred_fallthru
      _
    // Predicated region
    $region42: #{mee_forward.1} parent=1 // pred_check
      _
    $region43: #{mee_forward.1} parent=1 // pred_check_branch
      %152 = sbr.rel (0) target = $region45
    $region44: #{mee_forward.1} parent=1 // pred_region
      _
    $region45: #{mee_forward.1} parent=1 // pred_fallthru
      _
    // Predicated region
    $region46: #{mee_forward.1} parent=1 // pred_check
      _
    $region47: #{mee_forward.1} parent=1 // pred_check_branch
      %154 = sbr.rel (0) target = $region49
    $region48: #{mee_forward.1} parent=1 // pred_region
      _
    $region49: #{mee_forward.1} parent=1 // pred_fallthru
      _
    // Predicated region
    $region50: #{mee_forward.1} parent=1 // pred_check
      _
    $region51: #{mee_forward.1} parent=1 // pred_check_branch
      %156 = sbr.rel (0) target = $region53
    $region52: #{mee_forward.1} parent=1 // pred_region
      _
    $region53: #{mee_forward.1} parent=1 // pred_fallthru
      _
    // Predicated region
    $region54: #{mee_forward.1} parent=1 // pred_check
      _
    $region55: #{mee_forward.1} parent=1 // pred_check_branch
      %158 = sbr.rel (0) target = $region57
    $region56: #{mee_forward.1} parent=1 // pred_region
      _
    $region57: #{mee_forward.1} parent=1 // pred_fallthru
      _
    // Predicated region
    $region58: #{mee_forward.1} parent=1 // pred_check
      _
    $region59: #{mee_forward.1} parent=1 // pred_check_branch
      %160 = sbr.rel (0) target = $region61
    $region60: #{mee_forward.1} parent=1 // pred_region
      _
    $region61: #{mee_forward.1} parent=1 // pred_fallthru
      _
    // Predicated region
    $region62: #{mee_forward.1} parent=1 // pred_check
      _
    $region63: #{mee_forward.1} parent=1 // pred_check_branch
      %162 = sbr.rel (0) target = $region65
    $region64: #{mee_forward.1} parent=1 // pred_region
      _
    $region65: #{mee_forward.1} parent=1 // pred_fallthru
      _
    // Predicated region
    $region66: #{mee_forward.1} parent=1 // pred_check
      _
    $region67: #{mee_forward.1} parent=1 // pred_check_branch
      %164 = sbr.rel (0) target = $region69
    $region68: #{mee_forward.1} parent=1 // pred_region
      _
    $region69: #{mee_forward.1} parent=1 // pred_fallthru
      _
    // Predicated region
    $region70: #{mee_forward.1} parent=1 // pred_check
      _
    $region71: #{mee_forward.1} parent=1 // pred_check_branch
      %166 = sbr.rel (0) target = $region73
    $region72: #{mee_forward.1} parent=1 // pred_region
      _
    $region73: #{mee_forward.1} parent=1 // pred_fallthru
      _
    // Predicated region
    $region74: #{mee_forward.1} parent=1 // pred_check
      _
    $region75: #{mee_forward.1} parent=1 // pred_check_branch
      %168 = sbr.rel (0) target = $region77
    $region76: #{mee_forward.1} parent=1 // pred_region
      _
    $region77: #{mee_forward.1} parent=1 // pred_fallthru
      _
    // Predicated region
    $region78: #{mee_forward.1} parent=1 // pred_check
      _
    $region79: #{mee_forward.1} parent=1 // pred_check_branch
      %170 = sbr.rel (0) target = $region81
    $region80: #{mee_forward.1} parent=1 // pred_region
      _
    $region81: #{mee_forward.1} parent=1 // pred_fallthru
      _
    // Predicated region
    $region82: #{mee_forward.1} parent=1 // pred_check
      _
    $region83: #{mee_forward.1} parent=1 // pred_check_branch
      %172 = sbr.rel (0) target = $region85
    $region84: #{mee_forward.1} parent=1 // pred_region
      _
    $region85: #{mee_forward.1} parent=1 // pred_fallthru
      _
    // Predicated region
    $region86: #{mee_forward.1} parent=1 // pred_check
      _
    $region87: #{mee_forward.1} parent=1 // pred_check_branch
      %174 = sbr.rel (0) target = $region89
    $region88: #{mee_forward.1} parent=1 // pred_region
      _
    $region89: #{mee_forward.1} parent=1 // pred_fallthru
      _
    // Predicated region
    $region90: #{mee_forward.1} parent=1 // pred_check
      _
    $region91: #{mee_forward.1} parent=1 // pred_check_branch
      %176 = sbr.rel (0) target = $region93
    $region92: #{mee_forward.1} parent=1 // pred_region
      _
    $region93: #{mee_forward.1} parent=1 // pred_fallthru
      _
    // Predicated region
    $region94: #{mee_forward.1} parent=1 // pred_check
      _
    $region95: #{mee_forward.1} parent=1 // pred_check_branch
      %178 = sbr.rel (0) target = $region97
    $region96: #{mee_forward.1} parent=1 // pred_region
      _
    $region97: #{mee_forward.1} parent=1 // pred_fallthru
      _
    // Predicated region
    $region98: #{mee_forward.1} parent=1 // pred_check
      _
    $region99: #{mee_forward.1} parent=1 // pred_check_branch
      %180 = sbr.rel (0) target = $region101
    $region100: #{mee_forward.1} parent=1 // pred_region
      _
    $region101: #{mee_forward.1} parent=1 // pred_fallthru
      _
    // Predicated region
    $region102: #{mee_forward.1} parent=1 // pred_check
      _
    $region103: #{mee_forward.1} parent=1 // pred_check_branch
      %182 = sbr.rel (0) target = $region105
    $region104: #{mee_forward.1} parent=1 // pred_region
      _
    $region105: #{mee_forward.1} parent=1 // pred_fallthru
      _
    // Predicated region
    $region106: #{mee_forward.1} parent=1 // pred_check
      _
    $region107: #{mee_forward.1} parent=1 // pred_check_branch
      %184 = sbr.rel (0) target = $region109
    $region108: #{mee_forward.1} parent=1 // pred_region
      _
    $region109: #{mee_forward.1} parent=1 // pred_fallthru
      _
    // Predicated region
    $region110: #{mee_forward.1} parent=1 // pred_check
      _
    $region111: #{mee_forward.1} parent=1 // pred_check_branch
      %186 = sbr.rel (0) target = $region113
    $region112: #{mee_forward.1} parent=1 // pred_region
      _
    $region113: #{mee_forward.1} parent=1 // pred_fallthru
      _
    // Predicated region
    $region114: #{mee_forward.1} parent=1 // pred_check
      _
    $region115: #{mee_forward.1} parent=1 // pred_check_branch
      %188 = sbr.rel (0) target = $region117
    $region116: #{mee_forward.1} parent=1 // pred_region
      _
    $region117: #{mee_forward.1} parent=1 // pred_fallthru
      _
    // Predicated region
    $region118: #{mee_forward.1} parent=1 // pred_check
      _
    $region119: #{mee_forward.1} parent=1 // pred_check_branch
      %190 = sbr.rel (0) target = $region121
    $region120: #{mee_forward.1} parent=1 // pred_region
      _
    $region121: #{mee_forward.1} parent=1 // pred_fallthru
      _
    // Predicated region
    $region122: #{mee_forward.1} parent=1 // pred_check
      _
    $region123: #{mee_forward.1} parent=1 // pred_check_branch
      %192 = sbr.rel (0) target = $region125
    $region124: #{mee_forward.1} parent=1 // pred_region
      _
    $region125: #{mee_forward.1} parent=1 // pred_fallthru
      _
    // Predicated region
    $region126: #{mee_forward.1} parent=1 // pred_check
      _
    $region127: #{mee_forward.1} parent=1 // pred_check_branch
      %194 = sbr.rel (0) target = $region129
    $region128: #{mee_forward.1} parent=1 // pred_region
      _
    $region129: #{mee_forward.1} parent=1 // pred_fallthru
      _
    // Predicated region
    $region130: #{mee_forward.1} parent=1 // pred_check
      _
    $region131: #{mee_forward.1} parent=1 // pred_check_branch
      %196 = sbr.rel (0) target = $region133
    $region132: #{mee_forward.1} parent=1 // pred_region
      _
    $region133: #{mee_forward.1} parent=1 // pred_fallthru
      _
    // Predicated region
    $region134: #{mee_forward.1} parent=1 // pred_check
      _
    $region135: #{mee_forward.1} parent=1 // pred_check_branch
      %198 = sbr.rel (0) target = $region137
    $region136: #{mee_forward.1} parent=1 // pred_region
      _
    $region137: #{mee_forward.1} parent=1 // pred_fallthru
      _
    // Predicated region
    $region138: #{mee_forward.1} parent=1 // pred_check
      _
    $region139: #{mee_forward.1} parent=1 // pred_check_branch
      %200 = sbr.rel (0) target = $region141
    $region140: #{mee_forward.1} parent=1 // pred_region
      _
    $region141: #{mee_forward.1} parent=1 // pred_fallthru
      _
    // Predicated region
    $region142: #{mee_forward.1} parent=1 // pred_check
      _
    $region143: #{mee_forward.1} parent=1 // pred_check_branch
      %202 = sbr.rel (0) target = $region145
    $region144: #{mee_forward.1} parent=1 // pred_region
      _
    $region145: #{mee_forward.1} parent=1 // pred_fallthru
      _
    // Predicated region
    $region146: #{mee_forward.1} parent=1 // pred_check
      _
    $region147: #{mee_forward.1} parent=1 // pred_check_branch
      %204 = sbr.rel (0) target = $region149
    $region148: #{mee_forward.1} parent=1 // pred_region
      _
    $region149: #{mee_forward.1} parent=1 // pred_fallthru
      _
    // Predicated region
    $region150: #{mee_forward.1} parent=1 // pred_check
      _
    $region151: #{mee_forward.1} parent=1 // pred_check_branch
      %206 = sbr.rel (0) target = $region153
    $region152: #{mee_forward.1} parent=1 // pred_region
      _
    $region153: #{mee_forward.1} parent=1 // pred_fallthru
      _
    // Predicated region
    $region154: #{mee_forward.1} parent=1 // pred_check
      _
    $region155: #{mee_forward.1} parent=1 // pred_check_branch
      %208 = sbr.rel (0) target = $region157
    $region156: #{mee_forward.1} parent=1 // pred_region
      _
    $region157: #{mee_forward.1} parent=1 // pred_fallthru
      _
    // Predicated region
    $region158: #{mee_forward.1} parent=1 // pred_check
      _
    $region159: #{mee_forward.1} parent=1 // pred_check_branch
      %210 = sbr.rel (0) target = $region161
    $region160: #{mee_forward.1} parent=1 // pred_region
      _
    $region161: #{mee_forward.1} parent=1 // pred_fallthru
      _
    // Predicated region
    $region162: #{mee_forward.1} parent=1 // pred_check
      _
    $region163: #{mee_forward.1} parent=1 // pred_check_branch
      %212 = sbr.rel (0) target = $region165
    $region164: #{mee_forward.1} parent=1 // pred_region
      _
    $region165: #{mee_forward.1} parent=1 // pred_fallthru
      _
    // Predicated region
    $region166: #{mee_forward.1} parent=1 // pred_check
      _
    $region167: #{mee_forward.1} parent=1 // pred_check_branch
      %214 = sbr.rel (0) target = $region169
    $region168: #{mee_forward.1} parent=1 // pred_region
      _
    $region169: #{mee_forward.1} parent=1 // pred_fallthru
      _
    // Predicated region
    $region170: #{mee_forward.1} parent=1 // pred_check
      _
    $region171: #{mee_forward.1} parent=1 // pred_check_branch
      %216 = sbr.rel (0) target = $region173
    $region172: #{mee_forward.1} parent=1 // pred_region
      _
    $region173: #{mee_forward.1} parent=1 // pred_fallthru
      _
    // Predicated region
    $region174: #{mee_forward.1} parent=1 // pred_check
      _
    $region175: #{mee_forward.1} parent=1 // pred_check_branch
      %218 = sbr.rel (0) target = $region177
    $region176: #{mee_forward.1} parent=1 // pred_region
      _
    $region177: #{mee_forward.1} parent=1 // pred_fallthru
      _
    // Predicated region
    $region178: #{mee_forward.1} parent=1 // pred_check
      _
    $region179: #{mee_forward.1} parent=1 // pred_check_branch
      %220 = sbr.rel (0) target = $region181
    $region180: #{mee_forward.1} parent=1 // pred_region
      _
    $region181: #{mee_forward.1} parent=1 // pred_fallthru
      _
    // Predicated region
    $region182: #{mee_forward.1} parent=1 // pred_check
      _
    $region183: #{mee_forward.1} parent=1 // pred_check_branch
      %222 = sbr.rel (0) target = $region185
    $region184: #{mee_forward.1} parent=1 // pred_region
      _
    $region185: #{mee_forward.1} parent=1 // pred_fallthru
      _
    // Predicated region
    $region186: #{mee_forward.1} parent=1 // pred_check
      _
    $region187: #{mee_forward.1} parent=1 // pred_check_branch
      %224 = sbr.rel (0) target = $region189
    $region188: #{mee_forward.1} parent=1 // pred_region
      _
    $region189: #{mee_forward.1} parent=1 // pred_fallthru
      _
    // Predicated region
    $region190: #{mee_forward.1} parent=1 // pred_check
      _
    $region191: #{mee_forward.1} parent=1 // pred_check_branch
      %226 = sbr.rel (0) target = $region193
    $region192: #{mee_forward.1} parent=1 // pred_region
      %227 = dma.done [#allocation11], 16
    $region193: #{mee_forward.1} parent=1 // pred_fallthru
      _
    // Predicated region
    $region194: #{mee_forward.1} parent=1 // pred_check
      _
    $region195: #{mee_forward.1} parent=1 // pred_check_branch
      %229 = sbr.rel (0) target = $region197
    $region196: #{mee_forward.1} parent=1 // pred_region
      %230 = dma.done [#allocation14], 64
    $region197: #{mee_forward.1} parent=1 // pred_fallthru
      _
    %v231 = vld [vmem:[%s1] sm:$0x1]
    %v232 = vld [vmem:[#allocation10] sm:$0x1]
    %v233 = vld [vmem:[#allocation4] sm:$0x1]
    %v234 = vld [vmem:[#allocation5] sm:$0x1]
    %v235 = vld [vmem:[#allocation6] sm:$0x1]
    %v236 = vld [vmem:[#allocation13] sm:$0xf]
    %v237 = vld [vmem:[%s13] sm:$0xf]
    %v238 = vld [vmem:[%s15] sm:$0xf]
    %v239 = vld [vmem:[%s17] sm:$0xf]
    %v240 = vld [vmem:[%s19] sm:$0xff]
    %v241 = vld [vmem:[%s19 + $0x8] sm:$0xff]
    %v242 = vld [vmem:[%s19 + $0x10] sm:$0xff]
    %v243 = vld [vmem:[%s19 + $0x18] sm:$0xff]
    %v244 = vld [vmem:[%s19 + $0x20] sm:$0xff]
    %v245 = vld [vmem:[%s19 + $0x28] sm:$0xff]
    %v246 = vld [vmem:[%s19 + $0x30] sm:$0xff]
    %v247 = vld [vmem:[%s19 + $0x38] sm:$0xff]
    %v248 = vld [vmem:[%s19 + $0x40] sm:$0xff]
    %v249 = vld [vmem:[%s19 + $0x48] sm:$0xff]
    %v250 = vld [vmem:[%s19 + $0x50] sm:$0xff]
    %v251 = vld [vmem:[%s19 + $0x58] sm:$0xff]
    %v252 = vld [vmem:[%s19 + $0x60] sm:$0xff]
    %v253 = vld [vmem:[%s19 + $0x68] sm:$0xff]
    %v254 = vld [vmem:[%s19 + $0x70] sm:$0xff]
    %v255 = vld [vmem:[%s19 + $0x78] sm:$0xff]
    %v256 = vld [vmem:[%s19 + $0x80] sm:$0xff]
    %v257 = vld [vmem:[%s19 + $0x88] sm:$0xff]
    %v258 = vld [vmem:[%s19 + $0x90] sm:$0xff]
    %v259 = vld [vmem:[%s19 + $0x98] sm:$0xff]
    %v260 = vld [vmem:[%s19 + $0xa0] sm:$0xff]
    %v261 = vld [vmem:[%s19 + $0xa8] sm:$0xff]
    %v262 = vld [vmem:[%s19 + $0xb0] sm:$0xff]
    %v263 = vld [vmem:[%s19 + $0xb8] sm:$0xff]
    %v264 = vld [vmem:[%s19 + $0xc0] sm:$0xff]
    %v265 = vld [vmem:[%s19 + $0xc8] sm:$0xff]
    %v266 = vld [vmem:[%s19 + $0xd0] sm:$0xff]
    %v267 = vld [vmem:[%s19 + $0xd8] sm:$0xff]
    %v268 = vld [vmem:[%s19 + $0xe0] sm:$0xff]
    %v269 = vld [vmem:[%s19 + $0xe8] sm:$0xff]
    %v270 = vld [vmem:[%s19 + $0xf0] sm:$0xff]
    %v271 = vld [vmem:[%s19 + $0xf8] sm:$0xff]
    %272 = vmatprep.subr.mxu0 %v241
    %273 = vmatpush1.msra.mxu0 %v240
    %274 = vmatprep.subr.mxu0 %v243
    %275 = vmatpush1.msra.mxu0 %v242
    %276 = vmatprep.subr.mxu0 %v245
    %277 = vmatpush1.msra.mxu0 %v244
    %278 = vmatprep.subr.mxu0 %v247
    %279 = vmatpush1.msra.mxu0 %v246
    %280 = vmatprep.subr.mxu0 %v249
    %281 = vmatpush1.msra.mxu0 %v248
    %282 = vmatprep.subr.mxu0 %v251
    %283 = vmatpush1.msra.mxu0 %v250
    %284 = vmatprep.subr.mxu0 %v253
    %285 = vmatpush1.msra.mxu0 %v252
    %286 = vmatprep.subr.mxu0 %v255
    %287 = vmatpush1.msra.mxu0 %v254
    %288 = vmatprep.subr.mxu0 %v257
    %289 = vmatpush1.msra.mxu0 %v256
    %290 = vmatprep.subr.mxu0 %v259
    %291 = vmatpush1.msra.mxu0 %v258
    %292 = vmatprep.subr.mxu0 %v261
    %293 = vmatpush1.msra.mxu0 %v260
    %294 = vmatprep.subr.mxu0 %v263
    %295 = vmatpush1.msra.mxu0 %v262
    %296 = vmatprep.subr.mxu0 %v265
    %297 = vmatpush1.msra.mxu0 %v264
    %298 = vmatprep.subr.mxu0 %v267
    %299 = vmatpush1.msra.mxu0 %v266
    %300 = vmatprep.subr.mxu0 %v269
    %301 = vmatpush1.msra.mxu0 %v268
    %302 = vmatprep.subr.mxu0 %v271
    %303 = vmatpush1.msra.mxu0 %v270
    %304 = vmatprep.subr.mxu0 0.0
    %305 = vmatpush1.msra.mxu0 0.0
    %306 = vmatprep.subr.mxu0 0.0
    %307 = vmatpush1.msra.mxu0 0.0
    %308 = vmatprep.subr.mxu0 0.0
    %309 = vmatpush1.msra.mxu0 0.0
    %310 = vmatprep.subr.mxu0 0.0
    %311 = vmatpush1.msra.mxu0 0.0
    %312 = vmatprep.subr.mxu0 0.0
    %313 = vmatpush1.msra.mxu0 0.0
    %314 = vmatprep.subr.mxu0 0.0
    %315 = vmatpush1.msra.mxu0 0.0
    %316 = vmatprep.subr.mxu0 0.0
    %317 = vmatpush1.msra.mxu0 0.0
    %318 = vmatprep.subr.mxu0 0.0
    %319 = vmatpush1.msra.mxu0 0.0
    %320 = vmatprep.subr.mxu0 0.0
    %321 = vmatpush1.msra.mxu0 0.0
    %322 = vmatprep.subr.mxu0 0.0
    %323 = vmatpush1.msra.mxu0 0.0
    %324 = vmatprep.subr.mxu0 0.0
    %325 = vmatpush1.msra.mxu0 0.0
    %326 = vmatprep.subr.mxu0 0.0
    %327 = vmatpush1.msra.mxu0 0.0
    %328 = vmatprep.subr.mxu0 0.0
    %329 = vmatpush1.msra.mxu0 0.0
    %330 = vmatprep.subr.mxu0 0.0
    %331 = vmatpush1.msra.mxu0 0.0
    %332 = vmatprep.subr.mxu0 0.0
    %333 = vmatpush1.msra.mxu0 0.0
    %334 = vmatprep.subr.mxu0 0.0
    %335 = vmatpush1.msra.mxu0 0.0
    %336 = vmatprep.mubr.f32.mxu0 0.0
    %337 = vmatmul.mubr.f32.gmra.mrb[0].mxu0 %v231
    %v338 = vpop.f32.mrb[0].mxu0
    %v339 = vadd.f32 0.0, %v338
    %v340 = vpop.f32.mrb[0].mxu0
    %v341 = vadd.f32 0.0, %v340
    %342 = vdwg.mxu0
    %vm343 = vcmask 516096
    %344 = vst.msk [vmem:[#allocation2] sm:$0x1] %vm343, %v339
    %346 = vrot.lane.b32.xlu0 %v339, 127
    %v347 = vpop.permute.xlu0 %346
    %349 = vst.msk [vmem:[#allocation2 + $0x1] sm:$0x1] %vm343, %v347
    %350 = vrot.lane.b32.xlu0 %v339, 126
    %v351 = vpop.permute.xlu0 %350
    %353 = vst.msk [vmem:[#allocation2 + $0x2] sm:$0x1] %vm343, %v351
    %354 = vrot.lane.b32.xlu0 %v339, 125
    %v355 = vpop.permute.xlu0 %354
    %357 = vst.msk [vmem:[#allocation2 + $0x3] sm:$0x1] %vm343, %v355
    %358 = vrot.lane.b32.xlu0 %v339, 124
    %v359 = vpop.permute.xlu0 %358
    %361 = vst.msk [vmem:[#allocation2 + $0x4] sm:$0x1] %vm343, %v359
    %363 = vrot.lane.b32.xlu0 %v341, 124
    %v364 = vpop.permute.xlu0 %363
    %vm365 = vcmask 1014784
    %v366 = vsel %vm365, %v359, %v364
    %vm368 = vcmask 1040896
    %369 = vst.msk [vmem:[#allocation2] sm:$0x1] %vm368, %v366
    %370 = vrot.lane.b32.xlu0 %v339, 123
    %v371 = vpop.permute.xlu0 %370
    %372 = vrot.lane.b32.xlu0 %v341, 123
    %v373 = vpop.permute.xlu0 %372
    %vm374 = vcmask 1006592
    %v375 = vsel %vm374, %v371, %v373
    %377 = vst.msk [vmem:[#allocation2 + $0x1] sm:$0x1] %vm368, %v375
    %378 = vrot.lane.b32.xlu0 %v339, 122
    %v379 = vpop.permute.xlu0 %378
    %380 = vrot.lane.b32.xlu0 %v341, 122
    %v381 = vpop.permute.xlu0 %380
    %vm382 = vcmask 998400
    %v383 = vsel %vm382, %v379, %v381
    %385 = vst.msk [vmem:[#allocation2 + $0x2] sm:$0x1] %vm368, %v383
    %386 = vrot.lane.b32.xlu0 %v339, 121
    %v387 = vpop.permute.xlu0 %386
    %388 = vrot.lane.b32.xlu0 %v341, 121
    %v389 = vpop.permute.xlu0 %388
    %vm390 = vcmask 990208
    %v391 = vsel %vm390, %v387, %v389
    %393 = vst.msk [vmem:[#allocation2 + $0x3] sm:$0x1] %vm368, %v391
    %394 = vrot.lane.b32.xlu0 %v339, 120
    %v395 = vpop.permute.xlu0 %394
    %396 = vrot.lane.b32.xlu0 %v341, 120
    %v397 = vpop.permute.xlu0 %396
    %vm398 = vcmask 982016
    %v399 = vsel %vm398, %v395, %v397
    %401 = vst.msk [vmem:[#allocation2 + $0x4] sm:$0x1] %vm368, %v399
    %v402 = vld [vmem:[#allocation2] sm:$0x1f]
    %404 = vset.pattern.permute.xlu0 0
    %405 = vperm.xlu0 %404, %v233
    %v406 = vpop.permute.xlu0 %405
    %v408 = vlaneseq
    %v409 = vshrl.u32 %v408, 7
    %v410 = vsub.s32 0, %v409
    %v411 = vrot.slane %v406, %v410
    %vm412 = vcmask 39936
    %v414 = vsel %vm412, %v232, 0
    %vm416 = vcmask 1044480
    %v418 = vsel %vm416, %v402, 0
    %420 = vmatprep.subr.mxu0 0.0
    %421 = vmatpush1.msra.mxu0 %v418
    %422 = vmatprep.subr.mxu0 0.0
    %423 = vmatpush1.msra.mxu0 0.0
    %424 = vmatprep.subr.mxu0 0.0
    %425 = vmatpush1.msra.mxu0 0.0
    %426 = vmatprep.subr.mxu0 0.0
    %427 = vmatpush1.msra.mxu0 0.0
    %428 = vmatprep.subr.mxu0 0.0
    %429 = vmatpush1.msra.mxu0 0.0
    %430 = vmatprep.subr.mxu0 0.0
    %431 = vmatpush1.msra.mxu0 0.0
    %432 = vmatprep.subr.mxu0 0.0
    %433 = vmatpush1.msra.mxu0 0.0
    %434 = vmatprep.subr.mxu0 0.0
    %435 = vmatpush1.msra.mxu0 0.0
    %436 = vmatprep.subr.mxu0 0.0
    %437 = vmatpush1.msra.mxu0 0.0
    %438 = vmatprep.subr.mxu0 0.0
    %439 = vmatpush1.msra.mxu0 0.0
    %440 = vmatprep.subr.mxu0 0.0
    %441 = vmatpush1.msra.mxu0 0.0
    %442 = vmatprep.subr.mxu0 0.0
    %443 = vmatpush1.msra.mxu0 0.0
    %444 = vmatprep.subr.mxu0 0.0
    %445 = vmatpush1.msra.mxu0 0.0
    %446 = vmatprep.subr.mxu0 0.0
    %447 = vmatpush1.msra.mxu0 0.0
    %448 = vmatprep.subr.mxu0 0.0
    %449 = vmatpush1.msra.mxu0 0.0
    %450 = vmatprep.subr.mxu0 0.0
    %451 = vmatpush1.msra.mxu0 0.0
    %452 = vmatprep.subr.mxu0 0.0
    %453 = vmatpush1.msra.mxu0 0.0
    %454 = vmatprep.subr.mxu0 0.0
    %455 = vmatpush1.msra.mxu0 0.0
    %456 = vmatprep.subr.mxu0 0.0
    %457 = vmatpush1.msra.mxu0 0.0
    %458 = vmatprep.subr.mxu0 0.0
    %459 = vmatpush1.msra.mxu0 0.0
    %460 = vmatprep.subr.mxu0 0.0
    %461 = vmatpush1.msra.mxu0 0.0
    %462 = vmatprep.subr.mxu0 0.0
    %463 = vmatpush1.msra.mxu0 0.0
    %464 = vmatprep.subr.mxu0 0.0
    %465 = vmatpush1.msra.mxu0 0.0
    %466 = vmatprep.subr.mxu0 0.0
    %467 = vmatpush1.msra.mxu0 0.0
    %468 = vmatprep.subr.mxu0 0.0
    %469 = vmatpush1.msra.mxu0 0.0
    %470 = vmatprep.subr.mxu0 0.0
    %471 = vmatpush1.msra.mxu0 0.0
    %472 = vmatprep.subr.mxu0 0.0
    %473 = vmatpush1.msra.mxu0 0.0
    %474 = vmatprep.subr.mxu0 0.0
    %475 = vmatpush1.msra.mxu0 0.0
    %476 = vmatprep.subr.mxu0 0.0
    %477 = vmatpush1.msra.mxu0 0.0
    %478 = vmatprep.subr.mxu0 0.0
    %479 = vmatpush1.msra.mxu0 0.0
    %480 = vmatprep.subr.mxu0 0.0
    %481 = vmatpush1.msra.mxu0 0.0
    %482 = vmatprep.subr.mxu0 0.0
    %483 = vmatpush1.msra.mxu0 0.0
    %484 = vmatprep.mubr.f32.mxu0 0.0
    %485 = vmatmul.mubr.f32.gmra.mrb[0].mxu0 %v414
    %v486 = vpop.f32.mrb[0].mxu0
    %v487 = vadd.f32 %v411, %v486
    %v488 = vpop.f32.mrb[0].mxu0
    %489 = vdwg.mxu0
    %vm490 = vcmask 1040384
    %v491 = vsel %vm490, %v487, 0.0
    %492 = vadd.xlane.f32.xlu0 %v491
    %v493 = vpop.xlane.xlu0 %492
    %v494 = vmul.f32 %v493, 0.0078125
    %v495 = vsub.f32 %v487, %v494
    %v496 = vmul.f32 %v495, %v495
    %v497 = vsel %vm490, %v496, 0.0
    %498 = vadd.xlane.f32.xlu0 %v497
    %v499 = vpop.xlane.xlu0 %498
    %v500 = vmul.f32 %v499, 0.0078125
    %v501 = vadd.f32 %v500, 1e-05
    %v502 = vrsqrt.pop %v501
    %v503 = vmul.f32 %v495, %v502
    %505 = vset.pattern.permute.xlu0 0
    %506 = vperm.xlu0 %505, %v234
    %v507 = vpop.permute.xlu0 %506
    %v509 = vlaneseq
    %v510 = vshrl.u32 %v509, 7
    %v511 = vsub.s32 0, %v510
    %v512 = vrot.slane %v507, %v511
    %v513 = vmul.f32 %v503, %v512
    %515 = vset.pattern.permute.xlu0 0
    %516 = vperm.xlu0 %515, %v235
    %v517 = vpop.permute.xlu0 %516
    %v519 = vlaneseq
    %v520 = vshrl.u32 %v519, 7
    %v521 = vsub.s32 0, %v520
    %v522 = vrot.slane %v517, %v521
    %v523 = vadd.f32 %v513, %v522
    %v524 = vmax.f32 %v523, 0.0
    %v525 = vadd.f32 %v524, %v231
    %526 = vmatprep.subr.mxu0 %v241
    %527 = vmatpush1.msra.mxu0 %v240
    %528 = vmatprep.subr.mxu0 %v243
    %529 = vmatpush1.msra.mxu0 %v242
    %530 = vmatprep.subr.mxu0 %v245
    %531 = vmatpush1.msra.mxu0 %v244
    %532 = vmatprep.subr.mxu0 %v247
    %533 = vmatpush1.msra.mxu0 %v246
    %534 = vmatprep.subr.mxu0 %v249
    %535 = vmatpush1.msra.mxu0 %v248
    %536 = vmatprep.subr.mxu0 %v251
    %537 = vmatpush1.msra.mxu0 %v250
    %538 = vmatprep.subr.mxu0 %v253
    %539 = vmatpush1.msra.mxu0 %v252
    %540 = vmatprep.subr.mxu0 %v255
    %541 = vmatpush1.msra.mxu0 %v254
    %542 = vmatprep.subr.mxu0 %v257
    %543 = vmatpush1.msra.mxu0 %v256
    %544 = vmatprep.subr.mxu0 %v259
    %545 = vmatpush1.msra.mxu0 %v258
    %546 = vmatprep.subr.mxu0 %v261
    %547 = vmatpush1.msra.mxu0 %v260
    %548 = vmatprep.subr.mxu0 %v263
    %549 = vmatpush1.msra.mxu0 %v262
    %550 = vmatprep.subr.mxu0 %v265
    %551 = vmatpush1.msra.mxu0 %v264
    %552 = vmatprep.subr.mxu0 %v267
    %553 = vmatpush1.msra.mxu0 %v266
    %554 = vmatprep.subr.mxu0 %v269
    %555 = vmatpush1.msra.mxu0 %v268
    %556 = vmatprep.subr.mxu0 %v271
    %557 = vmatpush1.msra.mxu0 %v270
    %558 = vmatprep.subr.mxu0 0.0
    %559 = vmatpush1.msra.mxu0 0.0
    %560 = vmatprep.subr.mxu0 0.0
    %561 = vmatpush1.msra.mxu0 0.0
    %562 = vmatprep.subr.mxu0 0.0
    %563 = vmatpush1.msra.mxu0 0.0
    %564 = vmatprep.subr.mxu0 0.0
    %565 = vmatpush1.msra.mxu0 0.0
    %566 = vmatprep.subr.mxu0 0.0
    %567 = vmatpush1.msra.mxu0 0.0
    %568 = vmatprep.subr.mxu0 0.0
    %569 = vmatpush1.msra.mxu0 0.0
    %570 = vmatprep.subr.mxu0 0.0
    %571 = vmatpush1.msra.mxu0 0.0
    %572 = vmatprep.subr.mxu0 0.0
    %573 = vmatpush1.msra.mxu0 0.0
    %574 = vmatprep.subr.mxu0 0.0
    %575 = vmatpush1.msra.mxu0 0.0
    %576 = vmatprep.subr.mxu0 0.0
    %577 = vmatpush1.msra.mxu0 0.0
    %578 = vmatprep.subr.mxu0 0.0
    %579 = vmatpush1.msra.mxu0 0.0
    %580 = vmatprep.subr.mxu0 0.0
    %581 = vmatpush1.msra.mxu0 0.0
    %582 = vmatprep.subr.mxu0 0.0
    %583 = vmatpush1.msra.mxu0 0.0
    %584 = vmatprep.subr.mxu0 0.0
    %585 = vmatpush1.msra.mxu0 0.0
    %586 = vmatprep.subr.mxu0 0.0
    %587 = vmatpush1.msra.mxu0 0.0
    %588 = vmatprep.subr.mxu0 0.0
    %589 = vmatpush1.msra.mxu0 0.0
    %590 = vmatprep.mubr.f32.mxu0 0.0
    %591 = vmatmul.mubr.f32.gmra.mrb[0].mxu0 %v525
    %v592 = vpop.f32.mrb[0].mxu0
    %v593 = vadd.f32 0.0, %v592
    %v594 = vpop.f32.mrb[0].mxu0
    %v595 = vadd.f32 0.0, %v594
    %596 = vdwg.mxu0
    %597 = vst.msk [vmem:[#allocation2] sm:$0x1] %vm343, %v593
    %599 = vrot.lane.b32.xlu0 %v593, 127
    %v600 = vpop.permute.xlu0 %599
    %602 = vst.msk [vmem:[#allocation2 + $0x1] sm:$0x1] %vm343, %v600
    %603 = vrot.lane.b32.xlu0 %v593, 126
    %v604 = vpop.permute.xlu0 %603
    %606 = vst.msk [vmem:[#allocation2 + $0x2] sm:$0x1] %vm343, %v604
    %607 = vrot.lane.b32.xlu0 %v593, 125
    %v608 = vpop.permute.xlu0 %607
    %610 = vst.msk [vmem:[#allocation2 + $0x3] sm:$0x1] %vm343, %v608
    %611 = vrot.lane.b32.xlu0 %v593, 124
    %v612 = vpop.permute.xlu0 %611
    %614 = vst.msk [vmem:[#allocation2 + $0x4] sm:$0x1] %vm343, %v612
    %616 = vrot.lane.b32.xlu0 %v595, 124
    %v617 = vpop.permute.xlu0 %616
    %v618 = vsel %vm365, %v612, %v617
    %620 = vst.msk [vmem:[#allocation2] sm:$0x1] %vm368, %v618
    %621 = vrot.lane.b32.xlu0 %v593, 123
    %v622 = vpop.permute.xlu0 %621
    %623 = vrot.lane.b32.xlu0 %v595, 123
    %v624 = vpop.permute.xlu0 %623
    %v625 = vsel %vm374, %v622, %v624
    %627 = vst.msk [vmem:[#allocation2 + $0x1] sm:$0x1] %vm368, %v625
    %628 = vrot.lane.b32.xlu0 %v593, 122
    %v629 = vpop.permute.xlu0 %628
    %630 = vrot.lane.b32.xlu0 %v595, 122
    %v631 = vpop.permute.xlu0 %630
    %v632 = vsel %vm382, %v629, %v631
    %634 = vst.msk [vmem:[#allocation2 + $0x2] sm:$0x1] %vm368, %v632
    %635 = vrot.lane.b32.xlu0 %v593, 121
    %v636 = vpop.permute.xlu0 %635
    %637 = vrot.lane.b32.xlu0 %v595, 121
    %v638 = vpop.permute.xlu0 %637
    %v639 = vsel %vm390, %v636, %v638
    %641 = vst.msk [vmem:[#allocation2 + $0x3] sm:$0x1] %vm368, %v639
    %642 = vrot.lane.b32.xlu0 %v593, 120
    %v643 = vpop.permute.xlu0 %642
    %644 = vrot.lane.b32.xlu0 %v595, 120
    %v645 = vpop.permute.xlu0 %644
    %v646 = vsel %vm398, %v643, %v645
    %648 = vst.msk [vmem:[#allocation2 + $0x4] sm:$0x1] %vm368, %v646
    %v649 = vld [vmem:[#allocation2] sm:$0x1f]
    %651 = vset.pattern.permute.xlu0 0
    %652 = vperm.xlu0 %651, %v237
    %v653 = vpop.permute.xlu0 %652
    %v656 = vsel %vm412, %v236, 0
    %v659 = vsel %vm416, %v649, 0
    %661 = vmatprep.subr.mxu0 0.0
    %662 = vmatpush1.msra.mxu0 %v659
    %663 = vmatprep.subr.mxu0 0.0
    %664 = vmatpush1.msra.mxu0 0.0
    %665 = vmatprep.subr.mxu0 0.0
    %666 = vmatpush1.msra.mxu0 0.0
    %667 = vmatprep.subr.mxu0 0.0
    %668 = vmatpush1.msra.mxu0 0.0
    %669 = vmatprep.subr.mxu0 0.0
    %670 = vmatpush1.msra.mxu0 0.0
    %671 = vmatprep.subr.mxu0 0.0
    %672 = vmatpush1.msra.mxu0 0.0
    %673 = vmatprep.subr.mxu0 0.0
    %674 = vmatpush1.msra.mxu0 0.0
    %675 = vmatprep.subr.mxu0 0.0
    %676 = vmatpush1.msra.mxu0 0.0
    %677 = vmatprep.subr.mxu0 0.0
    %678 = vmatpush1.msra.mxu0 0.0
    %679 = vmatprep.subr.mxu0 0.0
    %680 = vmatpush1.msra.mxu0 0.0
    %681 = vmatprep.subr.mxu0 0.0
    %682 = vmatpush1.msra.mxu0 0.0
    %683 = vmatprep.subr.mxu0 0.0
    %684 = vmatpush1.msra.mxu0 0.0
    %685 = vmatprep.subr.mxu0 0.0
    %686 = vmatpush1.msra.mxu0 0.0
    %687 = vmatprep.subr.mxu0 0.0
    %688 = vmatpush1.msra.mxu0 0.0
    %689 = vmatprep.subr.mxu0 0.0
    %690 = vmatpush1.msra.mxu0 0.0
    %691 = vmatprep.subr.mxu0 0.0
    %692 = vmatpush1.msra.mxu0 0.0
    %693 = vmatprep.subr.mxu0 0.0
    %694 = vmatpush1.msra.mxu0 0.0
    %695 = vmatprep.subr.mxu0 0.0
    %696 = vmatpush1.msra.mxu0 0.0
    %697 = vmatprep.subr.mxu0 0.0
    %698 = vmatpush1.msra.mxu0 0.0
    %699 = vmatprep.subr.mxu0 0.0
    %700 = vmatpush1.msra.mxu0 0.0
    %701 = vmatprep.subr.mxu0 0.0
    %702 = vmatpush1.msra.mxu0 0.0
    %703 = vmatprep.subr.mxu0 0.0
    %704 = vmatpush1.msra.mxu0 0.0
    %705 = vmatprep.subr.mxu0 0.0
    %706 = vmatpush1.msra.mxu0 0.0
    %707 = vmatprep.subr.mxu0 0.0
    %708 = vmatpush1.msra.mxu0 0.0
    %709 = vmatprep.subr.mxu0 0.0
    %710 = vmatpush1.msra.mxu0 0.0
    %711 = vmatprep.subr.mxu0 0.0
    %712 = vmatpush1.msra.mxu0 0.0
    %713 = vmatprep.subr.mxu0 0.0
    %714 = vmatpush1.msra.mxu0 0.0
    %715 = vmatprep.subr.mxu0 0.0
    %716 = vmatpush1.msra.mxu0 0.0
    %717 = vmatprep.subr.mxu0 0.0
    %718 = vmatpush1.msra.mxu0 0.0
    %719 = vmatprep.subr.mxu0 0.0
    %720 = vmatpush1.msra.mxu0 0.0
    %721 = vmatprep.subr.mxu0 0.0
    %722 = vmatpush1.msra.mxu0 0.0
    %723 = vmatprep.subr.mxu0 0.0
    %724 = vmatpush1.msra.mxu0 0.0
    %725 = vmatprep.mubr.f32.mxu0 0.0
    %726 = vmatmul.mubr.f32.gmra.mrb[0].mxu0 %v656
    %v727 = vpop.f32.mrb[0].mxu0
    %v728 = vadd.f32 %v653, %v727
    %v729 = vpop.f32.mrb[0].mxu0
    %730 = vdwg.mxu0
    %vm731 = vcmask 1043456
    %v732 = vsel %vm731, %v728, 0.0
    %733 = vadd.xlane.f32.xlu0 %v732
    %v734 = vpop.xlane.xlu0 %733
    %v735 = vmul.f32 %v734, 0.0078125
    %v736 = vsub.f32 %v728, %v735
    %v737 = vmul.f32 %v736, %v736
    %v738 = vsel %vm731, %v737, 0.0
    %739 = vadd.xlane.f32.xlu0 %v738
    %v740 = vpop.xlane.xlu0 %739
    %v741 = vmul.f32 %v740, 0.0078125
    %v742 = vadd.f32 %v741, 1e-05
    %v743 = vrsqrt.pop %v742
    %v744 = vmul.f32 %v736, %v743
    %746 = vset.pattern.permute.xlu0 0
    %747 = vperm.xlu0 %746, %v238
    %v748 = vpop.permute.xlu0 %747
    %v750 = vmul.f32 %v744, %v748
    %752 = vset.pattern.permute.xlu0 0
    %753 = vperm.xlu0 %752, %v239
    %v754 = vpop.permute.xlu0 %753
    %v756 = vadd.f32 %v750, %v754
    %v757 = vmax.f32 %v756, 0.0
    %v758 = vld [vmem:[%s21] sm:$0xf]
    %v759 = vld [vmem:[%s23] sm:$0xf]
    %v760 = vld [vmem:[%s25] sm:$0xf]
    %v761 = vld [vmem:[%s27] sm:$0xf]
    %v762 = vld [vmem:[%s29] sm:$0xff]
    %v763 = vld [vmem:[%s31] sm:$0xff]
    %v764 = vld [vmem:[%s33] sm:$0xff]
    %v765 = vld [vmem:[%s35] sm:$0xff]
    %v766 = vld [vmem:[%s37] sm:$0xff]
    %v767 = vld [vmem:[%s37 + $0x8] sm:$0xff]
    %v768 = vld [vmem:[%s37 + $0x10] sm:$0xff]
    %v769 = vld [vmem:[%s37 + $0x18] sm:$0xff]
    %v770 = vld [vmem:[%s37 + $0x20] sm:$0xff]
    %v771 = vld [vmem:[%s37 + $0x28] sm:$0xff]
    %v772 = vld [vmem:[%s37 + $0x30] sm:$0xff]
    %v773 = vld [vmem:[%s37 + $0x38] sm:$0xff]
    %v774 = vld [vmem:[%s37 + $0x40] sm:$0xff]
    %v775 = vld [vmem:[%s37 + $0x48] sm:$0xff]
    %v776 = vld [vmem:[%s37 + $0x50] sm:$0xff]
    %v777 = vld [vmem:[%s37 + $0x58] sm:$0xff]
    %v778 = vld [vmem:[%s37 + $0x60] sm:$0xff]
    %v779 = vld [vmem:[%s37 + $0x68] sm:$0xff]
    %v780 = vld [vmem:[%s37 + $0x70] sm:$0xff]
    %v781 = vld [vmem:[%s37 + $0x78] sm:$0xff]
    %v782 = vld [vmem:[%s37 + $0x80] sm:$0xff]
    %v783 = vld [vmem:[%s37 + $0x88] sm:$0xff]
    %v784 = vld [vmem:[%s37 + $0x90] sm:$0xff]
    %v785 = vld [vmem:[%s37 + $0x98] sm:$0xff]
    %v786 = vld [vmem:[%s37 + $0xa0] sm:$0xff]
    %v787 = vld [vmem:[%s37 + $0xa8] sm:$0xff]
    %v788 = vld [vmem:[%s37 + $0xb0] sm:$0xff]
    %v789 = vld [vmem:[%s37 + $0xb8] sm:$0xff]
    %v790 = vld [vmem:[%s37 + $0xc0] sm:$0xff]
    %v791 = vld [vmem:[%s37 + $0xc8] sm:$0xff]
    %v792 = vld [vmem:[%s37 + $0xd0] sm:$0xff]
    %v793 = vld [vmem:[%s37 + $0xd8] sm:$0xff]
    %v794 = vld [vmem:[%s37 + $0xe0] sm:$0xff]
    %v795 = vld [vmem:[%s37 + $0xe8] sm:$0xff]
    %v796 = vld [vmem:[%s37 + $0xf0] sm:$0xff]
    %v797 = vld [vmem:[%s37 + $0xf8] sm:$0xff]
    %798 = vmatprep.subr.mxu0 %v767
    %799 = vmatpush1.msra.mxu0 %v766
    %800 = vmatprep.subr.mxu0 %v769
    %801 = vmatpush1.msra.mxu0 %v768
    %802 = vmatprep.subr.mxu0 %v771
    %803 = vmatpush1.msra.mxu0 %v770
    %804 = vmatprep.subr.mxu0 %v773
    %805 = vmatpush1.msra.mxu0 %v772
    %806 = vmatprep.subr.mxu0 %v775
    %807 = vmatpush1.msra.mxu0 %v774
    %808 = vmatprep.subr.mxu0 %v777
    %809 = vmatpush1.msra.mxu0 %v776
    %810 = vmatprep.subr.mxu0 %v779
    %811 = vmatpush1.msra.mxu0 %v778
    %812 = vmatprep.subr.mxu0 %v781
    %813 = vmatpush1.msra.mxu0 %v780
    %814 = vmatprep.subr.mxu0 %v783
    %815 = vmatpush1.msra.mxu0 %v782
    %816 = vmatprep.subr.mxu0 %v785
    %817 = vmatpush1.msra.mxu0 %v784
    %818 = vmatprep.subr.mxu0 %v787
    %819 = vmatpush1.msra.mxu0 %v786
    %820 = vmatprep.subr.mxu0 %v789
    %821 = vmatpush1.msra.mxu0 %v788
    %822 = vmatprep.subr.mxu0 %v791
    %823 = vmatpush1.msra.mxu0 %v790
    %824 = vmatprep.subr.mxu0 %v793
    %825 = vmatpush1.msra.mxu0 %v792
    %826 = vmatprep.subr.mxu0 %v795
    %827 = vmatpush1.msra.mxu0 %v794
    %828 = vmatprep.subr.mxu0 %v797
    %829 = vmatpush1.msra.mxu0 %v796
    %830 = vmatprep.subr.mxu0 0.0
    %831 = vmatpush1.msra.mxu0 0.0
    %832 = vmatprep.subr.mxu0 0.0
    %833 = vmatpush1.msra.mxu0 0.0
    %834 = vmatprep.subr.mxu0 0.0
    %835 = vmatpush1.msra.mxu0 0.0
    %836 = vmatprep.subr.mxu0 0.0
    %837 = vmatpush1.msra.mxu0 0.0
    %838 = vmatprep.subr.mxu0 0.0
    %839 = vmatpush1.msra.mxu0 0.0
    %840 = vmatprep.subr.mxu0 0.0
    %841 = vmatpush1.msra.mxu0 0.0
    %842 = vmatprep.subr.mxu0 0.0
    %843 = vmatpush1.msra.mxu0 0.0
    %844 = vmatprep.subr.mxu0 0.0
    %845 = vmatpush1.msra.mxu0 0.0
    %846 = vmatprep.subr.mxu0 0.0
    %847 = vmatpush1.msra.mxu0 0.0
    %848 = vmatprep.subr.mxu0 0.0
    %849 = vmatpush1.msra.mxu0 0.0
    %850 = vmatprep.subr.mxu0 0.0
    %851 = vmatpush1.msra.mxu0 0.0
    %852 = vmatprep.subr.mxu0 0.0
    %853 = vmatpush1.msra.mxu0 0.0
    %854 = vmatprep.subr.mxu0 0.0
    %855 = vmatpush1.msra.mxu0 0.0
    %856 = vmatprep.subr.mxu0 0.0
    %857 = vmatpush1.msra.mxu0 0.0
    %858 = vmatprep.subr.mxu0 0.0
    %859 = vmatpush1.msra.mxu0 0.0
    %860 = vmatprep.subr.mxu0 0.0
    %861 = vmatpush1.msra.mxu0 0.0
    %862 = vmatprep.mubr.f32.mxu0 0.0
    %863 = vmatmul.mubr.f32.gmra.mrb[0].mxu0 %v757
    %v864 = vpop.f32.mrb[0].mxu0
    %v865 = vadd.f32 0.0, %v864
    %v866 = vpop.f32.mrb[0].mxu0
    %v867 = vadd.f32 0.0, %v866
    %868 = vdwg.mxu0
    %vm869 = vcmask 519168
    %870 = vst.msk [vmem:[#allocation2] sm:$0xf] %vm869, %v865
    %872 = vrot.lane.b32.xlu0 %v865, 126
    %v873 = vpop.permute.xlu0 %872
    %875 = vst.msk [vmem:[#allocation2 + $0x4] sm:$0xf] %vm869, %v873
    %876 = vrot.lane.b32.xlu0 %v865, 124
    %v877 = vpop.permute.xlu0 %876
    %879 = vst.msk [vmem:[#allocation2 + $0x8] sm:$0xf] %vm869, %v877
    %880 = vrot.lane.b32.xlu0 %v865, 122
    %v881 = vpop.permute.xlu0 %880
    %883 = vst.msk [vmem:[#allocation2 + $0xc] sm:$0xf] %vm869, %v881
    %884 = vrot.lane.b32.xlu0 %v865, 120
    %v885 = vpop.permute.xlu0 %884
    %887 = vst.msk [vmem:[#allocation2 + $0x10] sm:$0xf] %vm869, %v885
    %889 = vrot.lane.b32.xlu0 %v867, 120
    %v890 = vpop.permute.xlu0 %889
    %v891 = vsel %vm398, %v885, %v890
    %vm893 = vcmask 1043968
    %894 = vst.msk [vmem:[#allocation2] sm:$0xf] %vm893, %v891
    %895 = vrot.lane.b32.xlu0 %v865, 118
    %v896 = vpop.permute.xlu0 %895
    %897 = vrot.lane.b32.xlu0 %v867, 118
    %v898 = vpop.permute.xlu0 %897
    %vm899 = vcmask 965632
    %v900 = vsel %vm899, %v896, %v898
    %902 = vst.msk [vmem:[#allocation2 + $0x4] sm:$0xf] %vm893, %v900
    %903 = vrot.lane.b32.xlu0 %v865, 116
    %v904 = vpop.permute.xlu0 %903
    %905 = vrot.lane.b32.xlu0 %v867, 116
    %v906 = vpop.permute.xlu0 %905
    %vm907 = vcmask 949248
    %v908 = vsel %vm907, %v904, %v906
    %910 = vst.msk [vmem:[#allocation2 + $0x8] sm:$0xf] %vm893, %v908
    %911 = vrot.lane.b32.xlu0 %v865, 114
    %v912 = vpop.permute.xlu0 %911
    %913 = vrot.lane.b32.xlu0 %v867, 114
    %v914 = vpop.permute.xlu0 %913
    %vm915 = vcmask 932864
    %v916 = vsel %vm915, %v912, %v914
    %918 = vst.msk [vmem:[#allocation2 + $0xc] sm:$0xf] %vm893, %v916
    %919 = vrot.lane.b32.xlu0 %v865, 112
    %v920 = vpop.permute.xlu0 %919
    %921 = vrot.lane.b32.xlu0 %v867, 112
    %v922 = vpop.permute.xlu0 %921
    %vm923 = vcmask 916480
    %v924 = vsel %vm923, %v920, %v922
    %926 = vst.msk [vmem:[#allocation2 + $0x10] sm:$0xf] %vm893, %v924
    %v927 = vld [vmem:[#allocation2] sm:$0xff]
    %v928 = vld [vmem:[#allocation2 + $0x8] sm:$0xff]
    %v929 = vld [vmem:[#allocation2 + $0x10] sm:$0xf]
    %931 = vset.pattern.permute.xlu0 0
    %932 = vperm.xlu0 %931, %v759
    %v933 = vpop.permute.xlu0 %932
    %vm935 = vcmask 162816
    %v937 = vsel %vm935, %v758, 0
    %v940 = vsel %vm731, %v929, 0
    %942 = vmatprep.subr.mxu0 0.0
    %943 = vmatpush1.msra.mxu0 %v927
    %944 = vmatprep.subr.mxu0 0.0
    %945 = vmatpush1.msra.mxu0 %v928
    %946 = vmatprep.subr.mxu0 0.0
    %947 = vmatpush1.msra.mxu0 %v940
    %948 = vmatprep.subr.mxu0 0.0
    %949 = vmatpush1.msra.mxu0 0.0
    %950 = vmatprep.subr.mxu0 0.0
    %951 = vmatpush1.msra.mxu0 0.0
    %952 = vmatprep.subr.mxu0 0.0
    %953 = vmatpush1.msra.mxu0 0.0
    %954 = vmatprep.subr.mxu0 0.0
    %955 = vmatpush1.msra.mxu0 0.0
    %956 = vmatprep.subr.mxu0 0.0
    %957 = vmatpush1.msra.mxu0 0.0
    %958 = vmatprep.subr.mxu0 0.0
    %959 = vmatpush1.msra.mxu0 0.0
    %960 = vmatprep.subr.mxu0 0.0
    %961 = vmatpush1.msra.mxu0 0.0
    %962 = vmatprep.subr.mxu0 0.0
    %963 = vmatpush1.msra.mxu0 0.0
    %964 = vmatprep.subr.mxu0 0.0
    %965 = vmatpush1.msra.mxu0 0.0
    %966 = vmatprep.subr.mxu0 0.0
    %967 = vmatpush1.msra.mxu0 0.0
    %968 = vmatprep.subr.mxu0 0.0
    %969 = vmatpush1.msra.mxu0 0.0
    %970 = vmatprep.subr.mxu0 0.0
    %971 = vmatpush1.msra.mxu0 0.0
    %972 = vmatprep.subr.mxu0 0.0
    %973 = vmatpush1.msra.mxu0 0.0
    %974 = vmatprep.subr.mxu0 0.0
    %975 = vmatpush1.msra.mxu0 0.0
    %976 = vmatprep.subr.mxu0 0.0
    %977 = vmatpush1.msra.mxu0 0.0
    %978 = vmatprep.subr.mxu0 0.0
    %979 = vmatpush1.msra.mxu0 0.0
    %980 = vmatprep.subr.mxu0 0.0
    %981 = vmatpush1.msra.mxu0 0.0
    %982 = vmatprep.subr.mxu0 0.0
    %983 = vmatpush1.msra.mxu0 0.0
    %984 = vmatprep.subr.mxu0 0.0
    %985 = vmatpush1.msra.mxu0 0.0
    %986 = vmatprep.subr.mxu0 0.0
    %987 = vmatpush1.msra.mxu0 0.0
    %988 = vmatprep.subr.mxu0 0.0
    %989 = vmatpush1.msra.mxu0 0.0
    %990 = vmatprep.subr.mxu0 0.0
    %991 = vmatpush1.msra.mxu0 0.0
    %992 = vmatprep.subr.mxu0 0.0
    %993 = vmatpush1.msra.mxu0 0.0
    %994 = vmatprep.subr.mxu0 0.0
    %995 = vmatpush1.msra.mxu0 0.0
    %996 = vmatprep.subr.mxu0 0.0
    %997 = vmatpush1.msra.mxu0 0.0
    %998 = vmatprep.subr.mxu0 0.0
    %999 = vmatpush1.msra.mxu0 0.0
    %1000 = vmatprep.subr.mxu0 0.0
    %1001 = vmatpush1.msra.mxu0 0.0
    %1002 = vmatprep.subr.mxu0 0.0
    %1003 = vmatpush1.msra.mxu0 0.0
    %1004 = vmatprep.subr.mxu0 0.0
    %1005 = vmatpush1.msra.mxu0 0.0
    %1006 = vmatprep.mubr.f32.mxu0 0.0
    %1007 = vmatmul.mubr.f32.gmra.mrb[0].mxu0 %v937
    %v1008 = vpop.f32.mrb[0].mxu0
    %v1009 = vadd.f32 %v933, %v1008
    %v1010 = vpop.f32.mrb[0].mxu0
    %1011 = vdwg.mxu0
    %v1012 = vsel %vm731, %v1009, 0.0
    %1013 = vadd.xlane.f32.xlu0 %v1012
    %v1014 = vpop.xlane.xlu0 %1013
    %v1015 = vmul.f32 %v1014, 0.0078125
    %v1016 = vsub.f32 %v1009, %v1015
    %v1017 = vmul.f32 %v1016, %v1016
    %v1018 = vsel %vm731, %v1017, 0.0
    %1019 = vadd.xlane.f32.xlu0 %v1018
    %v1020 = vpop.xlane.xlu0 %1019
    %v1021 = vmul.f32 %v1020, 0.0078125
    %v1022 = vadd.f32 %v1021, 1e-05
    %v1023 = vrsqrt.pop %v1022
    %v1024 = vmul.f32 %v1016, %v1023
    %1026 = vset.pattern.permute.xlu0 0
    %1027 = vperm.xlu0 %1026, %v760
    %v1028 = vpop.permute.xlu0 %1027
    %v1030 = vmul.f32 %v1024, %v1028
    %1032 = vset.pattern.permute.xlu0 0
    %1033 = vperm.xlu0 %1032, %v761
    %v1034 = vpop.permute.xlu0 %1033
    %v1036 = vadd.f32 %v1030, %v1034
    %v1037 = vmax.f32 %v1036, 0.0
    %v1038 = vadd.f32 %v1037, %v757
    %1039 = vmatprep.subr.mxu0 %v767
    %1040 = vmatpush1.msra.mxu0 %v766
    %1041 = vmatprep.subr.mxu0 %v769
    %1042 = vmatpush1.msra.mxu0 %v768
    %1043 = vmatprep.subr.mxu0 %v771
    %1044 = vmatpush1.msra.mxu0 %v770
    %1045 = vmatprep.subr.mxu0 %v773
    %1046 = vmatpush1.msra.mxu0 %v772
    %1047 = vmatprep.subr.mxu0 %v775
    %1048 = vmatpush1.msra.mxu0 %v774
    %1049 = vmatprep.subr.mxu0 %v777
    %1050 = vmatpush1.msra.mxu0 %v776
    %1051 = vmatprep.subr.mxu0 %v779
    %1052 = vmatpush1.msra.mxu0 %v778
    %1053 = vmatprep.subr.mxu0 %v781
    %1054 = vmatpush1.msra.mxu0 %v780
    %1055 = vmatprep.subr.mxu0 %v783
    %1056 = vmatpush1.msra.mxu0 %v782
    %1057 = vmatprep.subr.mxu0 %v785
    %1058 = vmatpush1.msra.mxu0 %v784
    %1059 = vmatprep.subr.mxu0 %v787
    %1060 = vmatpush1.msra.mxu0 %v786
    %1061 = vmatprep.subr.mxu0 %v789
    %1062 = vmatpush1.msra.mxu0 %v788
    %1063 = vmatprep.subr.mxu0 %v791
    %1064 = vmatpush1.msra.mxu0 %v790
    %1065 = vmatprep.subr.mxu0 %v793
    %1066 = vmatpush1.msra.mxu0 %v792
    %1067 = vmatprep.subr.mxu0 %v795
    %1068 = vmatpush1.msra.mxu0 %v794
    %1069 = vmatprep.subr.mxu0 %v797
    %1070 = vmatpush1.msra.mxu0 %v796
    %1071 = vmatprep.subr.mxu0 0.0
    %1072 = vmatpush1.msra.mxu0 0.0
    %1073 = vmatprep.subr.mxu0 0.0
    %1074 = vmatpush1.msra.mxu0 0.0
    %1075 = vmatprep.subr.mxu0 0.0
    %1076 = vmatpush1.msra.mxu0 0.0
    %1077 = vmatprep.subr.mxu0 0.0
    %1078 = vmatpush1.msra.mxu0 0.0
    %1079 = vmatprep.subr.mxu0 0.0
    %1080 = vmatpush1.msra.mxu0 0.0
    %1081 = vmatprep.subr.mxu0 0.0
    %1082 = vmatpush1.msra.mxu0 0.0
    %1083 = vmatprep.subr.mxu0 0.0
    %1084 = vmatpush1.msra.mxu0 0.0
    %1085 = vmatprep.subr.mxu0 0.0
    %1086 = vmatpush1.msra.mxu0 0.0
    %1087 = vmatprep.subr.mxu0 0.0
    %1088 = vmatpush1.msra.mxu0 0.0
    %1089 = vmatprep.subr.mxu0 0.0
    %1090 = vmatpush1.msra.mxu0 0.0
    %1091 = vmatprep.subr.mxu0 0.0
    %1092 = vmatpush1.msra.mxu0 0.0
    %1093 = vmatprep.subr.mxu0 0.0
    %1094 = vmatpush1.msra.mxu0 0.0
    %1095 = vmatprep.subr.mxu0 0.0
    %1096 = vmatpush1.msra.mxu0 0.0
    %1097 = vmatprep.subr.mxu0 0.0
    %1098 = vmatpush1.msra.mxu0 0.0
    %1099 = vmatprep.subr.mxu0 0.0
    %1100 = vmatpush1.msra.mxu0 0.0
    %1101 = vmatprep.subr.mxu0 0.0
    %1102 = vmatpush1.msra.mxu0 0.0
    %1103 = vmatprep.mubr.f32.mxu0 0.0
    %1104 = vmatmul.mubr.f32.gmra.mrb[0].mxu0 %v1038
    %v1105 = vpop.f32.mrb[0].mxu0
    %v1106 = vadd.f32 0.0, %v1105
    %v1107 = vpop.f32.mrb[0].mxu0
    %v1108 = vadd.f32 0.0, %v1107
    %1109 = vdwg.mxu0
    %1110 = vst.msk [vmem:[#allocation2] sm:$0xf] %vm869, %v1106
    %1112 = vrot.lane.b32.xlu0 %v1106, 126
    %v1113 = vpop.permute.xlu0 %1112
    %1115 = vst.msk [vmem:[#allocation2 + $0x4] sm:$0xf] %vm869, %v1113
    %1116 = vrot.lane.b32.xlu0 %v1106, 124
    %v1117 = vpop.permute.xlu0 %1116
    %1119 = vst.msk [vmem:[#allocation2 + $0x8] sm:$0xf] %vm869, %v1117
    %1120 = vrot.lane.b32.xlu0 %v1106, 122
    %v1121 = vpop.permute.xlu0 %1120
    %1123 = vst.msk [vmem:[#allocation2 + $0xc] sm:$0xf] %vm869, %v1121
    %1124 = vrot.lane.b32.xlu0 %v1106, 120
    %v1125 = vpop.permute.xlu0 %1124
    %1127 = vst.msk [vmem:[#allocation2 + $0x10] sm:$0xf] %vm869, %v1125
    %1129 = vrot.lane.b32.xlu0 %v1108, 120
    %v1130 = vpop.permute.xlu0 %1129
    %v1131 = vsel %vm398, %v1125, %v1130
    %1133 = vst.msk [vmem:[#allocation2] sm:$0xf] %vm893, %v1131
    %1134 = vrot.lane.b32.xlu0 %v1106, 118
    %v1135 = vpop.permute.xlu0 %1134
    %1136 = vrot.lane.b32.xlu0 %v1108, 118
    %v1137 = vpop.permute.xlu0 %1136
    %v1138 = vsel %vm899, %v1135, %v1137
    %1140 = vst.msk [vmem:[#allocation2 + $0x4] sm:$0xf] %vm893, %v1138
    %1141 = vrot.lane.b32.xlu0 %v1106, 116
    %v1142 = vpop.permute.xlu0 %1141
    %1143 = vrot.lane.b32.xlu0 %v1108, 116
    %v1144 = vpop.permute.xlu0 %1143
    %v1145 = vsel %vm907, %v1142, %v1144
    %1147 = vst.msk [vmem:[#allocation2 + $0x8] sm:$0xf] %vm893, %v1145
    %1148 = vrot.lane.b32.xlu0 %v1106, 114
    %v1149 = vpop.permute.xlu0 %1148
    %1150 = vrot.lane.b32.xlu0 %v1108, 114
    %v1151 = vpop.permute.xlu0 %1150
    %v1152 = vsel %vm915, %v1149, %v1151
    %1154 = vst.msk [vmem:[#allocation2 + $0xc] sm:$0xf] %vm893, %v1152
    %1155 = vrot.lane.b32.xlu0 %v1106, 112
    %v1156 = vpop.permute.xlu0 %1155
    %1157 = vrot.lane.b32.xlu0 %v1108, 112
    %v1158 = vpop.permute.xlu0 %1157
    %v1159 = vsel %vm923, %v1156, %v1158
    %1161 = vst.msk [vmem:[#allocation2 + $0x10] sm:$0xf] %vm893, %v1159
    %v1162 = vld [vmem:[#allocation2] sm:$0xff]
    %v1163 = vld [vmem:[#allocation2 + $0x8] sm:$0xff]
    %v1164 = vld [vmem:[#allocation2 + $0x10] sm:$0xf]
    %v1166 = vsel %vm935, %v762, 0
    %v1169 = vsel %vm731, %v1164, 0
    %1171 = vmatprep.subr.mxu0 0.0
    %1172 = vmatpush1.msra.mxu0 %v1162
    %1173 = vmatprep.subr.mxu0 0.0
    %1174 = vmatpush1.msra.mxu0 %v1163
    %1175 = vmatprep.subr.mxu0 0.0
    %1176 = vmatpush1.msra.mxu0 %v1169
    %1177 = vmatprep.subr.mxu0 0.0
    %1178 = vmatpush1.msra.mxu0 0.0
    %1179 = vmatprep.subr.mxu0 0.0
    %1180 = vmatpush1.msra.mxu0 0.0
    %1181 = vmatprep.subr.mxu0 0.0
    %1182 = vmatpush1.msra.mxu0 0.0
    %1183 = vmatprep.subr.mxu0 0.0
    %1184 = vmatpush1.msra.mxu0 0.0
    %1185 = vmatprep.subr.mxu0 0.0
    %1186 = vmatpush1.msra.mxu0 0.0
    %1187 = vmatprep.subr.mxu0 0.0
    %1188 = vmatpush1.msra.mxu0 0.0
    %1189 = vmatprep.subr.mxu0 0.0
    %1190 = vmatpush1.msra.mxu0 0.0
    %1191 = vmatprep.subr.mxu0 0.0
    %1192 = vmatpush1.msra.mxu0 0.0
    %1193 = vmatprep.subr.mxu0 0.0
    %1194 = vmatpush1.msra.mxu0 0.0
    %1195 = vmatprep.subr.mxu0 0.0
    %1196 = vmatpush1.msra.mxu0 0.0
    %1197 = vmatprep.subr.mxu0 0.0
    %1198 = vmatpush1.msra.mxu0 0.0
    %1199 = vmatprep.subr.mxu0 0.0
    %1200 = vmatpush1.msra.mxu0 0.0
    %1201 = vmatprep.subr.mxu0 0.0
    %1202 = vmatpush1.msra.mxu0 0.0
    %1203 = vmatprep.subr.mxu0 0.0
    %1204 = vmatpush1.msra.mxu0 0.0
    %1205 = vmatprep.subr.mxu0 0.0
    %1206 = vmatpush1.msra.mxu0 0.0
    %1207 = vmatprep.subr.mxu0 0.0
    %1208 = vmatpush1.msra.mxu0 0.0
    %1209 = vmatprep.subr.mxu0 0.0
    %1210 = vmatpush1.msra.mxu0 0.0
    %1211 = vmatprep.subr.mxu0 0.0
    %1212 = vmatpush1.msra.mxu0 0.0
    %1213 = vmatprep.subr.mxu0 0.0
    %1214 = vmatpush1.msra.mxu0 0.0
    %1215 = vmatprep.subr.mxu0 0.0
    %1216 = vmatpush1.msra.mxu0 0.0
    %1217 = vmatprep.subr.mxu0 0.0
    %1218 = vmatpush1.msra.mxu0 0.0
    %1219 = vmatprep.subr.mxu0 0.0
    %1220 = vmatpush1.msra.mxu0 0.0
    %1221 = vmatprep.subr.mxu0 0.0
    %1222 = vmatpush1.msra.mxu0 0.0
    %1223 = vmatprep.subr.mxu0 0.0
    %1224 = vmatpush1.msra.mxu0 0.0
    %1225 = vmatprep.subr.mxu0 0.0
    %1226 = vmatpush1.msra.mxu0 0.0
    %1227 = vmatprep.subr.mxu0 0.0
    %1228 = vmatpush1.msra.mxu0 0.0
    %1229 = vmatprep.subr.mxu0 0.0
    %1230 = vmatpush1.msra.mxu0 0.0
    %1231 = vmatprep.subr.mxu0 0.0
    %1232 = vmatpush1.msra.mxu0 0.0
    %1233 = vmatprep.subr.mxu0 0.0
    %1234 = vmatpush1.msra.mxu0 0.0
    %1235 = vmatprep.mubr.f32.mxu0 0.0
    %1236 = vmatmul.mubr.f32.gmra.mrb[0].mxu0 %v1166
    %v1237 = vpop.f32.mrb[0].mxu0
    %v1238 = vadd.f32 0.0, %v1237
    %v1239 = vpop.f32.mrb[0].mxu0
    %1240 = vdwg.mxu0
    %v1241 = vld [vmem:[%s39] sm:$0xff]
    %v1242 = vld [vmem:[%s39 + $0x8] sm:$0xff]
    %v1243 = vld [vmem:[%s39 + $0x10] sm:$0xff]
    %v1244 = vld [vmem:[%s39 + $0x18] sm:$0xff]
    %v1245 = vld [vmem:[%s39 + $0x20] sm:$0xff]
    %v1246 = vld [vmem:[%s39 + $0x28] sm:$0xff]
    %v1247 = vld [vmem:[%s39 + $0x30] sm:$0xff]
    %v1248 = vld [vmem:[%s39 + $0x38] sm:$0xff]
    %v1249 = vld [vmem:[%s39 + $0x40] sm:$0xff]
    %v1250 = vld [vmem:[%s39 + $0x48] sm:$0xff]
    %v1251 = vld [vmem:[%s39 + $0x50] sm:$0xff]
    %v1252 = vld [vmem:[%s39 + $0x58] sm:$0xff]
    %v1253 = vld [vmem:[%s39 + $0x60] sm:$0xff]
    %v1254 = vld [vmem:[%s39 + $0x68] sm:$0xff]
    %v1255 = vld [vmem:[%s39 + $0x70] sm:$0xff]
    %v1256 = vld [vmem:[%s39 + $0x78] sm:$0xff]
    %1258 = vset.pattern.permute.xlu0 0
    %1259 = vperm.xlu0 %1258, %v763
    %v1260 = vpop.permute.xlu0 %1259
    %1262 = vmatprep.subr.mxu0 0.0
    %1263 = vmatpush1.msra.mxu0 %v1241
    %1264 = vmatprep.subr.mxu0 0.0
    %1265 = vmatpush1.msra.mxu0 %v1242
    %1266 = vmatprep.subr.mxu0 0.0
    %1267 = vmatpush1.msra.mxu0 %v1243
    %1268 = vmatprep.subr.mxu0 0.0
    %1269 = vmatpush1.msra.mxu0 %v1244
    %1270 = vmatprep.subr.mxu0 0.0
    %1271 = vmatpush1.msra.mxu0 %v1245
    %1272 = vmatprep.subr.mxu0 0.0
    %1273 = vmatpush1.msra.mxu0 %v1246
    %1274 = vmatprep.subr.mxu0 0.0
    %1275 = vmatpush1.msra.mxu0 %v1247
    %1276 = vmatprep.subr.mxu0 0.0
    %1277 = vmatpush1.msra.mxu0 %v1248
    %1278 = vmatprep.subr.mxu0 0.0
    %1279 = vmatpush1.msra.mxu0 %v1249
    %1280 = vmatprep.subr.mxu0 0.0
    %1281 = vmatpush1.msra.mxu0 %v1250
    %1282 = vmatprep.subr.mxu0 0.0
    %1283 = vmatpush1.msra.mxu0 %v1251
    %1284 = vmatprep.subr.mxu0 0.0
    %1285 = vmatpush1.msra.mxu0 %v1252
    %1286 = vmatprep.subr.mxu0 0.0
    %1287 = vmatpush1.msra.mxu0 %v1253
    %1288 = vmatprep.subr.mxu0 0.0
    %1289 = vmatpush1.msra.mxu0 %v1254
    %1290 = vmatprep.subr.mxu0 0.0
    %1291 = vmatpush1.msra.mxu0 %v1255
    %1292 = vmatprep.subr.mxu0 0.0
    %1293 = vmatpush1.msra.mxu0 %v1256
    %1294 = vmatprep.subr.mxu0 0.0
    %1295 = vmatpush1.msra.mxu0 0.0
    %1296 = vmatprep.subr.mxu0 0.0
    %1297 = vmatpush1.msra.mxu0 0.0
    %1298 = vmatprep.subr.mxu0 0.0
    %1299 = vmatpush1.msra.mxu0 0.0
    %1300 = vmatprep.subr.mxu0 0.0
    %1301 = vmatpush1.msra.mxu0 0.0
    %1302 = vmatprep.subr.mxu0 0.0
    %1303 = vmatpush1.msra.mxu0 0.0
    %1304 = vmatprep.subr.mxu0 0.0
    %1305 = vmatpush1.msra.mxu0 0.0
    %1306 = vmatprep.subr.mxu0 0.0
    %1307 = vmatpush1.msra.mxu0 0.0
    %1308 = vmatprep.subr.mxu0 0.0
    %1309 = vmatpush1.msra.mxu0 0.0
    %1310 = vmatprep.subr.mxu0 0.0
    %1311 = vmatpush1.msra.mxu0 0.0
    %1312 = vmatprep.subr.mxu0 0.0
    %1313 = vmatpush1.msra.mxu0 0.0
    %1314 = vmatprep.subr.mxu0 0.0
    %1315 = vmatpush1.msra.mxu0 0.0
    %1316 = vmatprep.subr.mxu0 0.0
    %1317 = vmatpush1.msra.mxu0 0.0
    %1318 = vmatprep.subr.mxu0 0.0
    %1319 = vmatpush1.msra.mxu0 0.0
    %1320 = vmatprep.subr.mxu0 0.0
    %1321 = vmatpush1.msra.mxu0 0.0
    %1322 = vmatprep.subr.mxu0 0.0
    %1323 = vmatpush1.msra.mxu0 0.0
    %1324 = vmatprep.subr.mxu0 0.0
    %1325 = vmatpush1.msra.mxu0 0.0
    %1326 = vmatprep.mubr.f32.mxu0 0.0
    %1327 = vmatmul.mubr.f32.gmra.mrb[0].mxu0 %v1238
    %v1328 = vpop.f32.mrb[0].mxu0
    %v1329 = vadd.f32 %v1260, %v1328
    %v1330 = vpop.f32.mrb[0].mxu0
    %1331 = vdwg.mxu0
    %vm1332 = vcmask 523264
    %v1333 = vsel %vm1332, %v1329, 0.0
    %1334 = vadd.xlane.f32.xlu0 %v1333
    %v1335 = vpop.xlane.xlu0 %1334
    %v1336 = vmul.f32 %v1335, 0.015625
    %v1337 = vsub.f32 %v1329, %v1336
    %v1338 = vmul.f32 %v1337, %v1337
    %v1339 = vsel %vm1332, %v1338, 0.0
    %1340 = vadd.xlane.f32.xlu0 %v1339
    %v1341 = vpop.xlane.xlu0 %1340
    %v1342 = vmul.f32 %v1341, 0.015625
    %v1343 = vadd.f32 %v1342, 1e-05
    %v1344 = vrsqrt.pop %v1343
    %v1345 = vmul.f32 %v1337, %v1344
    %1347 = vset.pattern.permute.xlu0 0
    %1348 = vperm.xlu0 %1347, %v764
    %v1349 = vpop.permute.xlu0 %1348
    %v1351 = vmul.f32 %v1345, %v1349
    %1353 = vset.pattern.permute.xlu0 0
    %1354 = vperm.xlu0 %1353, %v765
    %v1355 = vpop.permute.xlu0 %1354
    %v1357 = vadd.f32 %v1351, %v1355
    %v1358 = vmax.f32 %v1357, 0.0
    %v1359 = vld [vmem:[%s41] sm:$0xff]
    %v1360 = vld [vmem:[%s43] sm:$0xff]
    %v1361 = vld [vmem:[%s45] sm:$0xff]
    %v1362 = vld [vmem:[%s47] sm:$0xff]
    %v1363 = vld [vmem:[%s49] sm:$0xff]
    %v1364 = vld [vmem:[%s49 + $0x8] sm:$0xff]
    %v1365 = vld [vmem:[%s51] sm:$0xff]
    %v1366 = vld [vmem:[%s51 + $0x8] sm:$0xff]
    %v1367 = vld [vmem:[%s53] sm:$0xff]
    %v1368 = vld [vmem:[%s53 + $0x8] sm:$0xff]
    %v1369 = vld [vmem:[%s55] sm:$0xff]
    %v1370 = vld [vmem:[%s55 + $0x8] sm:$0xff]
    %v1371 = vld [vmem:[%s57] sm:$0xff]
    %v1372 = vld [vmem:[%s57 + $0x8] sm:$0xff]
    %v1373 = vld [vmem:[%s57 + $0x10] sm:$0xff]
    %v1374 = vld [vmem:[%s57 + $0x18] sm:$0xff]
    %v1375 = vld [vmem:[%s57 + $0x20] sm:$0xff]
    %v1376 = vld [vmem:[%s57 + $0x28] sm:$0xff]
    %v1377 = vld [vmem:[%s57 + $0x30] sm:$0xff]
    %v1378 = vld [vmem:[%s57 + $0x38] sm:$0xff]
    %v1380 = vsel %vm1332, %v1358, 0
    %1382 = vmatprep.subr.mxu0 0.0
    %1383 = vmatpush1.msra.mxu0 %v1371
    %1384 = vmatprep.subr.mxu0 0.0
    %1385 = vmatpush1.msra.mxu0 %v1372
    %1386 = vmatprep.subr.mxu0 0.0
    %1387 = vmatpush1.msra.mxu0 %v1373
    %1388 = vmatprep.subr.mxu0 0.0
    %1389 = vmatpush1.msra.mxu0 %v1374
    %1390 = vmatprep.subr.mxu0 0.0
    %1391 = vmatpush1.msra.mxu0 %v1375
    %1392 = vmatprep.subr.mxu0 0.0
    %1393 = vmatpush1.msra.mxu0 %v1376
    %1394 = vmatprep.subr.mxu0 0.0
    %1395 = vmatpush1.msra.mxu0 %v1377
    %1396 = vmatprep.subr.mxu0 0.0
    %1397 = vmatpush1.msra.mxu0 %v1378
    %1398 = vmatprep.subr.mxu0 0.0
    %1399 = vmatpush1.msra.mxu0 0.0
    %1400 = vmatprep.subr.mxu0 0.0
    %1401 = vmatpush1.msra.mxu0 0.0
    %1402 = vmatprep.subr.mxu0 0.0
    %1403 = vmatpush1.msra.mxu0 0.0
    %1404 = vmatprep.subr.mxu0 0.0
    %1405 = vmatpush1.msra.mxu0 0.0
    %1406 = vmatprep.subr.mxu0 0.0
    %1407 = vmatpush1.msra.mxu0 0.0
    %1408 = vmatprep.subr.mxu0 0.0
    %1409 = vmatpush1.msra.mxu0 0.0
    %1410 = vmatprep.subr.mxu0 0.0
    %1411 = vmatpush1.msra.mxu0 0.0
    %1412 = vmatprep.subr.mxu0 0.0
    %1413 = vmatpush1.msra.mxu0 0.0
    %1414 = vmatprep.subr.mxu0 0.0
    %1415 = vmatpush1.msra.mxu0 0.0
    %1416 = vmatprep.subr.mxu0 0.0
    %1417 = vmatpush1.msra.mxu0 0.0
    %1418 = vmatprep.subr.mxu0 0.0
    %1419 = vmatpush1.msra.mxu0 0.0
    %1420 = vmatprep.subr.mxu0 0.0
    %1421 = vmatpush1.msra.mxu0 0.0
    %1422 = vmatprep.subr.mxu0 0.0
    %1423 = vmatpush1.msra.mxu0 0.0
    %1424 = vmatprep.subr.mxu0 0.0
    %1425 = vmatpush1.msra.mxu0 0.0
    %1426 = vmatprep.subr.mxu0 0.0
    %1427 = vmatpush1.msra.mxu0 0.0
    %1428 = vmatprep.subr.mxu0 0.0
    %1429 = vmatpush1.msra.mxu0 0.0
    %1430 = vmatprep.subr.mxu0 0.0
    %1431 = vmatpush1.msra.mxu0 0.0
    %1432 = vmatprep.subr.mxu0 0.0
    %1433 = vmatpush1.msra.mxu0 0.0
    %1434 = vmatprep.subr.mxu0 0.0
    %1435 = vmatpush1.msra.mxu0 0.0
    %1436 = vmatprep.subr.mxu0 0.0
    %1437 = vmatpush1.msra.mxu0 0.0
    %1438 = vmatprep.subr.mxu0 0.0
    %1439 = vmatpush1.msra.mxu0 0.0
    %1440 = vmatprep.subr.mxu0 0.0
    %1441 = vmatpush1.msra.mxu0 0.0
    %1442 = vmatprep.subr.mxu0 0.0
    %1443 = vmatpush1.msra.mxu0 0.0
    %1444 = vmatprep.subr.mxu0 0.0
    %1445 = vmatpush1.msra.mxu0 0.0
    %1446 = vmatprep.mubr.f32.mxu0 0.0
    %1447 = vmatmul.mubr.f32.gmra.mrb[0].mxu0 %v1380
    %v1448 = vpop.f32.mrb[0].mxu0
    %v1449 = vadd.f32 0.0, %v1448
    %v1450 = vpop.f32.mrb[0].mxu0
    %1451 = vdwg.mxu0
    %vm1452 = vcmask 261120
    %1453 = vst.msk [vmem:[#allocation2] sm:$0xff] %vm1452, %v1449
    %1455 = vrot.lane.b32.xlu0 %v1449, 127
    %v1456 = vpop.permute.xlu0 %1455
    %1458 = vst.msk [vmem:[#allocation2 + $0x8] sm:$0xff] %vm1452, %v1456
    %1459 = vrot.lane.b32.xlu0 %v1449, 126
    %v1460 = vpop.permute.xlu0 %1459
    %1462 = vst.msk [vmem:[#allocation2 + $0x10] sm:$0xff] %vm1452, %v1460
    %1463 = vrot.lane.b32.xlu0 %v1449, 125
    %v1464 = vpop.permute.xlu0 %1463
    %1466 = vst.msk [vmem:[#allocation2 + $0x18] sm:$0xff] %vm1452, %v1464
    %1467 = vrot.lane.b32.xlu0 %v1449, 124
    %v1468 = vpop.permute.xlu0 %1467
    %1470 = vst.msk [vmem:[#allocation2 + $0x20] sm:$0xff] %vm1452, %v1468
    %vm1471 = vcmask 523520
    %1472 = vst.msk [vmem:[#allocation2] sm:$0xff] %vm1471, %v1468
    %1473 = vrot.lane.b32.xlu0 %v1449, 123
    %v1474 = vpop.permute.xlu0 %1473
    %1476 = vst.msk [vmem:[#allocation2 + $0x8] sm:$0xff] %vm1471, %v1474
    %1477 = vrot.lane.b32.xlu0 %v1449, 122
    %v1478 = vpop.permute.xlu0 %1477
    %1480 = vst.msk [vmem:[#allocation2 + $0x10] sm:$0xff] %vm1471, %v1478
    %1481 = vrot.lane.b32.xlu0 %v1449, 121
    %v1482 = vpop.permute.xlu0 %1481
    %1484 = vst.msk [vmem:[#allocation2 + $0x18] sm:$0xff] %vm1471, %v1482
    %1485 = vrot.lane.b32.xlu0 %v1449, 120
    %v1486 = vpop.permute.xlu0 %1485
    %1488 = vst.msk [vmem:[#allocation2 + $0x20] sm:$0xff] %vm1471, %v1486
    %v1489 = vld [vmem:[#allocation2] sm:$0xff]
    %v1490 = vld [vmem:[#allocation2 + $0x8] sm:$0xff]
    %v1491 = vld [vmem:[#allocation2 + $0x10] sm:$0xff]
    %v1492 = vld [vmem:[#allocation2 + $0x18] sm:$0xff]
    %v1493 = vld [vmem:[#allocation2 + $0x20] sm:$0xff]
    %1495 = vset.pattern.permute.xlu0 0
    %1496 = vperm.xlu0 %1495, %v1360
    %v1497 = vpop.permute.xlu0 %1496
    %vm1499 = vcmask 326656
    %v1501 = vsel %vm1499, %v1359, 0
    %1503 = vmatprep.subr.mxu0 0.0
    %1504 = vmatpush1.msra.mxu0 %v1489
    %1505 = vmatprep.subr.mxu0 0.0
    %1506 = vmatpush1.msra.mxu0 %v1490
    %1507 = vmatprep.subr.mxu0 0.0
    %1508 = vmatpush1.msra.mxu0 %v1491
    %1509 = vmatprep.subr.mxu0 0.0
    %1510 = vmatpush1.msra.mxu0 %v1492
    %1511 = vmatprep.subr.mxu0 0.0
    %1512 = vmatpush1.msra.mxu0 %v1493
    %1513 = vmatprep.subr.mxu0 0.0
    %1514 = vmatpush1.msra.mxu0 0.0
    %1515 = vmatprep.subr.mxu0 0.0
    %1516 = vmatpush1.msra.mxu0 0.0
    %1517 = vmatprep.subr.mxu0 0.0
    %1518 = vmatpush1.msra.mxu0 0.0
    %1519 = vmatprep.subr.mxu0 0.0
    %1520 = vmatpush1.msra.mxu0 0.0
    %1521 = vmatprep.subr.mxu0 0.0
    %1522 = vmatpush1.msra.mxu0 0.0
    %1523 = vmatprep.subr.mxu0 0.0
    %1524 = vmatpush1.msra.mxu0 0.0
    %1525 = vmatprep.subr.mxu0 0.0
    %1526 = vmatpush1.msra.mxu0 0.0
    %1527 = vmatprep.subr.mxu0 0.0
    %1528 = vmatpush1.msra.mxu0 0.0
    %1529 = vmatprep.subr.mxu0 0.0
    %1530 = vmatpush1.msra.mxu0 0.0
    %1531 = vmatprep.subr.mxu0 0.0
    %1532 = vmatpush1.msra.mxu0 0.0
    %1533 = vmatprep.subr.mxu0 0.0
    %1534 = vmatpush1.msra.mxu0 0.0
    %1535 = vmatprep.subr.mxu0 0.0
    %1536 = vmatpush1.msra.mxu0 0.0
    %1537 = vmatprep.subr.mxu0 0.0
    %1538 = vmatpush1.msra.mxu0 0.0
    %1539 = vmatprep.subr.mxu0 0.0
    %1540 = vmatpush1.msra.mxu0 0.0
    %1541 = vmatprep.subr.mxu0 0.0
    %1542 = vmatpush1.msra.mxu0 0.0
    %1543 = vmatprep.subr.mxu0 0.0
    %1544 = vmatpush1.msra.mxu0 0.0
    %1545 = vmatprep.subr.mxu0 0.0
    %1546 = vmatpush1.msra.mxu0 0.0
    %1547 = vmatprep.subr.mxu0 0.0
    %1548 = vmatpush1.msra.mxu0 0.0
    %1549 = vmatprep.subr.mxu0 0.0
    %1550 = vmatpush1.msra.mxu0 0.0
    %1551 = vmatprep.subr.mxu0 0.0
    %1552 = vmatpush1.msra.mxu0 0.0
    %1553 = vmatprep.subr.mxu0 0.0
    %1554 = vmatpush1.msra.mxu0 0.0
    %1555 = vmatprep.subr.mxu0 0.0
    %1556 = vmatpush1.msra.mxu0 0.0
    %1557 = vmatprep.subr.mxu0 0.0
    %1558 = vmatpush1.msra.mxu0 0.0
    %1559 = vmatprep.subr.mxu0 0.0
    %1560 = vmatpush1.msra.mxu0 0.0
    %1561 = vmatprep.subr.mxu0 0.0
    %1562 = vmatpush1.msra.mxu0 0.0
    %1563 = vmatprep.subr.mxu0 0.0
    %1564 = vmatpush1.msra.mxu0 0.0
    %1565 = vmatprep.subr.mxu0 0.0
    %1566 = vmatpush1.msra.mxu0 0.0
    %1567 = vmatprep.mubr.f32.mxu0 0.0
    %1568 = vmatmul.mubr.f32.gmra.mrb[0].mxu0 %v1501
    %v1569 = vpop.f32.mrb[0].mxu0
    %v1570 = vadd.f32 %v1497, %v1569
    %v1571 = vpop.f32.mrb[0].mxu0
    %1572 = vdwg.mxu0
    %v1573 = vsel %vm1332, %v1570, 0.0
    %1574 = vadd.xlane.f32.xlu0 %v1573
    %v1575 = vpop.xlane.xlu0 %1574
    %v1576 = vmul.f32 %v1575, 0.015625
    %v1577 = vsub.f32 %v1570, %v1576
    %v1578 = vmul.f32 %v1577, %v1577
    %v1579 = vsel %vm1332, %v1578, 0.0
    %1580 = vadd.xlane.f32.xlu0 %v1579
    %v1581 = vpop.xlane.xlu0 %1580
    %v1582 = vmul.f32 %v1581, 0.015625
    %v1583 = vadd.f32 %v1582, 1e-05
    %v1584 = vrsqrt.pop %v1583
    %v1585 = vmul.f32 %v1577, %v1584
    %1587 = vset.pattern.permute.xlu0 0
    %1588 = vperm.xlu0 %1587, %v1361
    %v1589 = vpop.permute.xlu0 %1588
    %v1591 = vmul.f32 %v1585, %v1589
    %1593 = vset.pattern.permute.xlu0 0
    %1594 = vperm.xlu0 %1593, %v1362
    %v1595 = vpop.permute.xlu0 %1594
    %v1597 = vadd.f32 %v1591, %v1595
    %v1598 = vmax.f32 %v1597, 0.0
    %v1599 = vadd.f32 %v1598, %v1358
    %v1601 = vsel %vm1332, %v1599, 0
    %1603 = vmatprep.subr.mxu0 0.0
    %1604 = vmatpush1.msra.mxu0 %v1371
    %1605 = vmatprep.subr.mxu0 0.0
    %1606 = vmatpush1.msra.mxu0 %v1372
    %1607 = vmatprep.subr.mxu0 0.0
    %1608 = vmatpush1.msra.mxu0 %v1373
    %1609 = vmatprep.subr.mxu0 0.0
    %1610 = vmatpush1.msra.mxu0 %v1374
    %1611 = vmatprep.subr.mxu0 0.0
    %1612 = vmatpush1.msra.mxu0 %v1375
    %1613 = vmatprep.subr.mxu0 0.0
    %1614 = vmatpush1.msra.mxu0 %v1376
    %1615 = vmatprep.subr.mxu0 0.0
    %1616 = vmatpush1.msra.mxu0 %v1377
    %1617 = vmatprep.subr.mxu0 0.0
    %1618 = vmatpush1.msra.mxu0 %v1378
    %1619 = vmatprep.subr.mxu0 0.0
    %1620 = vmatpush1.msra.mxu0 0.0
    %1621 = vmatprep.subr.mxu0 0.0
    %1622 = vmatpush1.msra.mxu0 0.0
    %1623 = vmatprep.subr.mxu0 0.0
    %1624 = vmatpush1.msra.mxu0 0.0
    %1625 = vmatprep.subr.mxu0 0.0
    %1626 = vmatpush1.msra.mxu0 0.0
    %1627 = vmatprep.subr.mxu0 0.0
    %1628 = vmatpush1.msra.mxu0 0.0
    %1629 = vmatprep.subr.mxu0 0.0
    %1630 = vmatpush1.msra.mxu0 0.0
    %1631 = vmatprep.subr.mxu0 0.0
    %1632 = vmatpush1.msra.mxu0 0.0
    %1633 = vmatprep.subr.mxu0 0.0
    %1634 = vmatpush1.msra.mxu0 0.0
    %1635 = vmatprep.subr.mxu0 0.0
    %1636 = vmatpush1.msra.mxu0 0.0
    %1637 = vmatprep.subr.mxu0 0.0
    %1638 = vmatpush1.msra.mxu0 0.0
    %1639 = vmatprep.subr.mxu0 0.0
    %1640 = vmatpush1.msra.mxu0 0.0
    %1641 = vmatprep.subr.mxu0 0.0
    %1642 = vmatpush1.msra.mxu0 0.0
    %1643 = vmatprep.subr.mxu0 0.0
    %1644 = vmatpush1.msra.mxu0 0.0
    %1645 = vmatprep.subr.mxu0 0.0
    %1646 = vmatpush1.msra.mxu0 0.0
    %1647 = vmatprep.subr.mxu0 0.0
    %1648 = vmatpush1.msra.mxu0 0.0
    %1649 = vmatprep.subr.mxu0 0.0
    %1650 = vmatpush1.msra.mxu0 0.0
    %1651 = vmatprep.subr.mxu0 0.0
    %1652 = vmatpush1.msra.mxu0 0.0
    %1653 = vmatprep.subr.mxu0 0.0
    %1654 = vmatpush1.msra.mxu0 0.0
    %1655 = vmatprep.subr.mxu0 0.0
    %1656 = vmatpush1.msra.mxu0 0.0
    %1657 = vmatprep.subr.mxu0 0.0
    %1658 = vmatpush1.msra.mxu0 0.0
    %1659 = vmatprep.subr.mxu0 0.0
    %1660 = vmatpush1.msra.mxu0 0.0
    %1661 = vmatprep.subr.mxu0 0.0
    %1662 = vmatpush1.msra.mxu0 0.0
    %1663 = vmatprep.subr.mxu0 0.0
    %1664 = vmatpush1.msra.mxu0 0.0
    %1665 = vmatprep.subr.mxu0 0.0
    %1666 = vmatpush1.msra.mxu0 0.0
    %1667 = vmatprep.mubr.f32.mxu0 0.0
    %1668 = vmatmul.mubr.f32.gmra.mrb[0].mxu0 %v1601
    %v1669 = vpop.f32.mrb[0].mxu0
    %v1670 = vadd.f32 0.0, %v1669
    %v1671 = vpop.f32.mrb[0].mxu0
    %1672 = vdwg.mxu0
    %1673 = vst.msk [vmem:[#allocation2] sm:$0xff] %vm1452, %v1670
    %1675 = vrot.lane.b32.xlu0 %v1670, 127
    %v1676 = vpop.permute.xlu0 %1675
    %1678 = vst.msk [vmem:[#allocation2 + $0x8] sm:$0xff] %vm1452, %v1676
    %1679 = vrot.lane.b32.xlu0 %v1670, 126
    %v1680 = vpop.permute.xlu0 %1679
    %1682 = vst.msk [vmem:[#allocation2 + $0x10] sm:$0xff] %vm1452, %v1680
    %1683 = vrot.lane.b32.xlu0 %v1670, 125
    %v1684 = vpop.permute.xlu0 %1683
    %1686 = vst.msk [vmem:[#allocation2 + $0x18] sm:$0xff] %vm1452, %v1684
    %1687 = vrot.lane.b32.xlu0 %v1670, 124
    %v1688 = vpop.permute.xlu0 %1687
    %1690 = vst.msk [vmem:[#allocation2 + $0x20] sm:$0xff] %vm1452, %v1688
    %1691 = vst.msk [vmem:[#allocation2] sm:$0xff] %vm1471, %v1688
    %1692 = vrot.lane.b32.xlu0 %v1670, 123
    %v1693 = vpop.permute.xlu0 %1692
    %1695 = vst.msk [vmem:[#allocation2 + $0x8] sm:$0xff] %vm1471, %v1693
    %1696 = vrot.lane.b32.xlu0 %v1670, 122
    %v1697 = vpop.permute.xlu0 %1696
    %1699 = vst.msk [vmem:[#allocation2 + $0x10] sm:$0xff] %vm1471, %v1697
    %1700 = vrot.lane.b32.xlu0 %v1670, 121
    %v1701 = vpop.permute.xlu0 %1700
    %1703 = vst.msk [vmem:[#allocation2 + $0x18] sm:$0xff] %vm1471, %v1701
    %1704 = vrot.lane.b32.xlu0 %v1670, 120
    %v1705 = vpop.permute.xlu0 %1704
    %1707 = vst.msk [vmem:[#allocation2 + $0x20] sm:$0xff] %vm1471, %v1705
    %v1708 = vld [vmem:[#allocation2] sm:$0xff]
    %v1709 = vld [vmem:[#allocation2 + $0x8] sm:$0xff]
    %v1710 = vld [vmem:[#allocation2 + $0x10] sm:$0xff]
    %v1711 = vld [vmem:[#allocation2 + $0x18] sm:$0xff]
    %v1712 = vld [vmem:[#allocation2 + $0x20] sm:$0xff]
    %v1714 = vsel %vm1499, %v1363, 0
    %v1717 = vsel %vm1499, %v1364, 0
    %1719 = vmatprep.subr.mxu0 0.0
    %1720 = vmatpush1.msra.mxu0 %v1708
    %1721 = vmatprep.subr.mxu0 0.0
    %1722 = vmatpush1.msra.mxu0 %v1709
    %1723 = vmatprep.subr.mxu0 0.0
    %1724 = vmatpush1.msra.mxu0 %v1710
    %1725 = vmatprep.subr.mxu0 0.0
    %1726 = vmatpush1.msra.mxu0 %v1711
    %1727 = vmatprep.subr.mxu0 0.0
    %1728 = vmatpush1.msra.mxu0 %v1712
    %1729 = vmatprep.subr.mxu0 0.0
    %1730 = vmatpush1.msra.mxu0 0.0
    %1731 = vmatprep.subr.mxu0 0.0
    %1732 = vmatpush1.msra.mxu0 0.0
    %1733 = vmatprep.subr.mxu0 0.0
    %1734 = vmatpush1.msra.mxu0 0.0
    %1735 = vmatprep.subr.mxu0 0.0
    %1736 = vmatpush1.msra.mxu0 0.0
    %1737 = vmatprep.subr.mxu0 0.0
    %1738 = vmatpush1.msra.mxu0 0.0
    %1739 = vmatprep.subr.mxu0 0.0
    %1740 = vmatpush1.msra.mxu0 0.0
    %1741 = vmatprep.subr.mxu0 0.0
    %1742 = vmatpush1.msra.mxu0 0.0
    %1743 = vmatprep.subr.mxu0 0.0
    %1744 = vmatpush1.msra.mxu0 0.0
    %1745 = vmatprep.subr.mxu0 0.0
    %1746 = vmatpush1.msra.mxu0 0.0
    %1747 = vmatprep.subr.mxu0 0.0
    %1748 = vmatpush1.msra.mxu0 0.0
    %1749 = vmatprep.subr.mxu0 0.0
    %1750 = vmatpush1.msra.mxu0 0.0
    %1751 = vmatprep.subr.mxu0 0.0
    %1752 = vmatpush1.msra.mxu0 0.0
    %1753 = vmatprep.subr.mxu0 0.0
    %1754 = vmatpush1.msra.mxu0 0.0
    %1755 = vmatprep.subr.mxu0 0.0
    %1756 = vmatpush1.msra.mxu0 0.0
    %1757 = vmatprep.subr.mxu0 0.0
    %1758 = vmatpush1.msra.mxu0 0.0
    %1759 = vmatprep.subr.mxu0 0.0
    %1760 = vmatpush1.msra.mxu0 0.0
    %1761 = vmatprep.subr.mxu0 0.0
    %1762 = vmatpush1.msra.mxu0 0.0
    %1763 = vmatprep.subr.mxu0 0.0
    %1764 = vmatpush1.msra.mxu0 0.0
    %1765 = vmatprep.subr.mxu0 0.0
    %1766 = vmatpush1.msra.mxu0 0.0
    %1767 = vmatprep.subr.mxu0 0.0
    %1768 = vmatpush1.msra.mxu0 0.0
    %1769 = vmatprep.subr.mxu0 0.0
    %1770 = vmatpush1.msra.mxu0 0.0
    %1771 = vmatprep.subr.mxu0 0.0
    %1772 = vmatpush1.msra.mxu0 0.0
    %1773 = vmatprep.subr.mxu0 0.0
    %1774 = vmatpush1.msra.mxu0 0.0
    %1775 = vmatprep.subr.mxu0 0.0
    %1776 = vmatpush1.msra.mxu0 0.0
    %1777 = vmatprep.subr.mxu0 0.0
    %1778 = vmatpush1.msra.mxu0 0.0
    %1779 = vmatprep.subr.mxu0 0.0
    %1780 = vmatpush1.msra.mxu0 0.0
    %1781 = vmatprep.subr.mxu0 0.0
    %1782 = vmatpush1.msra.mxu0 0.0
    %1783 = vmatprep.mubr.f32.mxu0 0.0
    %1784 = vmatmul.mubr.f32.gmra.mrb[0].mxu0 %v1714
    %v1785 = vpop.f32.mrb[0].mxu0
    %v1786 = vadd.f32 0.0, %v1785
    %v1787 = vpop.f32.mrb[0].mxu0
    %1788 = vmatprep.mubr.f32.mxu0 0.0
    %1789 = vmatmul.mubr.f32.gmra.mrb[0].mxu0 %v1717
    %v1790 = vpop.f32.mrb[0].mxu0
    %v1791 = vadd.f32 0.0, %v1790
    %v1792 = vpop.f32.mrb[0].mxu0
    %1793 = vdwg.mxu0
    %v1794 = vld [vmem:[%s59] sm:$0xff]
    %v1795 = vld [vmem:[%s59 + $0x8] sm:$0xff]
    %v1796 = vld [vmem:[%s59 + $0x10] sm:$0xff]
    %v1797 = vld [vmem:[%s59 + $0x18] sm:$0xff]
    %v1798 = vld [vmem:[%s59 + $0x20] sm:$0xff]
    %v1799 = vld [vmem:[%s59 + $0x28] sm:$0xff]
    %v1800 = vld [vmem:[%s59 + $0x30] sm:$0xff]
    %v1801 = vld [vmem:[%s59 + $0x38] sm:$0xff]
    %1803 = vset.pattern.permute.xlu0 0
    %1804 = vperm.xlu0 %1803, %v1365
    %v1805 = vpop.permute.xlu0 %1804
    %1808 = vset.pattern.permute.xlu0 0
    %1809 = vperm.xlu0 %1808, %v1366
    %v1810 = vpop.permute.xlu0 %1809
    %v1813 = vsel %vm1332, %v1786, 0
    %v1816 = vsel %vm1332, %v1791, 0
    %1818 = vmatprep.subr.mxu0 0.0
    %1819 = vmatpush1.msra.mxu0 %v1794
    %1820 = vmatprep.subr.mxu0 0.0
    %1821 = vmatpush1.msra.mxu0 %v1795
    %1822 = vmatprep.subr.mxu0 0.0
    %1823 = vmatpush1.msra.mxu0 %v1796
    %1824 = vmatprep.subr.mxu0 0.0
    %1825 = vmatpush1.msra.mxu0 %v1797
    %1826 = vmatprep.subr.mxu0 0.0
    %1827 = vmatpush1.msra.mxu0 %v1798
    %1828 = vmatprep.subr.mxu0 0.0
    %1829 = vmatpush1.msra.mxu0 %v1799
    %1830 = vmatprep.subr.mxu0 0.0
    %1831 = vmatpush1.msra.mxu0 %v1800
    %1832 = vmatprep.subr.mxu0 0.0
    %1833 = vmatpush1.msra.mxu0 %v1801
    %1834 = vmatprep.subr.mxu0 0.0
    %1835 = vmatpush1.msra.mxu0 0.0
    %1836 = vmatprep.subr.mxu0 0.0
    %1837 = vmatpush1.msra.mxu0 0.0
    %1838 = vmatprep.subr.mxu0 0.0
    %1839 = vmatpush1.msra.mxu0 0.0
    %1840 = vmatprep.subr.mxu0 0.0
    %1841 = vmatpush1.msra.mxu0 0.0
    %1842 = vmatprep.subr.mxu0 0.0
    %1843 = vmatpush1.msra.mxu0 0.0
    %1844 = vmatprep.subr.mxu0 0.0
    %1845 = vmatpush1.msra.mxu0 0.0
    %1846 = vmatprep.subr.mxu0 0.0
    %1847 = vmatpush1.msra.mxu0 0.0
    %1848 = vmatprep.subr.mxu0 0.0
    %1849 = vmatpush1.msra.mxu0 0.0
    %1850 = vmatprep.subr.mxu0 0.0
    %1851 = vmatpush1.msra.mxu0 0.0
    %1852 = vmatprep.subr.mxu0 0.0
    %1853 = vmatpush1.msra.mxu0 0.0
    %1854 = vmatprep.subr.mxu0 0.0
    %1855 = vmatpush1.msra.mxu0 0.0
    %1856 = vmatprep.subr.mxu0 0.0
    %1857 = vmatpush1.msra.mxu0 0.0
    %1858 = vmatprep.subr.mxu0 0.0
    %1859 = vmatpush1.msra.mxu0 0.0
    %1860 = vmatprep.subr.mxu0 0.0
    %1861 = vmatpush1.msra.mxu0 0.0
    %1862 = vmatprep.subr.mxu0 0.0
    %1863 = vmatpush1.msra.mxu0 0.0
    %1864 = vmatprep.subr.mxu0 0.0
    %1865 = vmatpush1.msra.mxu0 0.0
    %1866 = vmatprep.subr.mxu0 0.0
    %1867 = vmatpush1.msra.mxu0 0.0
    %1868 = vmatprep.subr.mxu0 0.0
    %1869 = vmatpush1.msra.mxu0 0.0
    %1870 = vmatprep.subr.mxu0 0.0
    %1871 = vmatpush1.msra.mxu0 0.0
    %1872 = vmatprep.subr.mxu0 0.0
    %1873 = vmatpush1.msra.mxu0 0.0
    %1874 = vmatprep.subr.mxu0 0.0
    %1875 = vmatpush1.msra.mxu0 0.0
    %1876 = vmatprep.subr.mxu0 0.0
    %1877 = vmatpush1.msra.mxu0 0.0
    %1878 = vmatprep.subr.mxu0 0.0
    %1879 = vmatpush1.msra.mxu0 0.0
    %1880 = vmatprep.subr.mxu0 0.0
    %1881 = vmatpush1.msra.mxu0 0.0
    %1882 = vmatprep.mubr.f32.mxu0 0.0
    %1883 = vmatmul.mubr.f32.gmra.mrb[0].mxu0 %v1813
    %v1884 = vpop.f32.mrb[0].mxu0
    %v1885 = vadd.f32 %v1805, %v1884
    %v1886 = vpop.f32.mrb[0].mxu0
    %1887 = vmatprep.mubr.f32.mxu0 0.0
    %1888 = vmatmul.mubr.f32.gmra.mrb[0].mxu0 %v1816
    %v1889 = vpop.f32.mrb[0].mxu0
    %v1890 = vadd.f32 %v1810, %v1889
    %v1891 = vpop.f32.mrb[0].mxu0
    %1892 = vdwg.mxu0
    %v1893 = vsel %vm1452, %v1885, 0.0
    %1894 = vadd.xlane.f32.xlu0 %v1893
    %v1895 = vpop.xlane.xlu0 %1894
    %v1896 = vsel %vm1452, %v1890, 0.0
    %1897 = vadd.xlane.f32.xlu0 %v1896
    %v1898 = vpop.xlane.xlu0 %1897
    %v1899 = vmul.f32 %v1895, 0.03125
    %v1900 = vmul.f32 %v1898, 0.03125
    %v1901 = vsub.f32 %v1885, %v1899
    %v1902 = vsub.f32 %v1890, %v1900
    %v1903 = vmul.f32 %v1901, %v1901
    %v1904 = vmul.f32 %v1902, %v1902
    %v1905 = vsel %vm1452, %v1903, 0.0
    %1906 = vadd.xlane.f32.xlu0 %v1905
    %v1907 = vpop.xlane.xlu0 %1906
    %v1908 = vsel %vm1452, %v1904, 0.0
    %1909 = vadd.xlane.f32.xlu0 %v1908
    %v1910 = vpop.xlane.xlu0 %1909
    %v1911 = vmul.f32 %v1907, 0.03125
    %v1912 = vmul.f32 %v1910, 0.03125
    %v1913 = vadd.f32 %v1911, 1e-05
    %v1914 = vadd.f32 %v1912, 1e-05
    %v1915 = vrsqrt.pop %v1913
    %v1916 = vrsqrt.pop %v1914
    %v1917 = vmul.f32 %v1901, %v1915
    %v1918 = vmul.f32 %v1902, %v1916
    %1920 = vset.pattern.permute.xlu0 0
    %1921 = vperm.xlu0 %1920, %v1367
    %v1922 = vpop.permute.xlu0 %1921
    %1925 = vset.pattern.permute.xlu0 0
    %1926 = vperm.xlu0 %1925, %v1368
    %v1927 = vpop.permute.xlu0 %1926
    %v1929 = vmul.f32 %v1917, %v1922
    %v1930 = vmul.f32 %v1918, %v1927
    %1932 = vset.pattern.permute.xlu0 0
    %1933 = vperm.xlu0 %1932, %v1369
    %v1934 = vpop.permute.xlu0 %1933
    %1937 = vset.pattern.permute.xlu0 0
    %1938 = vperm.xlu0 %1937, %v1370
    %v1939 = vpop.permute.xlu0 %1938
    %v1941 = vadd.f32 %v1929, %v1934
    %v1942 = vadd.f32 %v1930, %v1939
    %v1943 = vmax.f32 %v1941, 0.0
    %v1944 = vmax.f32 %v1942, 0.0
    %vm1945 = vcmask 130048
    %1946 = vst.msk [vmem:[#allocation3] sm:$0xff] %vm1945, %v1943
    %1947 = vst.msk [vmem:[#allocation3 + $0x8] sm:$0xff] %vm1945, %v1944
    %1950 = vrot.lane.b32.xlu0 %v1943, 112
    %v1951 = vpop.permute.xlu0 %1950
    %1952 = vrot.lane.b32.xlu0 %v1944, 112
    %v1953 = vpop.permute.xlu0 %1952
    %s1956 = scalar_lea.vmem [#allocation3], 16
    %1957 = vst.msk [vmem:[%s1956] sm:$0xff] %vm1945, %v1951
    %1958 = vst.msk [vmem:[%s1956 + $0x8] sm:$0xff] %vm1945, %v1953
    %v1959 = vld [vmem:[#allocation3] sm:$0xff]
    %v1960 = vld [vmem:[#allocation3 + $0x8] sm:$0xff]
    %v1961 = vld [vmem:[#allocation3 + $0x10] sm:$0xff]
    %v1962 = vld [vmem:[#allocation3 + $0x18] sm:$0xff]
    %v1963 = vsel %vm1945, %v1959, 0.0
    %1964 = vadd.xlane.f32.xlu0 %v1963
    %v1965 = vpop.xlane.xlu0 %1964
    %v1966 = vsel %vm1945, %v1960, 0.0
    %1967 = vadd.xlane.f32.xlu0 %v1966
    %v1968 = vpop.xlane.xlu0 %1967
    %v1969 = vsel %vm1945, %v1961, 0.0
    %1970 = vadd.xlane.f32.xlu0 %v1969
    %v1971 = vpop.xlane.xlu0 %1970
    %v1972 = vsel %vm1945, %v1962, 0.0
    %1973 = vadd.xlane.f32.xlu0 %v1972
    %v1974 = vpop.xlane.xlu0 %1973
    %v1975 = vrcp.pop 16.0
    %v1976 = vmul.f32 %v1965, %v1975
    %v1977 = vmul.f32 %v1968, %v1975
    %v1978 = vmul.f32 %v1971, %v1975
    %v1979 = vmul.f32 %v1974, %v1975
    %v1980 = vld [vmem:[%s61] sm:$0xff]
    %v1981 = vld [vmem:[%s61 + $0x8] sm:$0xff]
    %v1982 = vld [vmem:[%s63] sm:$0x1]
    %v1983 = vld [vmem:[%s65] sm:$0x1]
    %v1984 = vld [vmem:[%s67] sm:$0x1]
    %v1985 = vld [vmem:[#allocation7] sm:$0x1]
    %v1987 = vlaneseq
    %v1988 = vshrl.u32 %v1987, 7
    %v1989 = vsub.s32 0, %v1988
    %v1990 = vrot.slane %v1982, %v1989
    %v1996 = vlaneseq
    %v1997 = vand.u32 %v1996, 127
    %v1998 = vlaneseq
    %v1999 = vshrl.u32 %v1998, 7
    %v2000 = vsub.s32 %v1997, %v1999
    %v2001 = vrot.slane %v1976, %v2000
    %v2002 = vadd.s32 %v1997, 4294967288
    %v2003 = vlaneseq
    %v2004 = vshrl.u32 %v2003, 7
    %v2005 = vsub.s32 %v2002, %v2004
    %v2006 = vrot.slane %v1977, %v2005
    %vm2007 = vcmask 130112
    %v2008 = vsel %vm2007, %v2006, %v2001
    %v2009 = vlaneseq
    %v2010 = vshrl.u32 %v2009, 7
    %v2011 = vsub.s32 %v1997, %v2010
    %v2012 = vrot.slane %v1978, %v2011
    %v2013 = vlaneseq
    %v2014 = vshrl.u32 %v2013, 7
    %v2015 = vsub.s32 %v2002, %v2014
    %v2016 = vrot.slane %v1979, %v2015
    %v2017 = vsel %vm2007, %v2016, %v2012
    %vm2018 = vcmask 1041409
    %v2019 = vsel %vm2018, %v2017, %v2008
    %v2020 = vsel %vm1945, %v2019, 0
    %2022 = vmatprep.subr.mxu0 0.0
    %2023 = vmatpush1.msra.mxu0 %v1980
    %2024 = vmatprep.subr.mxu0 0.0
    %2025 = vmatpush1.msra.mxu0 %v1981
    %2026 = vmatprep.subr.mxu0 0.0
    %2027 = vmatpush1.msra.mxu0 0.0
    %2028 = vmatprep.subr.mxu0 0.0
    %2029 = vmatpush1.msra.mxu0 0.0
    %2030 = vmatprep.subr.mxu0 0.0
    %2031 = vmatpush1.msra.mxu0 0.0
    %2032 = vmatprep.subr.mxu0 0.0
    %2033 = vmatpush1.msra.mxu0 0.0
    %2034 = vmatprep.subr.mxu0 0.0
    %2035 = vmatpush1.msra.mxu0 0.0
    %2036 = vmatprep.subr.mxu0 0.0
    %2037 = vmatpush1.msra.mxu0 0.0
    %2038 = vmatprep.subr.mxu0 0.0
    %2039 = vmatpush1.msra.mxu0 0.0
    %2040 = vmatprep.subr.mxu0 0.0
    %2041 = vmatpush1.msra.mxu0 0.0
    %2042 = vmatprep.subr.mxu0 0.0
    %2043 = vmatpush1.msra.mxu0 0.0
    %2044 = vmatprep.subr.mxu0 0.0
    %2045 = vmatpush1.msra.mxu0 0.0
    %2046 = vmatprep.subr.mxu0 0.0
    %2047 = vmatpush1.msra.mxu0 0.0
    %2048 = vmatprep.subr.mxu0 0.0
    %2049 = vmatpush1.msra.mxu0 0.0
    %2050 = vmatprep.subr.mxu0 0.0
    %2051 = vmatpush1.msra.mxu0 0.0
    %2052 = vmatprep.subr.mxu0 0.0
    %2053 = vmatpush1.msra.mxu0 0.0
    %2054 = vmatprep.subr.mxu0 0.0
    %2055 = vmatpush1.msra.mxu0 0.0
    %2056 = vmatprep.subr.mxu0 0.0
    %2057 = vmatpush1.msra.mxu0 0.0
    %2058 = vmatprep.subr.mxu0 0.0
    %2059 = vmatpush1.msra.mxu0 0.0
    %2060 = vmatprep.subr.mxu0 0.0
    %2061 = vmatpush1.msra.mxu0 0.0
    %2062 = vmatprep.subr.mxu0 0.0
    %2063 = vmatpush1.msra.mxu0 0.0
    %2064 = vmatprep.subr.mxu0 0.0
    %2065 = vmatpush1.msra.mxu0 0.0
    %2066 = vmatprep.subr.mxu0 0.0
    %2067 = vmatpush1.msra.mxu0 0.0
    %2068 = vmatprep.subr.mxu0 0.0
    %2069 = vmatpush1.msra.mxu0 0.0
    %2070 = vmatprep.subr.mxu0 0.0
    %2071 = vmatpush1.msra.mxu0 0.0
    %2072 = vmatprep.subr.mxu0 0.0
    %2073 = vmatpush1.msra.mxu0 0.0
    %2074 = vmatprep.subr.mxu0 0.0
    %2075 = vmatpush1.msra.mxu0 0.0
    %2076 = vmatprep.subr.mxu0 0.0
    %2077 = vmatpush1.msra.mxu0 0.0
    %2078 = vmatprep.subr.mxu0 0.0
    %2079 = vmatpush1.msra.mxu0 0.0
    %2080 = vmatprep.subr.mxu0 0.0
    %2081 = vmatpush1.msra.mxu0 0.0
    %2082 = vmatprep.subr.mxu0 0.0
    %2083 = vmatpush1.msra.mxu0 0.0
    %2084 = vmatprep.subr.mxu0 0.0
    %2085 = vmatpush1.msra.mxu0 0.0
    %2086 = vmatprep.mubr.f32.mxu0 0.0
    %2087 = vmatmul.mubr.f32.gmra.mrb[0].mxu0 %v2020
    %v2088 = vpop.f32.mrb[0].mxu0
    %v2089 = vadd.f32 %v1990, %v2088
    %v2090 = vpop.f32.mrb[0].mxu0
    %2091 = vdwg.mxu0
    %vm2092 = vcmask 517120
    %v2093 = vsel %vm2092, %v2089, 0.0
    %v2094 = vrot.slane %v2093, 4
    %v2095 = vadd.f32 %v2093, %v2094
    %v2096 = vrot.slane %v2095, 2
    %v2097 = vadd.f32 %v2095, %v2096
    %v2098 = vrot.slane %v2097, 1
    %v2099 = vadd.f32 %v2097, %v2098
    %v2100 = vmul.f32 %v2099, 0.5
    %v2101 = vsub.f32 %v2089, %v2100
    %v2102 = vmul.f32 %v2101, %v2101
    %v2103 = vsel %vm2092, %v2102, 0.0
    %v2104 = vrot.slane %v2103, 4
    %v2105 = vadd.f32 %v2103, %v2104
    %v2106 = vrot.slane %v2105, 2
    %v2107 = vadd.f32 %v2105, %v2106
    %v2108 = vrot.slane %v2107, 1
    %v2109 = vadd.f32 %v2107, %v2108
    %v2110 = vmul.f32 %v2109, 0.5
    %v2111 = vadd.f32 %v2110, 1e-05
    %v2112 = vrsqrt.pop %v2111
    %v2113 = vmul.f32 %v2101, %v2112
    %v2115 = vlaneseq
    %v2116 = vshrl.u32 %v2115, 7
    %v2117 = vsub.s32 0, %v2116
    %v2118 = vrot.slane %v1983, %v2117
    %v2120 = vmul.f32 %v2113, %v2118
    %v2122 = vlaneseq
    %v2123 = vshrl.u32 %v2122, 7
    %v2124 = vsub.s32 0, %v2123
    %v2125 = vrot.slane %v1984, %v2124
    %v2127 = vadd.f32 %v2120, %v2125
    %vm2128 = vcmp.ge.f32.partialorder %v2127, 0.0
    %v2130 = vlaneseq
    %v2131 = vshrl.u32 %v2130, 7
    %v2132 = vsub.s32 0, %v2131
    %v2133 = vrot.slane %v1985, %v2132
    %2134 = vset.pattern.permute.xlu0 0
    %2135 = vperm.xlu0 %2134, %v2133
    %v2136 = vpop.permute.xlu0 %2135
    %v2138 = vmul.f32 %v2136, %v2127
    %v2139 = vsel %vm2128, %v2127, %v2138
    %v2140 = vld [vmem:[%s71] sm:$0xff]
    %v2141 = vld [vmem:[%s71 + $0x8] sm:$0xff]
    %v2142 = vld [vmem:[%s71 + $0x10] sm:$0xff]
    %v2143 = vld [vmem:[%s71 + $0x18] sm:$0xff]
    %v2144 = vld [vmem:[%s71 + $0x20] sm:$0xff]
    %v2145 = vld [vmem:[%s71 + $0x28] sm:$0xff]
    %v2146 = vld [vmem:[%s71 + $0x30] sm:$0xff]
    %v2147 = vld [vmem:[%s71 + $0x38] sm:$0xff]
    %v2148 = vld [vmem:[%s73] sm:$0x1]
    %v2149 = vld [vmem:[%s75] sm:$0x1]
    %v2150 = vld [vmem:[%s77] sm:$0x1]
    %v2151 = vld [vmem:[#allocation8] sm:$0x1]
    %v2153 = vlaneseq
    %v2154 = vshrl.u32 %v2153, 7
    %v2155 = vsub.s32 0, %v2154
    %v2156 = vrot.slane %v2148, %v2155
    %v2159 = vsel %vm1332, %v2139, 0
    %2161 = vmatprep.subr.mxu0 0.0
    %2162 = vmatpush1.msra.mxu0 %v2140
    %2163 = vmatprep.subr.mxu0 0.0
    %2164 = vmatpush1.msra.mxu0 %v2141
    %2165 = vmatprep.subr.mxu0 0.0
    %2166 = vmatpush1.msra.mxu0 %v2142
    %2167 = vmatprep.subr.mxu0 0.0
    %2168 = vmatpush1.msra.mxu0 %v2143
    %2169 = vmatprep.subr.mxu0 0.0
    %2170 = vmatpush1.msra.mxu0 %v2144
    %2171 = vmatprep.subr.mxu0 0.0
    %2172 = vmatpush1.msra.mxu0 %v2145
    %2173 = vmatprep.subr.mxu0 0.0
    %2174 = vmatpush1.msra.mxu0 %v2146
    %2175 = vmatprep.subr.mxu0 0.0
    %2176 = vmatpush1.msra.mxu0 %v2147
    %2177 = vmatprep.subr.mxu0 0.0
    %2178 = vmatpush1.msra.mxu0 0.0
    %2179 = vmatprep.subr.mxu0 0.0
    %2180 = vmatpush1.msra.mxu0 0.0
    %2181 = vmatprep.subr.mxu0 0.0
    %2182 = vmatpush1.msra.mxu0 0.0
    %2183 = vmatprep.subr.mxu0 0.0
    %2184 = vmatpush1.msra.mxu0 0.0
    %2185 = vmatprep.subr.mxu0 0.0
    %2186 = vmatpush1.msra.mxu0 0.0
    %2187 = vmatprep.subr.mxu0 0.0
    %2188 = vmatpush1.msra.mxu0 0.0
    %2189 = vmatprep.subr.mxu0 0.0
    %2190 = vmatpush1.msra.mxu0 0.0
    %2191 = vmatprep.subr.mxu0 0.0
    %2192 = vmatpush1.msra.mxu0 0.0
    %2193 = vmatprep.subr.mxu0 0.0
    %2194 = vmatpush1.msra.mxu0 0.0
    %2195 = vmatprep.subr.mxu0 0.0
    %2196 = vmatpush1.msra.mxu0 0.0
    %2197 = vmatprep.subr.mxu0 0.0
    %2198 = vmatpush1.msra.mxu0 0.0
    %2199 = vmatprep.subr.mxu0 0.0
    %2200 = vmatpush1.msra.mxu0 0.0
    %2201 = vmatprep.subr.mxu0 0.0
    %2202 = vmatpush1.msra.mxu0 0.0
    %2203 = vmatprep.subr.mxu0 0.0
    %2204 = vmatpush1.msra.mxu0 0.0
    %2205 = vmatprep.subr.mxu0 0.0
    %2206 = vmatpush1.msra.mxu0 0.0
    %2207 = vmatprep.subr.mxu0 0.0
    %2208 = vmatpush1.msra.mxu0 0.0
    %2209 = vmatprep.subr.mxu0 0.0
    %2210 = vmatpush1.msra.mxu0 0.0
    %2211 = vmatprep.subr.mxu0 0.0
    %2212 = vmatpush1.msra.mxu0 0.0
    %2213 = vmatprep.subr.mxu0 0.0
    %2214 = vmatpush1.msra.mxu0 0.0
    %2215 = vmatprep.subr.mxu0 0.0
    %2216 = vmatpush1.msra.mxu0 0.0
    %2217 = vmatprep.subr.mxu0 0.0
    %2218 = vmatpush1.msra.mxu0 0.0
    %2219 = vmatprep.subr.mxu0 0.0
    %2220 = vmatpush1.msra.mxu0 0.0
    %2221 = vmatprep.subr.mxu0 0.0
    %2222 = vmatpush1.msra.mxu0 0.0
    %2223 = vmatprep.subr.mxu0 0.0
    %2224 = vmatpush1.msra.mxu0 0.0
    %2225 = vmatprep.mubr.f32.mxu0 0.0
    %2226 = vmatmul.mubr.f32.gmra.mrb[0].mxu0 %v2159
    %v2227 = vpop.f32.mrb[0].mxu0
    %v2228 = vadd.f32 %v2156, %v2227
    %v2229 = vpop.f32.mrb[0].mxu0
    %2230 = vdwg.mxu0
    %vm2231 = vcmask 386048
    %v2232 = vsel %vm2231, %v2228, 0.0
    %v2233 = vrot.slane %v2232, 4
    %v2234 = vadd.f32 %v2232, %v2233
    %v2235 = vrot.slane %v2234, 2
    %v2236 = vadd.f32 %v2234, %v2235
    %v2237 = vrot.slane %v2236, 1
    %v2238 = vadd.f32 %v2236, %v2237
    %v2239 = vmul.f32 %v2238, 0.5
    %v2240 = vsub.f32 %v2228, %v2239
    %v2241 = vmul.f32 %v2240, %v2240
    %v2242 = vsel %vm2231, %v2241, 0.0
    %v2243 = vrot.slane %v2242, 4
    %v2244 = vadd.f32 %v2242, %v2243
    %v2245 = vrot.slane %v2244, 2
    %v2246 = vadd.f32 %v2244, %v2245
    %v2247 = vrot.slane %v2246, 1
    %v2248 = vadd.f32 %v2246, %v2247
    %v2249 = vmul.f32 %v2248, 0.5
    %v2250 = vadd.f32 %v2249, 1e-05
    %v2251 = vrsqrt.pop %v2250
    %v2252 = vmul.f32 %v2240, %v2251
    %v2254 = vlaneseq
    %v2255 = vshrl.u32 %v2254, 7
    %v2256 = vsub.s32 0, %v2255
    %v2257 = vrot.slane %v2149, %v2256
    %v2259 = vmul.f32 %v2252, %v2257
    %v2261 = vlaneseq
    %v2262 = vshrl.u32 %v2261, 7
    %v2263 = vsub.s32 0, %v2262
    %v2264 = vrot.slane %v2150, %v2263
    %v2266 = vadd.f32 %v2259, %v2264
    %vm2267 = vcmp.ge.f32.partialorder %v2266, 0.0
    %v2269 = vlaneseq
    %v2270 = vshrl.u32 %v2269, 7
    %v2271 = vsub.s32 0, %v2270
    %v2272 = vrot.slane %v2151, %v2271
    %2273 = vset.pattern.permute.xlu0 0
    %2274 = vperm.xlu0 %2273, %v2272
    %v2275 = vpop.permute.xlu0 %2274
    %v2277 = vmul.f32 %v2275, %v2266
    %v2278 = vsel %vm2267, %v2266, %v2277
    %v2279 = vld [vmem:[%s81] sm:$0xff]
    %v2280 = vld [vmem:[%s81 + $0x8] sm:$0xff]
    %v2281 = vld [vmem:[%s81 + $0x10] sm:$0xff]
    %v2282 = vld [vmem:[%s81 + $0x18] sm:$0xff]
    %v2283 = vld [vmem:[%s81 + $0x20] sm:$0xff]
    %v2284 = vld [vmem:[%s81 + $0x28] sm:$0xff]
    %v2285 = vld [vmem:[%s83] sm:$0x1]
    %v2286 = vld [vmem:[%s85] sm:$0x1]
    %v2287 = vld [vmem:[%s87] sm:$0x1]
    %v2288 = vld [vmem:[#allocation9] sm:$0x1]
    %v2290 = vlaneseq
    %v2291 = vshrl.u32 %v2290, 7
    %v2292 = vsub.s32 0, %v2291
    %v2293 = vrot.slane %v2285, %v2292
    %vm2295 = vcmask 392192
    %v2297 = vsel %vm2295, %v2278, 0
    %2299 = vmatprep.subr.mxu0 0.0
    %2300 = vmatpush1.msra.mxu0 %v2279
    %2301 = vmatprep.subr.mxu0 0.0
    %2302 = vmatpush1.msra.mxu0 %v2280
    %2303 = vmatprep.subr.mxu0 0.0
    %2304 = vmatpush1.msra.mxu0 %v2281
    %2305 = vmatprep.subr.mxu0 0.0
    %2306 = vmatpush1.msra.mxu0 %v2282
    %2307 = vmatprep.subr.mxu0 0.0
    %2308 = vmatpush1.msra.mxu0 %v2283
    %2309 = vmatprep.subr.mxu0 0.0
    %2310 = vmatpush1.msra.mxu0 %v2284
    %2311 = vmatprep.subr.mxu0 0.0
    %2312 = vmatpush1.msra.mxu0 0.0
    %2313 = vmatprep.subr.mxu0 0.0
    %2314 = vmatpush1.msra.mxu0 0.0
    %2315 = vmatprep.subr.mxu0 0.0
    %2316 = vmatpush1.msra.mxu0 0.0
    %2317 = vmatprep.subr.mxu0 0.0
    %2318 = vmatpush1.msra.mxu0 0.0
    %2319 = vmatprep.subr.mxu0 0.0
    %2320 = vmatpush1.msra.mxu0 0.0
    %2321 = vmatprep.subr.mxu0 0.0
    %2322 = vmatpush1.msra.mxu0 0.0
    %2323 = vmatprep.subr.mxu0 0.0
    %2324 = vmatpush1.msra.mxu0 0.0
    %2325 = vmatprep.subr.mxu0 0.0
    %2326 = vmatpush1.msra.mxu0 0.0
    %2327 = vmatprep.subr.mxu0 0.0
    %2328 = vmatpush1.msra.mxu0 0.0
    %2329 = vmatprep.subr.mxu0 0.0
    %2330 = vmatpush1.msra.mxu0 0.0
    %2331 = vmatprep.subr.mxu0 0.0
    %2332 = vmatpush1.msra.mxu0 0.0
    %2333 = vmatprep.subr.mxu0 0.0
    %2334 = vmatpush1.msra.mxu0 0.0
    %2335 = vmatprep.subr.mxu0 0.0
    %2336 = vmatpush1.msra.mxu0 0.0
    %2337 = vmatprep.subr.mxu0 0.0
    %2338 = vmatpush1.msra.mxu0 0.0
    %2339 = vmatprep.subr.mxu0 0.0
    %2340 = vmatpush1.msra.mxu0 0.0
    %2341 = vmatprep.subr.mxu0 0.0
    %2342 = vmatpush1.msra.mxu0 0.0
    %2343 = vmatprep.subr.mxu0 0.0
    %2344 = vmatpush1.msra.mxu0 0.0
    %2345 = vmatprep.subr.mxu0 0.0
    %2346 = vmatpush1.msra.mxu0 0.0
    %2347 = vmatprep.subr.mxu0 0.0
    %2348 = vmatpush1.msra.mxu0 0.0
    %2349 = vmatprep.subr.mxu0 0.0
    %2350 = vmatpush1.msra.mxu0 0.0
    %2351 = vmatprep.subr.mxu0 0.0
    %2352 = vmatpush1.msra.mxu0 0.0
    %2353 = vmatprep.subr.mxu0 0.0
    %2354 = vmatpush1.msra.mxu0 0.0
    %2355 = vmatprep.subr.mxu0 0.0
    %2356 = vmatpush1.msra.mxu0 0.0
    %2357 = vmatprep.subr.mxu0 0.0
    %2358 = vmatpush1.msra.mxu0 0.0
    %2359 = vmatprep.subr.mxu0 0.0
    %2360 = vmatpush1.msra.mxu0 0.0
    %2361 = vmatprep.subr.mxu0 0.0
    %2362 = vmatpush1.msra.mxu0 0.0
    %2363 = vmatprep.mubr.f32.mxu0 0.0
    %2364 = vmatmul.mubr.f32.gmra.mrb[0].mxu0 %v2297
    %v2365 = vpop.f32.mrb[0].mxu0
    %v2366 = vadd.f32 %v2293, %v2365
    %v2367 = vpop.f32.mrb[0].mxu0
    %2368 = vdwg.mxu0
    %vm2369 = vcmask 254976
    %v2370 = vsel %vm2369, %v2366, 0.0
    %v2371 = vrot.slane %v2370, 4
    %v2372 = vadd.f32 %v2370, %v2371
    %v2373 = vrot.slane %v2372, 2
    %v2374 = vadd.f32 %v2372, %v2373
    %v2375 = vrot.slane %v2374, 1
    %v2376 = vadd.f32 %v2374, %v2375
    %v2377 = vmul.f32 %v2376, 0.5
    %v2378 = vsub.f32 %v2366, %v2377
    %v2379 = vmul.f32 %v2378, %v2378
    %v2380 = vsel %vm2369, %v2379, 0.0
    %v2381 = vrot.slane %v2380, 4
    %v2382 = vadd.f32 %v2380, %v2381
    %v2383 = vrot.slane %v2382, 2
    %v2384 = vadd.f32 %v2382, %v2383
    %v2385 = vrot.slane %v2384, 1
    %v2386 = vadd.f32 %v2384, %v2385
    %v2387 = vmul.f32 %v2386, 0.5
    %v2388 = vadd.f32 %v2387, 1e-05
    %v2389 = vrsqrt.pop %v2388
    %v2390 = vmul.f32 %v2378, %v2389
    %v2392 = vlaneseq
    %v2393 = vshrl.u32 %v2392, 7
    %v2394 = vsub.s32 0, %v2393
    %v2395 = vrot.slane %v2286, %v2394
    %v2397 = vmul.f32 %v2390, %v2395
    %v2399 = vlaneseq
    %v2400 = vshrl.u32 %v2399, 7
    %v2401 = vsub.s32 0, %v2400
    %v2402 = vrot.slane %v2287, %v2401
    %v2404 = vadd.f32 %v2397, %v2402
    %vm2405 = vcmp.ge.f32.partialorder %v2404, 0.0
    %v2407 = vlaneseq
    %v2408 = vshrl.u32 %v2407, 7
    %v2409 = vsub.s32 0, %v2408
    %v2410 = vrot.slane %v2288, %v2409
    %2411 = vset.pattern.permute.xlu0 0
    %2412 = vperm.xlu0 %2411, %v2410
    %v2413 = vpop.permute.xlu0 %2412
    %v2415 = vmul.f32 %v2413, %v2404
    %v2416 = vsel %vm2405, %v2404, %v2415
    %v2417 = vld [vmem:[%s91] sm:$0xff]
    %v2418 = vld [vmem:[%s91 + $0x8] sm:$0xff]
    %v2419 = vld [vmem:[%s91 + $0x10] sm:$0xff]
    %v2420 = vld [vmem:[%s91 + $0x18] sm:$0xff]
    %v2421 = vld [vmem:[%s93] sm:$0x1]
    %v2423 = vlaneseq
    %v2424 = vshrl.u32 %v2423, 7
    %v2425 = vsub.s32 0, %v2424
    %v2426 = vrot.slane %v2421, %v2425
    %v2429 = vsel %vm1452, %v2416, 0
    %2431 = vmatprep.subr.mxu0 0.0
    %2432 = vmatpush1.msra.mxu0 %v2417
    %2433 = vmatprep.subr.mxu0 0.0
    %2434 = vmatpush1.msra.mxu0 %v2418
    %2435 = vmatprep.subr.mxu0 0.0
    %2436 = vmatpush1.msra.mxu0 %v2419
    %2437 = vmatprep.subr.mxu0 0.0
    %2438 = vmatpush1.msra.mxu0 %v2420
    %2439 = vmatprep.subr.mxu0 0.0
    %2440 = vmatpush1.msra.mxu0 0.0
    %2441 = vmatprep.subr.mxu0 0.0
    %2442 = vmatpush1.msra.mxu0 0.0
    %2443 = vmatprep.subr.mxu0 0.0
    %2444 = vmatpush1.msra.mxu0 0.0
    %2445 = vmatprep.subr.mxu0 0.0
    %2446 = vmatpush1.msra.mxu0 0.0
    %2447 = vmatprep.subr.mxu0 0.0
    %2448 = vmatpush1.msra.mxu0 0.0
    %2449 = vmatprep.subr.mxu0 0.0
    %2450 = vmatpush1.msra.mxu0 0.0
    %2451 = vmatprep.subr.mxu0 0.0
    %2452 = vmatpush1.msra.mxu0 0.0
    %2453 = vmatprep.subr.mxu0 0.0
    %2454 = vmatpush1.msra.mxu0 0.0
    %2455 = vmatprep.subr.mxu0 0.0
    %2456 = vmatpush1.msra.mxu0 0.0
    %2457 = vmatprep.subr.mxu0 0.0
    %2458 = vmatpush1.msra.mxu0 0.0
    %2459 = vmatprep.subr.mxu0 0.0
    %2460 = vmatpush1.msra.mxu0 0.0
    %2461 = vmatprep.subr.mxu0 0.0
    %2462 = vmatpush1.msra.mxu0 0.0
    %2463 = vmatprep.subr.mxu0 0.0
    %2464 = vmatpush1.msra.mxu0 0.0
    %2465 = vmatprep.subr.mxu0 0.0
    %2466 = vmatpush1.msra.mxu0 0.0
    %2467 = vmatprep.subr.mxu0 0.0
    %2468 = vmatpush1.msra.mxu0 0.0
    %2469 = vmatprep.subr.mxu0 0.0
    %2470 = vmatpush1.msra.mxu0 0.0
    %2471 = vmatprep.subr.mxu0 0.0
    %2472 = vmatpush1.msra.mxu0 0.0
    %2473 = vmatprep.subr.mxu0 0.0
    %2474 = vmatpush1.msra.mxu0 0.0
    %2475 = vmatprep.subr.mxu0 0.0
    %2476 = vmatpush1.msra.mxu0 0.0
    %2477 = vmatprep.subr.mxu0 0.0
    %2478 = vmatpush1.msra.mxu0 0.0
    %2479 = vmatprep.subr.mxu0 0.0
    %2480 = vmatpush1.msra.mxu0 0.0
    %2481 = vmatprep.subr.mxu0 0.0
    %2482 = vmatpush1.msra.mxu0 0.0
    %2483 = vmatprep.subr.mxu0 0.0
    %2484 = vmatpush1.msra.mxu0 0.0
    %2485 = vmatprep.subr.mxu0 0.0
    %2486 = vmatpush1.msra.mxu0 0.0
    %2487 = vmatprep.subr.mxu0 0.0
    %2488 = vmatpush1.msra.mxu0 0.0
    %2489 = vmatprep.subr.mxu0 0.0
    %2490 = vmatpush1.msra.mxu0 0.0
    %2491 = vmatprep.subr.mxu0 0.0
    %2492 = vmatpush1.msra.mxu0 0.0
    %2493 = vmatprep.subr.mxu0 0.0
    %2494 = vmatpush1.msra.mxu0 0.0
    %2495 = vmatprep.mubr.f32.mxu0 0.0
    %2496 = vmatmul.mubr.f32.gmra.mrb[0].mxu0 %v2429
    %v2497 = vpop.f32.mrb[0].mxu0
    %v2498 = vadd.f32 %v2426, %v2497
    %v2499 = vpop.f32.mrb[0].mxu0
    %2500 = vdwg.mxu0
    %v2501 = vsub.f32 0.0, %v2498
    %v2502 = vmul.f32 %v2501, 1.442695
    %v2503 = vpow.pop %v2502
    %v2504 = vadd.f32 %v2503, 1.0
    %v2505 = vrcp.pop %v2504
    %v2506 = vmul.f32 1.0, %v2505
    %vm2507 = vcmask 33792
    %2508 = vst.msk [vmem:[#allocation15] sm:$0x3] %vm2507, %v2506
    // Predicated region
    $region198: #{mee_forward.1} parent=1 // pred_check
      _
    $region199: #{mee_forward.1} parent=1 // pred_check_branch
      %2510 = sbr.rel (0) target = $region201
    $region200: #{mee_forward.1} parent=1 // pred_region
      %s2512 = ssub.s32 32, 32
      %2513 = vsyncadd [#allocation12], %s2512
      %s2515 = sshll.u32 [#allocation15], 4
      %s2516 = int_to_ptr.vmem [resolvable:$true] %s2515
      %2518 = dma.vmem_to_hbm [thread:$0]  %s2516, 32, %s95, [#allocation12]
    $region201: #{mee_forward.1} parent=1 // pred_fallthru
      _
    // Predicated region
    $region202: #{mee_forward.1} parent=1 // pred_check
      _
    $region203: #{mee_forward.1} parent=1 // pred_check_branch
      %2520 = sbr.rel (0) target = $region205
    $region204: #{mee_forward.1} parent=1 // pred_region
      %2521 = dma.done [#allocation12], 32
    $region205: #{mee_forward.1} parent=1 // pred_fallthru
      _
    %2522 = vsyncpa [#allocation11], 1
    %2523 = vsyncpa [#allocation14], 1
    %2524 = vsyncpa [#allocation12], 1

</llo_original>
